<compile_context>
chip_gen: v6e
topology: v6e:2x2x1
jax: 0.10.0
libtpu: 0.0.40
codegen_flags: <defaults>
</compile_context>

<pallas_src>
import functools

import jax
import jax.numpy as jnp
from jax.experimental import pallas as pl
from jax.experimental.pallas import tpu as pltpu


def _round_up(x, m):
    return (x + m - 1) // m * m


# ---------------------------------------------------------------------------
# Single fused kernel: stem conv -> Block35 -> avgpool -> embedding head
# ---------------------------------------------------------------------------

def fused_encoder_kernel(x_ref, mask_ref, stem_w_ref, stem_b_ref, br_w_ref, br_b_ref,
                         b1b_w_ref, b1b_b_ref, up_w0_ref, up_w1_ref, up_b_ref,
                         head_w_ref, head_b_ref, o_ref, pad_ref, *,
                         rows, woff, stem_taps, b1b_starts, inv_valid):
    """Whole Encoder forward for ONE image, entirely in VMEM/vregs.

    x_ref      : [1, lpad0, 12]   flattened, spatially padded space-to-depth image (bf16)
    mask_ref   : [rows, 16]       1.0 on valid columns, 0.0 on the (wp-ow) halo columns
    *_w / *_b  : folded weights (bf16) / biases (f32)
    o_ref      : [1, 1, 512]      L2-normalized embedding (f32, lane-dense store)
    pad_ref    : [pad_rows, 16]   VMEM scratch: zero-padded image for the 3x3 conv
    """
    mask = mask_ref[...]                                       # f32 halo mask

    # --- stem: 3x3/s2 conv re-expressed as a 2x2/s1 conv over the space-to-depth input,
    #     done as 4 shifted matmuls on the flattened image (implicit GEMM, no im2col).
    c_feat = stem_w_ref.shape[-1]
    acc = jnp.zeros((rows, c_feat), jnp.float32)
    for t, s in enumerate(stem_taps):                          # static unroll (4 taps)
        acc = acc + jnp.dot(x_ref[0, s:s + rows, :], stem_w_ref[t],
                            preferred_element_type=jnp.float32)
    feat = jnp.maximum(acc + stem_b_ref[...], 0.0) * mask      # f32, halo cols zeroed

    # --- Block35: branch0 1x1 and branch1's first 1x1 fused into one matmul
    #     (columns 0:8 = branch0, columns 8:16 = branch1a).
    feat_bf = feat.astype(jnp.bfloat16)
    br = jnp.dot(feat_bf, br_w_ref[...], preferred_element_type=jnp.float32)
    br = jnp.maximum(br + br_b_ref[...], 0.0) * mask           # zeroed halo also serves
    br_bf = br.astype(jnp.bfloat16)                            # as the 3x3 conv padding

    # --- branch1 3x3 (pad=1) as 9 shifted matmuls over a zero-initialised flat VMEM pad
    #     buffer.  Tap weights have zero rows for the branch0 channels, so no column
    #     slicing of `br` is needed.
    pad_ref[...] = jnp.zeros_like(pad_ref)
    pad_ref[woff:woff + rows, :] = br_bf
    c_b1b = b1b_w_ref.shape[-1]
    acc1 = jnp.zeros((rows, c_b1b), jnp.float32)
    for t, s in enumerate(b1b_starts):                         # static unroll (9 taps)
        acc1 = acc1 + jnp.dot(pad_ref[s:s + rows, :], b1b_w_ref[t],
                              preferred_element_type=jnp.float32)
    br1b = jnp.maximum(acc1 + b1b_b_ref[...], 0.0)

    # --- up-conv (0.17 and bias folded) + residual + ReLU + masked global average pool.
    up = jnp.dot(br_bf, up_w0_ref[...], preferred_element_type=jnp.float32)
    up = up + jnp.dot(br1b.astype(jnp.bfloat16), up_w1_ref[...],
                      preferred_element_type=jnp.float32)
    up = up + up_b_ref[...]
    y = jnp.maximum(feat + up, 0.0) * mask                     # halo excluded from pool
    pooled = jnp.sum(y, axis=0, keepdims=True) * inv_valid     # [1, 16] f32

    # --- head: last_linear + folded BatchNorm1d + L2 normalize; 512-lane dense store.
    emb = jnp.dot(pooled.astype(jnp.bfloat16), head_w_ref[...],
                  preferred_element_type=jnp.float32) + head_b_ref[...]
    ss = jnp.sum(emb * emb, axis=1, keepdims=True)
    o_ref[...] = (emb * jax.lax.rsqrt(jnp.maximum(ss, 1e-24)))[None]   # ||.|| >= 1e-12


# ---------------------------------------------------------------------------
# Forward pass (mirrors Encoder.forward -> InceptionResnetV1.forward, classify=False)
# ---------------------------------------------------------------------------

@jax.jit
def encoder_forward(x_nchw, d):
    n, c_in, h, w = x_nchw.shape
    oh = (h - 3) // 2 + 1                          # conv2d_1a: 3x3, stride 2, valid
    ow = (w - 3) // 2 + 1

    # NCHW -> NHWC, pad spatial to even, 2x2 space-to-depth (bijective, no expansion):
    # turns the stride-2 stem into a stride-1 2x2 conv so in-kernel taps are plain slices.
    x = jnp.transpose(x_nchw, (0, 2, 3, 1)).astype(jnp.float32)
    hp, wpd = h + (h % 2), w + (w % 2)
    x = jnp.pad(x, ((0, 0), (0, hp - h), (0, wpd - w), (0, 0)))
    sh, sw = hp // 2, wpd // 2
    cin = 4 * c_in
    x_s2d = (x.reshape(n, sh, 2, sw, 2, c_in)
               .transpose(0, 1, 3, 2, 4, 5)
               .reshape(n, sh * sw, cin).astype(jnp.bfloat16))

    # Flattened-row implicit-GEMM geometry (wp-strided rows; (wp-ow) halo columns are
    # masked to zero IN-KERNEL - no host-side slice/re-pad between ops).
    wp = sw
    rows = oh * wp
    stem_taps = tuple(a * wp + b for a in range(2) for b in range(2))
    lpad0 = max(_round_up(max(stem_taps) + rows, 8), sh * sw)
    if lpad0 > sh * sw:
        x_s2d = jnp.pad(x_s2d, ((0, 0), (0, lpad0 - sh * sw), (0, 0)))

    # Branch1 3x3 (pad=1) geometry over the zero-initialised VMEM pad buffer: the zeroed
    # halo column doubles as left/right padding; zero head/tail rows are top/bottom pad.
    woff = _round_up(wp + 1, 8)
    b1b_starts = tuple(woff - (wp + 1) + di * wp + dj
                       for di in range(3) for dj in range(3))
    pad_rows = _round_up(max(max(b1b_starts) + rows, woff + rows), 8)

    c_feat = d["stem_w"].shape[-1]
    emb_dim = d["head_w"].shape[-1]
    mask = ((jnp.arange(rows, dtype=jnp.int32) % wp) < ow).astype(jnp.float32)
    mask = jnp.broadcast_to(mask[:, None], (rows, c_feat))

    in_arrays = (x_s2d, mask, d["stem_w"], d["stem_b"], d["br_w"], d["br_b"],
                 d["b1b_w"], d["b1b_b"], d["up_w0"], d["up_w1"], d["up_b"],
                 d["head_w"], d["head_b"])
    flops = (2 * n * rows * (len(stem_taps) * cin * c_feat
                             + c_feat * d["br_w"].shape[-1]
                             + len(b1b_starts) * c_feat * d["b1b_w"].shape[-1]
                             + c_feat * c_feat
                             + d["b1b_w"].shape[-1] * c_feat)
             + 2 * n * c_feat * emb_dim)
    bytes_accessed = (sum(int(a.size) * a.dtype.itemsize for a in in_arrays)
                      + n * emb_dim * 4)

    out = pl.pallas_call(
        functools.partial(fused_encoder_kernel, rows=rows, woff=woff,
                          stem_taps=stem_taps, b1b_starts=b1b_starts,
                          inv_valid=1.0 / float(oh * ow)),
        out_shape=jax.ShapeDtypeStruct((n, 1, emb_dim), jnp.float32),
        grid=(n,),
        in_specs=[
            pl.BlockSpec((1, lpad0, cin), lambda i: (i, 0, 0)),
            pl.BlockSpec(mask.shape, lambda i: (0, 0)),
            pl.BlockSpec(d["stem_w"].shape, lambda i: (0, 0, 0)),
            pl.BlockSpec(d["stem_b"].shape, lambda i: (0, 0)),
            pl.BlockSpec(d["br_w"].shape, lambda i: (0, 0)),
            pl.BlockSpec(d["br_b"].shape, lambda i: (0, 0)),
            pl.BlockSpec(d["b1b_w"].shape, lambda i: (0, 0, 0)),
            pl.BlockSpec(d["b1b_b"].shape, lambda i: (0, 0)),
            pl.BlockSpec(d["up_w0"].shape, lambda i: (0, 0)),
            pl.BlockSpec(d["up_w1"].shape, lambda i: (0, 0)),
            pl.BlockSpec(d["up_b"].shape, lambda i: (0, 0)),
            pl.BlockSpec(d["head_w"].shape, lambda i: (0, 0)),
            pl.BlockSpec(d["head_b"].shape, lambda i: (0, 0)),
        ],
        out_specs=pl.BlockSpec((1, 1, emb_dim), lambda i: (i, 0, 0)),
        scratch_shapes=[pltpu.VMEM((pad_rows, c_feat), jnp.bfloat16)],
        compiler_params=pltpu.CompilerParams(dimension_semantics=("parallel",)),
        cost_estimate=pl.CostEstimate(flops=flops, transcendentals=n,
                                      bytes_accessed=bytes_accessed),
    )(*in_arrays)
    return out.reshape(n, emb_dim)


# ---------------------------------------------------------------------------
# Parameters: deterministic random init (stand-in for vggface2 weights) + host-side prep
# ---------------------------------------------------------------------------

def init_params(key):
    ks = list(jax.random.split(key, 32))
    p = {}

    def conv(cout, cin, k):
        return jax.random.normal(ks.pop(), (cout, cin, k, k), jnp.float32) * 0.1

    def bn(c):
        return (1.0 + 0.1 * jax.random.normal(ks.pop(), (c,), jnp.float32),   # gamma
                0.1 * jax.random.normal(ks.pop(), (c,), jnp.float32),         # beta
                0.05 * jax.random.normal(ks.pop(), (c,), jnp.float32),        # running_mean
                jax.random.uniform(ks.pop(), (c,), jnp.float32, minval=0.5, maxval=1.5))

    p["stem_w"] = conv(16, 3, 3);  p["stem_bn"] = bn(16)    # conv2d_1a: 3x3 s2, BN, ReLU
    p["b0_w"] = conv(8, 16, 1);    p["b0_bn"] = bn(8)       # Block35 branch0: 1x1
    p["b1a_w"] = conv(8, 16, 1);   p["b1a_bn"] = bn(8)      # Block35 branch1: 1x1
    p["b1b_w"] = conv(8, 8, 3);    p["b1b_bn"] = bn(8)      # Block35 branch1: 3x3 pad 1
    p["up_w"] = conv(16, 16, 1)                             # Block35 conv2d (bias, no BN)
    p["up_b"] = 0.05 * jax.random.normal(ks.pop(), (16,), jnp.float32)
    p["lin_w"] = jax.random.normal(ks.pop(), (512, 16), jnp.float32) * 0.1   # [out, in]
    p["lbn"] = bn(512)                                      # last_bn (BatchNorm1d, eps=1e-3)
    return p


def _fold_bn(gamma, beta, mean, var, eps=1e-3):
    scale = gamma * jax.lax.rsqrt(var + eps)
    return scale, beta - mean * scale


def _conv1x1_to_mat(w_oihw):
    return jnp.transpose(w_oihw[:, :, 0, 0], (1, 0))                 # [Cin, Cout]


def _conv3x3_s1_to_taps(w_oihw):
    cout, cin, kh, kw = w_oihw.shape
    return jnp.transpose(w_oihw, (2, 3, 1, 0)).reshape(kh * kw, cin, cout)


def _conv3x3_s2_to_s2d_taps(w_oihw):
    """Remap a 3x3/stride-2 conv into a 2x2/stride-1 conv over the 2x2 space-to-depth
    input.  Channel order = (phase_y, phase_x, cin); tap order = (a, b) row-major."""
    cout, cin, kh, kw = w_oihw.shape
    wt = jnp.transpose(w_oihw, (2, 3, 1, 0))                         # [i, j, cin, cout]
    w2 = jnp.zeros((2, 2, 2, 2, cin, cout), wt.dtype)                # [a, b, py, px, ci, co]
    for a in range(2):
        for py in range(2):
            i = 2 * a + py
            if i >= kh:
                continue
            for b in range(2):
                for px in range(2):
                    j = 2 * b + px
                    if j >= kw:
                        continue
                    w2 = w2.at[a, b, py, px].set(wt[i, j])
    return w2.reshape(4, 4 * cin, cout)


def prepare_params(p):
    """Host-side weight prep: BN / 0.17 folding, layout remaps, bf16 casts."""
    d = {}
    s, b = _fold_bn(*p["stem_bn"])
    d["stem_w"] = (_conv3x3_s2_to_s2d_taps(p["stem_w"]) * s).astype(jnp.bfloat16)  # [4,12,16]
    d["stem_b"] = b[None, :]

    s0, b0 = _fold_bn(*p["b0_bn"])
    s1, b1 = _fold_bn(*p["b1a_bn"])
    d["br_w"] = jnp.concatenate([_conv1x1_to_mat(p["b0_w"]) * s0,
                                 _conv1x1_to_mat(p["b1a_w"]) * s1],
                                axis=1).astype(jnp.bfloat16)          # fused [16, 8+8]
    d["br_b"] = jnp.concatenate([b0, b1])[None, :]

    s2, b2 = _fold_bn(*p["b1b_bn"])
    w3 = _conv3x3_s1_to_taps(p["b1b_w"]) * s2                         # [9, 8, 8]
    # Zero rows for the branch0 channels so the kernel feeds the full fused `br` tensor
    # (no 8-lane column slicing inside the kernel).
    d["b1b_w"] = jnp.concatenate([jnp.zeros_like(w3), w3], axis=1).astype(jnp.bfloat16)
    d["b1b_b"] = b2[None, :]

    w_up = _conv1x1_to_mat(p["up_w"]) * 0.17                          # fold Block35 scale
    d["up_w0"] = jnp.concatenate([w_up[0:8],
                                  jnp.zeros((8, w_up.shape[1]), w_up.dtype)],
                                 axis=0).astype(jnp.bfloat16)         # [16,16], br0 rows only
    d["up_w1"] = w_up[8:16].astype(jnp.bfloat16)                      # [8, 16], br1b rows
    d["up_b"] = (0.17 * p["up_b"])[None, :]

    gs, gb = _fold_bn(*p["lbn"])                                      # BatchNorm1d eps=1e-3
    d["head_w"] = (jnp.transpose(p["lin_w"]) * gs).astype(jnp.bfloat16)
    d["head_b"] = gb[None, :]
    return d


# ---------------------------------------------------------------------------
# Pure-XLA f32 reference (same math) for a correctness check
# ---------------------------------------------------------------------------

@jax.jit
def reference_forward(x_nchw, p):
    x = jnp.transpose(x_nchw, (0, 2, 3, 1)).astype(jnp.float32)

    def conv(x, w, stride, pad):
        return jax.lax.conv_general_dilated(
            x, jnp.transpose(w, (2, 3, 1, 0)), (stride, stride),
            [(pad, pad), (pad, pad)], dimension_numbers=("NHWC", "HWIO", "NHWC"))

    def bn(x, prm, eps=1e-3):
        g, b, m, v = prm
        return (x - m) * jax.lax.rsqrt(v + eps) * g + b

    feat = jax.nn.relu(bn(conv(x, p["stem_w"], 2, 0), p["stem_bn"]))
    br0 = jax.nn.relu(bn(conv(feat, p["b0_w"], 1, 0), p["b0_bn"]))
    br1 = jax.nn.relu(bn(conv(feat, p["b1a_w"], 1, 0), p["b1a_bn"]))
    br1 = jax.nn.relu(bn(conv(br1, p["b1b_w"], 1, 1), p["b1b_bn"]))
    up = conv(jnp.concatenate([br0, br1], axis=-1), p["up_w"], 1, 0) + p["up_b"]
    feat = jax.nn.relu(feat + 0.17 * up)
    pooled = jnp.mean(feat, axis=(1, 2))
    y = pooled @ jnp.transpose(p["lin_w"])
    g, b, m, v = p["lbn"]
    y = (y - m) * jax.lax.rsqrt(v + 1e-3) * g + b
    return y / jnp.maximum(jnp.linalg.norm(y, axis=1, keepdims=True), 1e-12)


# ---------------------------------------------------------------------------

if __name__ == "__main__":
    key = jax.random.PRNGKey(0)
    k_x, k_p = jax.random.split(key)
    # 17x17 RGB batch -> stem output 8x8; the whole per-image working set stays in VMEM.
    x = jax.random.normal(k_x, (2, 3, 17, 17), jnp.float32)
    params = init_params(k_p)
    dev_params = prepare_params(params)

    out = jax.block_until_ready(encoder_forward(x, dev_params))
    assert out.shape == (2, 512), out.shape

    norms = jnp.linalg.norm(out, axis=1)
    assert bool(jnp.all(jnp.abs(norms - 1.0) < 1e-3)), norms          # unit-norm embeddings

    ref = reference_forward(x, params)
    cos = jnp.sum(out * ref, axis=1)                                  # both L2-normalized
    assert bool(jnp.all(cos > 0.99)), cos                             # bf16-vs-f32 tolerance

    print("KERNEL_OK")
</pallas_src>

<mosaic_0001>
module attributes {stable_mosaic.version = 11 : i64} {
  func.func @fused_encoder_kernel(%arg0: i32, %arg1: memref<1x88x12xbf16, #tpu.memory_space<vmem>>, %arg2: memref<72x16xf32, #tpu.memory_space<vmem>>, %arg3: memref<4x12x16xbf16, #tpu.memory_space<vmem>>, %arg4: memref<1x16xf32, #tpu.memory_space<vmem>>, %arg5: memref<16x16xbf16, #tpu.memory_space<vmem>>, %arg6: memref<1x16xf32, #tpu.memory_space<vmem>>, %arg7: memref<9x16x8xbf16, #tpu.memory_space<vmem>>, %arg8: memref<1x8xf32, #tpu.memory_space<vmem>>, %arg9: memref<16x16xbf16, #tpu.memory_space<vmem>>, %arg10: memref<8x16xbf16, #tpu.memory_space<vmem>>, %arg11: memref<1x16xf32, #tpu.memory_space<vmem>>, %arg12: memref<16x512xbf16, #tpu.memory_space<vmem>>, %arg13: memref<1x512xf32, #tpu.memory_space<vmem>>, %arg14: memref<1x1x512xf32, #tpu.memory_space<vmem>>, %arg15: memref<104x16xbf16, #tpu.memory_space<vmem>>) attributes {dimension_semantics = [#tpu.dimension_semantics<parallel>], iteration_bounds = array<i64: 2>, scalar_prefetch = 0 : i64, scratch_operands = 1 : i64, tpu.core_type = #tpu.core_type<tc>, window_params = [{transform_indices = @transform_0, window_bounds = array<i64: 1, 88, 12>}, {pipeline_mode = #tpu.pipeline_mode<synchronous>, transform_indices = @transform_1, window_bounds = array<i64: 72, 16>}, {pipeline_mode = #tpu.pipeline_mode<synchronous>, transform_indices = @transform_2, window_bounds = array<i64: 4, 12, 16>}, {pipeline_mode = #tpu.pipeline_mode<synchronous>, transform_indices = @transform_3, window_bounds = array<i64: 1, 16>}, {pipeline_mode = #tpu.pipeline_mode<synchronous>, transform_indices = @transform_4, window_bounds = array<i64: 16, 16>}, {pipeline_mode = #tpu.pipeline_mode<synchronous>, transform_indices = @transform_5, window_bounds = array<i64: 1, 16>}, {pipeline_mode = #tpu.pipeline_mode<synchronous>, transform_indices = @transform_6, window_bounds = array<i64: 9, 16, 8>}, {pipeline_mode = #tpu.pipeline_mode<synchronous>, transform_indices = @transform_7, window_bounds = array<i64: 1, 8>}, {pipeline_mode = #tpu.pipeline_mode<synchronous>, transform_indices = @transform_8, window_bounds = array<i64: 16, 16>}, {pipeline_mode = #tpu.pipeline_mode<synchronous>, transform_indices = @transform_9, window_bounds = array<i64: 8, 16>}, {pipeline_mode = #tpu.pipeline_mode<synchronous>, transform_indices = @transform_10, window_bounds = array<i64: 1, 16>}, {pipeline_mode = #tpu.pipeline_mode<synchronous>, transform_indices = @transform_11, window_bounds = array<i64: 16, 512>}, {pipeline_mode = #tpu.pipeline_mode<synchronous>, transform_indices = @transform_12, window_bounds = array<i64: 1, 512>}, {transform_indices = @transform_13, window_bounds = array<i64: 1, 1, 512>}]} {
    %c0 = arith.constant 0 : index
    %c0_0 = arith.constant 0 : index
    %0 = vector.load %arg2[%c0, %c0_0] : memref<72x16xf32, #tpu.memory_space<vmem>>, vector<72x16xf32>
    %cst = arith.constant 0.000000e+00 : f32
    %1 = vector.broadcast %cst : f32 to vector<72x16xf32>
    %c0_1 = arith.constant 0 : index
    %c0_2 = arith.constant 0 : index
    %c0_3 = arith.constant 0 : index
    %2 = vector.load %arg1[%c0_1, %c0_2, %c0_3] : memref<1x88x12xbf16, #tpu.memory_space<vmem>>, vector<1x72x12xbf16>
    %3 = vector.shape_cast %2 : vector<1x72x12xbf16> to vector<72x12xbf16>
    %c0_4 = arith.constant 0 : index
    %c0_5 = arith.constant 0 : index
    %c0_6 = arith.constant 0 : index
    %4 = vector.load %arg3[%c0_4, %c0_5, %c0_6] : memref<4x12x16xbf16, #tpu.memory_space<vmem>>, vector<1x12x16xbf16>
    %5 = vector.shape_cast %4 : vector<1x12x16xbf16> to vector<12x16xbf16>
    %cst_7 = arith.constant dense<0.000000e+00> : vector<72x16xf32>
    %6 = tpu.matmul %3, %5, %cst_7 {dimension_numbers = #tpu.dot_dimension_numbers<[1], [0], [0], [1], [0, 0, 1, 1], [], []>} : vector<72x12xbf16>, vector<12x16xbf16>, vector<72x16xf32> -> vector<72x16xf32>
    %7 = arith.addf %1, %6 : vector<72x16xf32>
    %c0_8 = arith.constant 0 : index
    %c1 = arith.constant 1 : index
    %c0_9 = arith.constant 0 : index
    %8 = vector.load %arg1[%c0_8, %c1, %c0_9] : memref<1x88x12xbf16, #tpu.memory_space<vmem>>, vector<1x72x12xbf16>
    %9 = vector.shape_cast %8 : vector<1x72x12xbf16> to vector<72x12xbf16>
    %c1_10 = arith.constant 1 : index
    %c0_11 = arith.constant 0 : index
    %c0_12 = arith.constant 0 : index
    %10 = vector.load %arg3[%c1_10, %c0_11, %c0_12] : memref<4x12x16xbf16, #tpu.memory_space<vmem>>, vector<1x12x16xbf16>
    %11 = vector.shape_cast %10 : vector<1x12x16xbf16> to vector<12x16xbf16>
    %cst_13 = arith.constant dense<0.000000e+00> : vector<72x16xf32>
    %12 = tpu.matmul %9, %11, %cst_13 {dimension_numbers = #tpu.dot_dimension_numbers<[1], [0], [0], [1], [0, 0, 1, 1], [], []>} : vector<72x12xbf16>, vector<12x16xbf16>, vector<72x16xf32> -> vector<72x16xf32>
    %13 = arith.addf %7, %12 : vector<72x16xf32>
    %c0_14 = arith.constant 0 : index
    %c9 = arith.constant 9 : index
    %c0_15 = arith.constant 0 : index
    %14 = vector.load %arg1[%c0_14, %c9, %c0_15] : memref<1x88x12xbf16, #tpu.memory_space<vmem>>, vector<1x72x12xbf16>
    %15 = vector.shape_cast %14 : vector<1x72x12xbf16> to vector<72x12xbf16>
    %c2 = arith.constant 2 : index
    %c0_16 = arith.constant 0 : index
    %c0_17 = arith.constant 0 : index
    %16 = vector.load %arg3[%c2, %c0_16, %c0_17] : memref<4x12x16xbf16, #tpu.memory_space<vmem>>, vector<1x12x16xbf16>
    %17 = vector.shape_cast %16 : vector<1x12x16xbf16> to vector<12x16xbf16>
    %cst_18 = arith.constant dense<0.000000e+00> : vector<72x16xf32>
    %18 = tpu.matmul %15, %17, %cst_18 {dimension_numbers = #tpu.dot_dimension_numbers<[1], [0], [0], [1], [0, 0, 1, 1], [], []>} : vector<72x12xbf16>, vector<12x16xbf16>, vector<72x16xf32> -> vector<72x16xf32>
    %19 = arith.addf %13, %18 : vector<72x16xf32>
    %c0_19 = arith.constant 0 : index
    %c10 = arith.constant 10 : index
    %c0_20 = arith.constant 0 : index
    %20 = vector.load %arg1[%c0_19, %c10, %c0_20] : memref<1x88x12xbf16, #tpu.memory_space<vmem>>, vector<1x72x12xbf16>
    %21 = vector.shape_cast %20 : vector<1x72x12xbf16> to vector<72x12xbf16>
    %c3 = arith.constant 3 : index
    %c0_21 = arith.constant 0 : index
    %c0_22 = arith.constant 0 : index
    %22 = vector.load %arg3[%c3, %c0_21, %c0_22] : memref<4x12x16xbf16, #tpu.memory_space<vmem>>, vector<1x12x16xbf16>
    %23 = vector.shape_cast %22 : vector<1x12x16xbf16> to vector<12x16xbf16>
    %cst_23 = arith.constant dense<0.000000e+00> : vector<72x16xf32>
    %24 = tpu.matmul %21, %23, %cst_23 {dimension_numbers = #tpu.dot_dimension_numbers<[1], [0], [0], [1], [0, 0, 1, 1], [], []>} : vector<72x12xbf16>, vector<12x16xbf16>, vector<72x16xf32> -> vector<72x16xf32>
    %25 = arith.addf %19, %24 : vector<72x16xf32>
    %c0_24 = arith.constant 0 : index
    %c0_25 = arith.constant 0 : index
    %26 = vector.load %arg4[%c0_24, %c0_25] : memref<1x16xf32, #tpu.memory_space<vmem>>, vector<1x16xf32>
    %27 = vector.broadcast %26 : vector<1x16xf32> to vector<72x16xf32>
    %28 = arith.addf %25, %27 : vector<72x16xf32>
    %cst_26 = arith.constant 0.000000e+00 : f32
    %29 = vector.broadcast %cst_26 : f32 to vector<72x16xf32>
    %30 = arith.maximumf %28, %29 : vector<72x16xf32>
    %31 = arith.mulf %30, %0 : vector<72x16xf32>
    %32 = arith.truncf %31 : vector<72x16xf32> to vector<72x16xbf16>
    %c0_27 = arith.constant 0 : index
    %c0_28 = arith.constant 0 : index
    %33 = vector.load %arg5[%c0_27, %c0_28] : memref<16x16xbf16, #tpu.memory_space<vmem>>, vector<16x16xbf16>
    %cst_29 = arith.constant dense<0.000000e+00> : vector<72x16xf32>
    %34 = tpu.matmul %32, %33, %cst_29 {dimension_numbers = #tpu.dot_dimension_numbers<[1], [0], [0], [1], [0, 0, 1, 1], [], []>} : vector<72x16xbf16>, vector<16x16xbf16>, vector<72x16xf32> -> vector<72x16xf32>
    %c0_30 = arith.constant 0 : index
    %c0_31 = arith.constant 0 : index
    %35 = vector.load %arg6[%c0_30, %c0_31] : memref<1x16xf32, #tpu.memory_space<vmem>>, vector<1x16xf32>
    %36 = vector.broadcast %35 : vector<1x16xf32> to vector<72x16xf32>
    %37 = arith.addf %34, %36 : vector<72x16xf32>
    %cst_32 = arith.constant 0.000000e+00 : f32
    %38 = vector.broadcast %cst_32 : f32 to vector<72x16xf32>
    %39 = arith.maximumf %37, %38 : vector<72x16xf32>
    %40 = arith.mulf %39, %0 : vector<72x16xf32>
    %41 = arith.truncf %40 : vector<72x16xf32> to vector<72x16xbf16>
    %cst_33 = arith.constant 0.000000e+00 : bf16
    %42 = vector.broadcast %cst_33 : bf16 to vector<104x16xbf16>
    %c0_34 = arith.constant 0 : index
    %c0_35 = arith.constant 0 : index
    %43 = vector.load %arg15[%c0_34, %c0_35] : memref<104x16xbf16, #tpu.memory_space<vmem>>, vector<104x16xbf16>
    tpu.vector_store %arg15[%c0_34, %c0_35], %42 {strides = array<i32>} : memref<104x16xbf16, #tpu.memory_space<vmem>>, vector<104x16xbf16>,
    %c16 = arith.constant 16 : index
    %c0_36 = arith.constant 0 : index
    %44 = vector.load %arg15[%c16, %c0_36] : memref<104x16xbf16, #tpu.memory_space<vmem>>, vector<72x16xbf16>
    tpu.vector_store %arg15[%c16, %c0_36], %41 {strides = array<i32>} : memref<104x16xbf16, #tpu.memory_space<vmem>>, vector<72x16xbf16>,
    %cst_37 = arith.constant 0.000000e+00 : f32
    %45 = vector.broadcast %cst_37 : f32 to vector<72x8xf32>
    %c6 = arith.constant 6 : index
    %c0_38 = arith.constant 0 : index
    %46 = vector.load %arg15[%c6, %c0_38] : memref<104x16xbf16, #tpu.memory_space<vmem>>, vector<72x16xbf16>
    %c0_39 = arith.constant 0 : index
    %c0_40 = arith.constant 0 : index
    %c0_41 = arith.constant 0 : index
    %47 = vector.load %arg7[%c0_39, %c0_40, %c0_41] : memref<9x16x8xbf16, #tpu.memory_space<vmem>>, vector<1x16x8xbf16>
    %48 = vector.shape_cast %47 : vector<1x16x8xbf16> to vector<16x8xbf16>
    %cst_42 = arith.constant dense<0.000000e+00> : vector<72x8xf32>
    %49 = tpu.matmul %46, %48, %cst_42 {dimension_numbers = #tpu.dot_dimension_numbers<[1], [0], [0], [1], [0, 0, 1, 1], [], []>} : vector<72x16xbf16>, vector<16x8xbf16>, vector<72x8xf32> -> vector<72x8xf32>
    %50 = arith.addf %45, %49 : vector<72x8xf32>
    %c7 = arith.constant 7 : index
    %c0_43 = arith.constant 0 : index
    %51 = vector.load %arg15[%c7, %c0_43] : memref<104x16xbf16, #tpu.memory_space<vmem>>, vector<72x16xbf16>
    %c1_44 = arith.constant 1 : index
    %c0_45 = arith.constant 0 : index
    %c0_46 = arith.constant 0 : index
    %52 = vector.load %arg7[%c1_44, %c0_45, %c0_46] : memref<9x16x8xbf16, #tpu.memory_space<vmem>>, vector<1x16x8xbf16>
    %53 = vector.shape_cast %52 : vector<1x16x8xbf16> to vector<16x8xbf16>
    %cst_47 = arith.constant dense<0.000000e+00> : vector<72x8xf32>
    %54 = tpu.matmul %51, %53, %cst_47 {dimension_numbers = #tpu.dot_dimension_numbers<[1], [0], [0], [1], [0, 0, 1, 1], [], []>} : vector<72x16xbf16>, vector<16x8xbf16>, vector<72x8xf32> -> vector<72x8xf32>
    %55 = arith.addf %50, %54 : vector<72x8xf32>
    %c8 = arith.constant 8 : index
    %c0_48 = arith.constant 0 : index
    %56 = vector.load %arg15[%c8, %c0_48] : memref<104x16xbf16, #tpu.memory_space<vmem>>, vector<72x16xbf16>
    %c2_49 = arith.constant 2 : index
    %c0_50 = arith.constant 0 : index
    %c0_51 = arith.constant 0 : index
    %57 = vector.load %arg7[%c2_49, %c0_50, %c0_51] : memref<9x16x8xbf16, #tpu.memory_space<vmem>>, vector<1x16x8xbf16>
    %58 = vector.shape_cast %57 : vector<1x16x8xbf16> to vector<16x8xbf16>
    %cst_52 = arith.constant dense<0.000000e+00> : vector<72x8xf32>
    %59 = tpu.matmul %56, %58, %cst_52 {dimension_numbers = #tpu.dot_dimension_numbers<[1], [0], [0], [1], [0, 0, 1, 1], [], []>} : vector<72x16xbf16>, vector<16x8xbf16>, vector<72x8xf32> -> vector<72x8xf32>
    %60 = arith.addf %55, %59 : vector<72x8xf32>
    %c15 = arith.constant 15 : index
    %c0_53 = arith.constant 0 : index
    %61 = vector.load %arg15[%c15, %c0_53] : memref<104x16xbf16, #tpu.memory_space<vmem>>, vector<72x16xbf16>
    %c3_54 = arith.constant 3 : index
    %c0_55 = arith.constant 0 : index
    %c0_56 = arith.constant 0 : index
    %62 = vector.load %arg7[%c3_54, %c0_55, %c0_56] : memref<9x16x8xbf16, #tpu.memory_space<vmem>>, vector<1x16x8xbf16>
    %63 = vector.shape_cast %62 : vector<1x16x8xbf16> to vector<16x8xbf16>
    %cst_57 = arith.constant dense<0.000000e+00> : vector<72x8xf32>
    %64 = tpu.matmul %61, %63, %cst_57 {dimension_numbers = #tpu.dot_dimension_numbers<[1], [0], [0], [1], [0, 0, 1, 1], [], []>} : vector<72x16xbf16>, vector<16x8xbf16>, vector<72x8xf32> -> vector<72x8xf32>
    %65 = arith.addf %60, %64 : vector<72x8xf32>
    %c16_58 = arith.constant 16 : index
    %c0_59 = arith.constant 0 : index
    %66 = vector.load %arg15[%c16_58, %c0_59] : memref<104x16xbf16, #tpu.memory_space<vmem>>, vector<72x16xbf16>
    %c4 = arith.constant 4 : index
    %c0_60 = arith.constant 0 : index
    %c0_61 = arith.constant 0 : index
    %67 = vector.load %arg7[%c4, %c0_60, %c0_61] : memref<9x16x8xbf16, #tpu.memory_space<vmem>>, vector<1x16x8xbf16>
    %68 = vector.shape_cast %67 : vector<1x16x8xbf16> to vector<16x8xbf16>
    %cst_62 = arith.constant dense<0.000000e+00> : vector<72x8xf32>
    %69 = tpu.matmul %66, %68, %cst_62 {dimension_numbers = #tpu.dot_dimension_numbers<[1], [0], [0], [1], [0, 0, 1, 1], [], []>} : vector<72x16xbf16>, vector<16x8xbf16>, vector<72x8xf32> -> vector<72x8xf32>
    %70 = arith.addf %65, %69 : vector<72x8xf32>
    %c17 = arith.constant 17 : index
    %c0_63 = arith.constant 0 : index
    %71 = vector.load %arg15[%c17, %c0_63] : memref<104x16xbf16, #tpu.memory_space<vmem>>, vector<72x16xbf16>
    %c5 = arith.constant 5 : index
    %c0_64 = arith.constant 0 : index
    %c0_65 = arith.constant 0 : index
    %72 = vector.load %arg7[%c5, %c0_64, %c0_65] : memref<9x16x8xbf16, #tpu.memory_space<vmem>>, vector<1x16x8xbf16>
    %73 = vector.shape_cast %72 : vector<1x16x8xbf16> to vector<16x8xbf16>
    %cst_66 = arith.constant dense<0.000000e+00> : vector<72x8xf32>
    %74 = tpu.matmul %71, %73, %cst_66 {dimension_numbers = #tpu.dot_dimension_numbers<[1], [0], [0], [1], [0, 0, 1, 1], [], []>} : vector<72x16xbf16>, vector<16x8xbf16>, vector<72x8xf32> -> vector<72x8xf32>
    %75 = arith.addf %70, %74 : vector<72x8xf32>
    %c24 = arith.constant 24 : index
    %c0_67 = arith.constant 0 : index
    %76 = vector.load %arg15[%c24, %c0_67] : memref<104x16xbf16, #tpu.memory_space<vmem>>, vector<72x16xbf16>
    %c6_68 = arith.constant 6 : index
    %c0_69 = arith.constant 0 : index
    %c0_70 = arith.constant 0 : index
    %77 = vector.load %arg7[%c6_68, %c0_69, %c0_70] : memref<9x16x8xbf16, #tpu.memory_space<vmem>>, vector<1x16x8xbf16>
    %78 = vector.shape_cast %77 : vector<1x16x8xbf16> to vector<16x8xbf16>
    %cst_71 = arith.constant dense<0.000000e+00> : vector<72x8xf32>
    %79 = tpu.matmul %76, %78, %cst_71 {dimension_numbers = #tpu.dot_dimension_numbers<[1], [0], [0], [1], [0, 0, 1, 1], [], []>} : vector<72x16xbf16>, vector<16x8xbf16>, vector<72x8xf32> -> vector<72x8xf32>
    %80 = arith.addf %75, %79 : vector<72x8xf32>
    %c25 = arith.constant 25 : index
    %c0_72 = arith.constant 0 : index
    %81 = vector.load %arg15[%c25, %c0_72] : memref<104x16xbf16, #tpu.memory_space<vmem>>, vector<72x16xbf16>
    %c7_73 = arith.constant 7 : index
    %c0_74 = arith.constant 0 : index
    %c0_75 = arith.constant 0 : index
    %82 = vector.load %arg7[%c7_73, %c0_74, %c0_75] : memref<9x16x8xbf16, #tpu.memory_space<vmem>>, vector<1x16x8xbf16>
    %83 = vector.shape_cast %82 : vector<1x16x8xbf16> to vector<16x8xbf16>
    %cst_76 = arith.constant dense<0.000000e+00> : vector<72x8xf32>
    %84 = tpu.matmul %81, %83, %cst_76 {dimension_numbers = #tpu.dot_dimension_numbers<[1], [0], [0], [1], [0, 0, 1, 1], [], []>} : vector<72x16xbf16>, vector<16x8xbf16>, vector<72x8xf32> -> vector<72x8xf32>
    %85 = arith.addf %80, %84 : vector<72x8xf32>
    %c26 = arith.constant 26 : index
    %c0_77 = arith.constant 0 : index
    %86 = vector.load %arg15[%c26, %c0_77] : memref<104x16xbf16, #tpu.memory_space<vmem>>, vector<72x16xbf16>
    %c8_78 = arith.constant 8 : index
    %c0_79 = arith.constant 0 : index
    %c0_80 = arith.constant 0 : index
    %87 = vector.load %arg7[%c8_78, %c0_79, %c0_80] : memref<9x16x8xbf16, #tpu.memory_space<vmem>>, vector<1x16x8xbf16>
    %88 = vector.shape_cast %87 : vector<1x16x8xbf16> to vector<16x8xbf16>
    %cst_81 = arith.constant dense<0.000000e+00> : vector<72x8xf32>
    %89 = tpu.matmul %86, %88, %cst_81 {dimension_numbers = #tpu.dot_dimension_numbers<[1], [0], [0], [1], [0, 0, 1, 1], [], []>} : vector<72x16xbf16>, vector<16x8xbf16>, vector<72x8xf32> -> vector<72x8xf32>
    %90 = arith.addf %85, %89 : vector<72x8xf32>
    %c0_82 = arith.constant 0 : index
    %c0_83 = arith.constant 0 : index
    %91 = vector.load %arg8[%c0_82, %c0_83] : memref<1x8xf32, #tpu.memory_space<vmem>>, vector<1x8xf32>
    %92 = vector.broadcast %91 : vector<1x8xf32> to vector<72x8xf32>
    %93 = arith.addf %90, %92 : vector<72x8xf32>
    %cst_84 = arith.constant 0.000000e+00 : f32
    %94 = vector.broadcast %cst_84 : f32 to vector<72x8xf32>
    %95 = arith.maximumf %93, %94 : vector<72x8xf32>
    %c0_85 = arith.constant 0 : index
    %c0_86 = arith.constant 0 : index
    %96 = vector.load %arg9[%c0_85, %c0_86] : memref<16x16xbf16, #tpu.memory_space<vmem>>, vector<16x16xbf16>
    %cst_87 = arith.constant dense<0.000000e+00> : vector<72x16xf32>
    %97 = tpu.matmul %41, %96, %cst_87 {dimension_numbers = #tpu.dot_dimension_numbers<[1], [0], [0], [1], [0, 0, 1, 1], [], []>} : vector<72x16xbf16>, vector<16x16xbf16>, vector<72x16xf32> -> vector<72x16xf32>
    %98 = arith.truncf %95 : vector<72x8xf32> to vector<72x8xbf16>
    %c0_88 = arith.constant 0 : index
    %c0_89 = arith.constant 0 : index
    %99 = vector.load %arg10[%c0_88, %c0_89] : memref<8x16xbf16, #tpu.memory_space<vmem>>, vector<8x16xbf16>
    %cst_90 = arith.constant dense<0.000000e+00> : vector<72x16xf32>
    %100 = tpu.matmul %98, %99, %cst_90 {dimension_numbers = #tpu.dot_dimension_numbers<[1], [0], [0], [1], [0, 0, 1, 1], [], []>} : vector<72x8xbf16>, vector<8x16xbf16>, vector<72x16xf32> -> vector<72x16xf32>
    %101 = arith.addf %97, %100 : vector<72x16xf32>
    %c0_91 = arith.constant 0 : index
    %c0_92 = arith.constant 0 : index
    %102 = vector.load %arg11[%c0_91, %c0_92] : memref<1x16xf32, #tpu.memory_space<vmem>>, vector<1x16xf32>
    %103 = vector.broadcast %102 : vector<1x16xf32> to vector<72x16xf32>
    %104 = arith.addf %101, %103 : vector<72x16xf32>
    %105 = arith.addf %31, %104 : vector<72x16xf32>
    %cst_93 = arith.constant 0.000000e+00 : f32
    %106 = vector.broadcast %cst_93 : f32 to vector<72x16xf32>
    %107 = arith.maximumf %105, %106 : vector<72x16xf32>
    %108 = arith.mulf %107, %0 : vector<72x16xf32>
    %cst_94 = arith.constant dense<0.000000e+00> : vector<16xf32>
    %109 = vector.multi_reduction <add>, %108, %cst_94 [0] : vector<72x16xf32> to vector<16xf32>
    %110 = vector.shape_cast %109 : vector<16xf32> to vector<1x16xf32>
    %cst_95 = arith.constant 1.562500e-02 : f32
    %111 = vector.broadcast %cst_95 : f32 to vector<1x16xf32>
    %112 = arith.mulf %110, %111 : vector<1x16xf32>
    %113 = arith.truncf %112 : vector<1x16xf32> to vector<1x16xbf16>
    %c0_96 = arith.constant 0 : index
    %c0_97 = arith.constant 0 : index
    %114 = vector.load %arg12[%c0_96, %c0_97] : memref<16x512xbf16, #tpu.memory_space<vmem>>, vector<16x512xbf16>
    %cst_98 = arith.constant dense<0.000000e+00> : vector<1x512xf32>
    %115 = tpu.matmul %113, %114, %cst_98 {dimension_numbers = #tpu.dot_dimension_numbers<[1], [0], [0], [1], [0, 0, 1, 1], [], []>} : vector<1x16xbf16>, vector<16x512xbf16>, vector<1x512xf32> -> vector<1x512xf32>
    %c0_99 = arith.constant 0 : index
    %c0_100 = arith.constant 0 : index
    %116 = vector.load %arg13[%c0_99, %c0_100] : memref<1x512xf32, #tpu.memory_space<vmem>>, vector<1x512xf32>
    %117 = arith.addf %115, %116 : vector<1x512xf32>
    %118 = arith.mulf %117, %117 : vector<1x512xf32>
    %cst_101 = arith.constant dense<0.000000e+00> : vector<1xf32>
    %119 = vector.multi_reduction <add>, %118, %cst_101 [1] : vector<1x512xf32> to vector<1xf32>
    %120 = vector.shape_cast %119 : vector<1xf32> to vector<1x1xf32>
    %cst_102 = arith.constant 1.000000e-24 : f32
    %121 = vector.broadcast %cst_102 : f32 to vector<1x1xf32>
    %122 = arith.maximumf %120, %121 : vector<1x1xf32>
    %123 = math.rsqrt %122 : vector<1x1xf32>
    %124 = vector.broadcast %123 : vector<1x1xf32> to vector<1x512xf32>
    %125 = arith.mulf %117, %124 : vector<1x512xf32>
    %126 = vector.shape_cast %125 : vector<1x512xf32> to vector<1x1x512xf32>
    %c0_103 = arith.constant 0 : index
    %c0_104 = arith.constant 0 : index
    %c0_105 = arith.constant 0 : index
    %127 = vector.load %arg14[%c0_103, %c0_104, %c0_105] : memref<1x1x512xf32, #tpu.memory_space<vmem>>, vector<1x1x512xf32>
    tpu.vector_store %arg14[%c0_103, %c0_104, %c0_105], %126 {strides = array<i32>} : memref<1x1x512xf32, #tpu.memory_space<vmem>>, vector<1x1x512xf32>,
    return
  }
  func.func @transform_0(%arg0: i32) -> (i32, i32, i32) {
    %c0_i32 = arith.constant 0 : i32
    %c0_i32_0 = arith.constant 0 : i32
    %c0_i32_1 = arith.constant 0 : i32
    return %arg0, %c0_i32, %c0_i32_0 : i32, i32, i32
  }
  func.func @transform_1(%arg0: i32) -> (i32, i32) {
    %c0_i32 = arith.constant 0 : i32
    %c0_i32_0 = arith.constant 0 : i32
    %c0_i32_1 = arith.constant 0 : i32
    return %c0_i32, %c0_i32_0 : i32, i32
  }
  func.func @transform_2(%arg0: i32) -> (i32, i32, i32) {
    %c0_i32 = arith.constant 0 : i32
    %c0_i32_0 = arith.constant 0 : i32
    %c0_i32_1 = arith.constant 0 : i32
    %c0_i32_2 = arith.constant 0 : i32
    return %c0_i32, %c0_i32_0, %c0_i32_1 : i32, i32, i32
  }
  func.func @transform_3(%arg0: i32) -> (i32, i32) {
    %c0_i32 = arith.constant 0 : i32
    %c0_i32_0 = arith.constant 0 : i32
    %c0_i32_1 = arith.constant 0 : i32
    return %c0_i32, %c0_i32_0 : i32, i32
  }
  func.func @transform_4(%arg0: i32) -> (i32, i32) {
    %c0_i32 = arith.constant 0 : i32
    %c0_i32_0 = arith.constant 0 : i32
    %c0_i32_1 = arith.constant 0 : i32
    return %c0_i32, %c0_i32_0 : i32, i32
  }
  func.func @transform_5(%arg0: i32) -> (i32, i32) {
    %c0_i32 = arith.constant 0 : i32
    %c0_i32_0 = arith.constant 0 : i32
    %c0_i32_1 = arith.constant 0 : i32
    return %c0_i32, %c0_i32_0 : i32, i32
  }
  func.func @transform_6(%arg0: i32) -> (i32, i32, i32) {
    %c0_i32 = arith.constant 0 : i32
    %c0_i32_0 = arith.constant 0 : i32
    %c0_i32_1 = arith.constant 0 : i32
    %c0_i32_2 = arith.constant 0 : i32
    return %c0_i32, %c0_i32_0, %c0_i32_1 : i32, i32, i32
  }
  func.func @transform_7(%arg0: i32) -> (i32, i32) {
    %c0_i32 = arith.constant 0 : i32
    %c0_i32_0 = arith.constant 0 : i32
    %c0_i32_1 = arith.constant 0 : i32
    return %c0_i32, %c0_i32_0 : i32, i32
  }
  func.func @transform_8(%arg0: i32) -> (i32, i32) {
    %c0_i32 = arith.constant 0 : i32
    %c0_i32_0 = arith.constant 0 : i32
    %c0_i32_1 = arith.constant 0 : i32
    return %c0_i32, %c0_i32_0 : i32, i32
  }
  func.func @transform_9(%arg0: i32) -> (i32, i32) {
    %c0_i32 = arith.constant 0 : i32
    %c0_i32_0 = arith.constant 0 : i32
    %c0_i32_1 = arith.constant 0 : i32
    return %c0_i32, %c0_i32_0 : i32, i32
  }
  func.func @transform_10(%arg0: i32) -> (i32, i32) {
    %c0_i32 = arith.constant 0 : i32
    %c0_i32_0 = arith.constant 0 : i32
    %c0_i32_1 = arith.constant 0 : i32
    return %c0_i32, %c0_i32_0 : i32, i32
  }
  func.func @transform_11(%arg0: i32) -> (i32, i32) {
    %c0_i32 = arith.constant 0 : i32
    %c0_i32_0 = arith.constant 0 : i32
    %c0_i32_1 = arith.constant 0 : i32
    return %c0_i32, %c0_i32_0 : i32, i32
  }
  func.func @transform_12(%arg0: i32) -> (i32, i32) {
    %c0_i32 = arith.constant 0 : i32
    %c0_i32_0 = arith.constant 0 : i32
    %c0_i32_1 = arith.constant 0 : i32
    return %c0_i32, %c0_i32_0 : i32, i32
  }
  func.func @transform_13(%arg0: i32) -> (i32, i32, i32) {
    %c0_i32 = arith.constant 0 : i32
    %c0_i32_0 = arith.constant 0 : i32
    %c0_i32_1 = arith.constant 0 : i32
    return %arg0, %c0_i32, %c0_i32_0 : i32, i32, i32
  }
}

</mosaic_0001>

<llo_original>
// kernel: encoder_forward.1
$region0: #{encoder_forward.1}
  #allocation0 [shape = 'u32[]', space=smem, size = 0x4, offset = 0x4, fixed_abs, tag = 'smem constant byte address 0x4 - core index']
  #allocation1 [shape = 'u32[144,128]{1,0:T(1,128)}', space=vmem, size = 0x12000, scoped, tag = 'internal scratch']
  #allocation2 [shape = 'bf16[104,16]{1,0:T(8,128)(2,1)}', space=vmem, size = 0x6800, scoped, tag = 'scratch operand']
  %s0 = inlined_call_operand.vmem [shape: bf16[2,88,12], index: 0, kind: input, shape index: {}]
  %s1 = inlined_call_operand.vmem [shape: f32[72,16], index: 1, kind: input, shape index: {}]
  %s2 = inlined_call_operand.vmem [shape: bf16[4,12,16], index: 2, kind: input, shape index: {}]
  %s3 = inlined_call_operand.vmem [shape: f32[1,16], index: 3, kind: input, shape index: {}]
  %s4 = inlined_call_operand.vmem [shape: bf16[16,16], index: 4, kind: input, shape index: {}]
  %s5 = inlined_call_operand.vmem [shape: f32[1,16], index: 5, kind: input, shape index: {}]
  %s6 = inlined_call_operand.vmem [shape: bf16[9,16,8], index: 6, kind: input, shape index: {}]
  %s7 = inlined_call_operand.vmem [shape: f32[1,8], index: 7, kind: input, shape index: {}]
  %s8 = inlined_call_operand.vmem [shape: bf16[16,16], index: 8, kind: input, shape index: {}]
  %s9 = inlined_call_operand.vmem [shape: bf16[8,16], index: 9, kind: input, shape index: {}]
  %s10 = inlined_call_operand.vmem [shape: f32[1,16], index: 10, kind: input, shape index: {}]
  %s11 = inlined_call_operand.vmem [shape: bf16[16,512], index: 11, kind: input, shape index: {}]
  %s12 = inlined_call_operand.vmem [shape: f32[1,512], index: 12, kind: input, shape index: {}]
  %s13 = inlined_call_operand.vmem [shape: f32[2,1,512], index: 13, kind: output, shape index: {}]
  %s14 = sld [smem:[#allocation0]]
  $region85: #{encoder_forward.1} parent=0
    _
  %s16 = ssub.s32 1, %s14
  %s17 = scalar_select 0, %s16, %s14
  loop: start=0, step=1, limit=4
  $region2: #{encoder_forward.1} parent=0 // loop_pre_header
    _
  $region3: #{encoder_forward.1} parent=0 // loop_header
    %s19 = sphi 0, %s23
    %p20 = scmp.ge.s32.totalorder %s19, 4
    %s29 = sphi 0, %s31
    %s32 = sphi 0, %s29
    %s33 = sphi 0, %s32
    %s49 = sphi 0, %s33
    %s53 = sphi 0, %s53
    %s55 = sphi 0, %s53
    %s56 = sphi 0, %s55
    %s70 = sphi 0, %s56
    %s74 = sphi 0, %s74
    %s76 = sphi 0, %s74
    %s77 = sphi 0, %s76
    %s91 = sphi 0, %s77
    %s95 = sphi 0, %s95
    %s97 = sphi 0, %s95
    %s98 = sphi 0, %s97
    %s112 = sphi 0, %s98
    %s116 = sphi 0, %s116
    %s118 = sphi 0, %s116
    %s119 = sphi 0, %s118
    %s133 = sphi 0, %s119
    %s137 = sphi 0, %s137
    %s139 = sphi 0, %s137
    %s140 = sphi 0, %s139
    %s154 = sphi 0, %s140
    %s158 = sphi 0, %s158
    %s160 = sphi 0, %s158
    %s161 = sphi 0, %s160
    %s175 = sphi 0, %s161
    %s179 = sphi 0, %s179
    %s181 = sphi 0, %s179
    %s182 = sphi 0, %s181
    %s196 = sphi 0, %s182
    %s200 = sphi 0, %s200
    %s202 = sphi 0, %s200
    %s203 = sphi 0, %s202
    %s217 = sphi 0, %s203
    %s221 = sphi 0, %s221
    %s223 = sphi 0, %s221
    %s224 = sphi 0, %s223
    %s238 = sphi 0, %s224
    %s242 = sphi 0, %s242
    %s244 = sphi 0, %s242
    %s245 = sphi 0, %s244
    %s259 = sphi 0, %s245
    %s263 = sphi 0, %s263
    %s265 = sphi 0, %s263
    %s266 = sphi 0, %s265
    %s280 = sphi 0, %s266
    %s284 = sphi 0, %s284
    %s286 = sphi 0, %s284
    %s287 = sphi 0, %s286
    %s301 = sphi 0, %s287
    %s307 = sphi 0, %s309
    %s310 = sphi 0, %s307
    %s311 = sphi 0, %s310
    %s327 = sphi 0, %s311
  $region4: #{encoder_forward.1} parent=0 // loop_header_branch
    %22 = sbr.rel (%p20) target = $region8
  $region5: #{encoder_forward.1} parent=0 // loop_body
    %s24 = ssub.s32 %s19, 1
    %s25 = ssub.s32 %s19, 2
    %s26 = sadd.s32 %s19, 1
    %s27 = ssub.s32 %s19, %s26
    %p28 = scmp.eq.s32.totalorder %s27, 0
    %s30 = sadd.s32 %s29, 1
    %s31 = scalar_select %p28, %s29, %s30
    %p34 = pneg %p28
    %p35 = scmp.eq.s32.totalorder %s19, 1
    %p36 = por %p34, %p35
    %p37 = scmp.ne.s32.totalorder %s29, %s32
    %p38 = scmp.eq.s32.totalorder %s19, 0
    %p39 = por %p37, %p38
    %p40 = scmp.ne.s32.totalorder %s29, %s32
    %p41 = scmp.eq.s32.totalorder %s24, 1
    %p42 = por %p40, %p41
    %p43 = scmp.ne.s32.totalorder %s32, %s33
    %p44 = scmp.eq.s32.totalorder %s24, 0
    %p45 = por %p43, %p44
    %p46 = scmp.ne.s32.totalorder %s32, %s33
    %p47 = scmp.eq.s32.totalorder %s25, 1
    %p48 = por %p46, %p47
    %p50 = scmp.ne.s32.totalorder %s33, %s49
    %p51 = scmp.eq.s32.totalorder %s25, 0
    %p52 = por %p50, %p51
    %s54 = sadd.s32 %s53, 1
    %p57 = scmp.eq.s32.totalorder %s19, 1
    %p58 = scmp.ne.s32.totalorder %s53, %s55
    %p59 = scmp.eq.s32.totalorder %s19, 0
    %p60 = por %p58, %p59
    %p61 = scmp.ne.s32.totalorder %s53, %s55
    %p62 = scmp.eq.s32.totalorder %s24, 1
    %p63 = por %p61, %p62
    %p64 = scmp.ne.s32.totalorder %s55, %s56
    %p65 = scmp.eq.s32.totalorder %s24, 0
    %p66 = por %p64, %p65
    %p67 = scmp.ne.s32.totalorder %s55, %s56
    %p68 = scmp.eq.s32.totalorder %s25, 1
    %p69 = por %p67, %p68
    %p71 = scmp.ne.s32.totalorder %s56, %s70
    %p72 = scmp.eq.s32.totalorder %s25, 0
    %p73 = por %p71, %p72
    %s75 = sadd.s32 %s74, 1
    %p78 = scmp.eq.s32.totalorder %s19, 1
    %p79 = scmp.ne.s32.totalorder %s74, %s76
    %p80 = scmp.eq.s32.totalorder %s19, 0
    %p81 = por %p79, %p80
    %p82 = scmp.ne.s32.totalorder %s74, %s76
    %p83 = scmp.eq.s32.totalorder %s24, 1
    %p84 = por %p82, %p83
    %p85 = scmp.ne.s32.totalorder %s76, %s77
    %p86 = scmp.eq.s32.totalorder %s24, 0
    %p87 = por %p85, %p86
    %p88 = scmp.ne.s32.totalorder %s76, %s77
    %p89 = scmp.eq.s32.totalorder %s25, 1
    %p90 = por %p88, %p89
    %p92 = scmp.ne.s32.totalorder %s77, %s91
    %p93 = scmp.eq.s32.totalorder %s25, 0
    %p94 = por %p92, %p93
    %s96 = sadd.s32 %s95, 1
    %p99 = scmp.eq.s32.totalorder %s19, 1
    %p100 = scmp.ne.s32.totalorder %s95, %s97
    %p101 = scmp.eq.s32.totalorder %s19, 0
    %p102 = por %p100, %p101
    %p103 = scmp.ne.s32.totalorder %s95, %s97
    %p104 = scmp.eq.s32.totalorder %s24, 1
    %p105 = por %p103, %p104
    %p106 = scmp.ne.s32.totalorder %s97, %s98
    %p107 = scmp.eq.s32.totalorder %s24, 0
    %p108 = por %p106, %p107
    %p109 = scmp.ne.s32.totalorder %s97, %s98
    %p110 = scmp.eq.s32.totalorder %s25, 1
    %p111 = por %p109, %p110
    %p113 = scmp.ne.s32.totalorder %s98, %s112
    %p114 = scmp.eq.s32.totalorder %s25, 0
    %p115 = por %p113, %p114
    %s117 = sadd.s32 %s116, 1
    %p120 = scmp.eq.s32.totalorder %s19, 1
    %p121 = scmp.ne.s32.totalorder %s116, %s118
    %p122 = scmp.eq.s32.totalorder %s19, 0
    %p123 = por %p121, %p122
    %p124 = scmp.ne.s32.totalorder %s116, %s118
    %p125 = scmp.eq.s32.totalorder %s24, 1
    %p126 = por %p124, %p125
    %p127 = scmp.ne.s32.totalorder %s118, %s119
    %p128 = scmp.eq.s32.totalorder %s24, 0
    %p129 = por %p127, %p128
    %p130 = scmp.ne.s32.totalorder %s118, %s119
    %p131 = scmp.eq.s32.totalorder %s25, 1
    %p132 = por %p130, %p131
    %p134 = scmp.ne.s32.totalorder %s119, %s133
    %p135 = scmp.eq.s32.totalorder %s25, 0
    %p136 = por %p134, %p135
    %s138 = sadd.s32 %s137, 1
    %p141 = scmp.eq.s32.totalorder %s19, 1
    %p142 = scmp.ne.s32.totalorder %s137, %s139
    %p143 = scmp.eq.s32.totalorder %s19, 0
    %p144 = por %p142, %p143
    %p145 = scmp.ne.s32.totalorder %s137, %s139
    %p146 = scmp.eq.s32.totalorder %s24, 1
    %p147 = por %p145, %p146
    %p148 = scmp.ne.s32.totalorder %s139, %s140
    %p149 = scmp.eq.s32.totalorder %s24, 0
    %p150 = por %p148, %p149
    %p151 = scmp.ne.s32.totalorder %s139, %s140
    %p152 = scmp.eq.s32.totalorder %s25, 1
    %p153 = por %p151, %p152
    %p155 = scmp.ne.s32.totalorder %s140, %s154
    %p156 = scmp.eq.s32.totalorder %s25, 0
    %p157 = por %p155, %p156
    %s159 = sadd.s32 %s158, 1
    %p162 = scmp.eq.s32.totalorder %s19, 1
    %p163 = scmp.ne.s32.totalorder %s158, %s160
    %p164 = scmp.eq.s32.totalorder %s19, 0
    %p165 = por %p163, %p164
    %p166 = scmp.ne.s32.totalorder %s158, %s160
    %p167 = scmp.eq.s32.totalorder %s24, 1
    %p168 = por %p166, %p167
    %p169 = scmp.ne.s32.totalorder %s160, %s161
    %p170 = scmp.eq.s32.totalorder %s24, 0
    %p171 = por %p169, %p170
    %p172 = scmp.ne.s32.totalorder %s160, %s161
    %p173 = scmp.eq.s32.totalorder %s25, 1
    %p174 = por %p172, %p173
    %p176 = scmp.ne.s32.totalorder %s161, %s175
    %p177 = scmp.eq.s32.totalorder %s25, 0
    %p178 = por %p176, %p177
    %s180 = sadd.s32 %s179, 1
    %p183 = scmp.eq.s32.totalorder %s19, 1
    %p184 = scmp.ne.s32.totalorder %s179, %s181
    %p185 = scmp.eq.s32.totalorder %s19, 0
    %p186 = por %p184, %p185
    %p187 = scmp.ne.s32.totalorder %s179, %s181
    %p188 = scmp.eq.s32.totalorder %s24, 1
    %p189 = por %p187, %p188
    %p190 = scmp.ne.s32.totalorder %s181, %s182
    %p191 = scmp.eq.s32.totalorder %s24, 0
    %p192 = por %p190, %p191
    %p193 = scmp.ne.s32.totalorder %s181, %s182
    %p194 = scmp.eq.s32.totalorder %s25, 1
    %p195 = por %p193, %p194
    %p197 = scmp.ne.s32.totalorder %s182, %s196
    %p198 = scmp.eq.s32.totalorder %s25, 0
    %p199 = por %p197, %p198
    %s201 = sadd.s32 %s200, 1
    %p204 = scmp.eq.s32.totalorder %s19, 1
    %p205 = scmp.ne.s32.totalorder %s200, %s202
    %p206 = scmp.eq.s32.totalorder %s19, 0
    %p207 = por %p205, %p206
    %p208 = scmp.ne.s32.totalorder %s200, %s202
    %p209 = scmp.eq.s32.totalorder %s24, 1
    %p210 = por %p208, %p209
    %p211 = scmp.ne.s32.totalorder %s202, %s203
    %p212 = scmp.eq.s32.totalorder %s24, 0
    %p213 = por %p211, %p212
    %p214 = scmp.ne.s32.totalorder %s202, %s203
    %p215 = scmp.eq.s32.totalorder %s25, 1
    %p216 = por %p214, %p215
    %p218 = scmp.ne.s32.totalorder %s203, %s217
    %p219 = scmp.eq.s32.totalorder %s25, 0
    %p220 = por %p218, %p219
    %s222 = sadd.s32 %s221, 1
    %p225 = scmp.eq.s32.totalorder %s19, 1
    %p226 = scmp.ne.s32.totalorder %s221, %s223
    %p227 = scmp.eq.s32.totalorder %s19, 0
    %p228 = por %p226, %p227
    %p229 = scmp.ne.s32.totalorder %s221, %s223
    %p230 = scmp.eq.s32.totalorder %s24, 1
    %p231 = por %p229, %p230
    %p232 = scmp.ne.s32.totalorder %s223, %s224
    %p233 = scmp.eq.s32.totalorder %s24, 0
    %p234 = por %p232, %p233
    %p235 = scmp.ne.s32.totalorder %s223, %s224
    %p236 = scmp.eq.s32.totalorder %s25, 1
    %p237 = por %p235, %p236
    %p239 = scmp.ne.s32.totalorder %s224, %s238
    %p240 = scmp.eq.s32.totalorder %s25, 0
    %p241 = por %p239, %p240
    %s243 = sadd.s32 %s242, 1
    %p246 = scmp.eq.s32.totalorder %s19, 1
    %p247 = scmp.ne.s32.totalorder %s242, %s244
    %p248 = scmp.eq.s32.totalorder %s19, 0
    %p249 = por %p247, %p248
    %p250 = scmp.ne.s32.totalorder %s242, %s244
    %p251 = scmp.eq.s32.totalorder %s24, 1
    %p252 = por %p250, %p251
    %p253 = scmp.ne.s32.totalorder %s244, %s245
    %p254 = scmp.eq.s32.totalorder %s24, 0
    %p255 = por %p253, %p254
    %p256 = scmp.ne.s32.totalorder %s244, %s245
    %p257 = scmp.eq.s32.totalorder %s25, 1
    %p258 = por %p256, %p257
    %p260 = scmp.ne.s32.totalorder %s245, %s259
    %p261 = scmp.eq.s32.totalorder %s25, 0
    %p262 = por %p260, %p261
    %s264 = sadd.s32 %s263, 1
    %p267 = scmp.eq.s32.totalorder %s19, 1
    %p268 = scmp.ne.s32.totalorder %s263, %s265
    %p269 = scmp.eq.s32.totalorder %s19, 0
    %p270 = por %p268, %p269
    %p271 = scmp.ne.s32.totalorder %s263, %s265
    %p272 = scmp.eq.s32.totalorder %s24, 1
    %p273 = por %p271, %p272
    %p274 = scmp.ne.s32.totalorder %s265, %s266
    %p275 = scmp.eq.s32.totalorder %s24, 0
    %p276 = por %p274, %p275
    %p277 = scmp.ne.s32.totalorder %s265, %s266
    %p278 = scmp.eq.s32.totalorder %s25, 1
    %p279 = por %p277, %p278
    %p281 = scmp.ne.s32.totalorder %s266, %s280
    %p282 = scmp.eq.s32.totalorder %s25, 0
    %p283 = por %p281, %p282
    %s285 = sadd.s32 %s284, 1
    %p288 = scmp.eq.s32.totalorder %s19, 1
    %p289 = scmp.ne.s32.totalorder %s284, %s286
    %p290 = scmp.eq.s32.totalorder %s19, 0
    %p291 = por %p289, %p290
    %p292 = scmp.ne.s32.totalorder %s284, %s286
    %p293 = scmp.eq.s32.totalorder %s24, 1
    %p294 = por %p292, %p293
    %p295 = scmp.ne.s32.totalorder %s286, %s287
    %p296 = scmp.eq.s32.totalorder %s24, 0
    %p297 = por %p295, %p296
    %p298 = scmp.ne.s32.totalorder %s286, %s287
    %p299 = scmp.eq.s32.totalorder %s25, 1
    %p300 = por %p298, %p299
    %p302 = scmp.ne.s32.totalorder %s287, %s301
    %p303 = scmp.eq.s32.totalorder %s25, 0
    %p304 = por %p302, %p303
    %s305 = ssub.s32 %s19, %s26
    %p306 = scmp.eq.s32.totalorder %s305, 0
    %s308 = sadd.s32 %s307, 1
    %s309 = scalar_select %p306, %s307, %s308
    %p312 = pneg %p306
    %p313 = scmp.eq.s32.totalorder %s19, 1
    %p314 = por %p312, %p313
    %p315 = scmp.ne.s32.totalorder %s307, %s310
    %p316 = scmp.eq.s32.totalorder %s19, 0
    %p317 = por %p315, %p316
    %p318 = scmp.ne.s32.totalorder %s307, %s310
    %p319 = scmp.eq.s32.totalorder %s24, 1
    %p320 = por %p318, %p319
    %p321 = scmp.ne.s32.totalorder %s310, %s311
    %p322 = scmp.eq.s32.totalorder %s24, 0
    %p323 = por %p321, %p322
    %p324 = scmp.ne.s32.totalorder %s310, %s311
    %p325 = scmp.eq.s32.totalorder %s25, 1
    %p326 = por %p324, %p325
    %p328 = scmp.ne.s32.totalorder %s311, %s327
    %p329 = scmp.eq.s32.totalorder %s25, 0
    %p330 = por %p328, %p329
    %p331 = scmp.le.s32.totalorder 1, %s19
    %p332 = scmp.lt.s32.totalorder %s19, 3
    %p333 = pnand %p331, %p332
    %p334 = pneg %p333
    // Predicated region
    $region9: #{encoder_forward.1} parent=5 // pred_check
      _
    $region10: #{encoder_forward.1} parent=5 // pred_check_branch
      %336 = sbr.rel (%p333) target = $region12
    $region11: #{encoder_forward.1} parent=5 // pred_region
      %s337 = ssub.s32 %s19, 1
      // Predicated region
      $region13: #{encoder_forward.1} parent=11 // pred_check
        %p338 = pneg %p66
      $region14: #{encoder_forward.1} parent=11 // pred_check_branch
        %340 = sbr.rel (%p338) target = $region16
      $region15: #{encoder_forward.1} parent=11 // pred_region
        _
      $region16: #{encoder_forward.1} parent=11 // pred_fallthru
        _
      // Predicated region
      $region17: #{encoder_forward.1} parent=11 // pred_check
        %p341 = pneg %p87
      $region18: #{encoder_forward.1} parent=11 // pred_check_branch
        %343 = sbr.rel (%p341) target = $region20
      $region19: #{encoder_forward.1} parent=11 // pred_region
        _
      $region20: #{encoder_forward.1} parent=11 // pred_fallthru
        _
      // Predicated region
      $region21: #{encoder_forward.1} parent=11 // pred_check
        %p344 = pneg %p108
      $region22: #{encoder_forward.1} parent=11 // pred_check_branch
        %346 = sbr.rel (%p344) target = $region24
      $region23: #{encoder_forward.1} parent=11 // pred_region
        _
      $region24: #{encoder_forward.1} parent=11 // pred_fallthru
        _
      // Predicated region
      $region25: #{encoder_forward.1} parent=11 // pred_check
        %p347 = pneg %p129
      $region26: #{encoder_forward.1} parent=11 // pred_check_branch
        %349 = sbr.rel (%p347) target = $region28
      $region27: #{encoder_forward.1} parent=11 // pred_region
        _
      $region28: #{encoder_forward.1} parent=11 // pred_fallthru
        _
      // Predicated region
      $region29: #{encoder_forward.1} parent=11 // pred_check
        %p350 = pneg %p150
      $region30: #{encoder_forward.1} parent=11 // pred_check_branch
        %352 = sbr.rel (%p350) target = $region32
      $region31: #{encoder_forward.1} parent=11 // pred_region
        _
      $region32: #{encoder_forward.1} parent=11 // pred_fallthru
        _
      // Predicated region
      $region33: #{encoder_forward.1} parent=11 // pred_check
        %p353 = pneg %p171
      $region34: #{encoder_forward.1} parent=11 // pred_check_branch
        %355 = sbr.rel (%p353) target = $region36
      $region35: #{encoder_forward.1} parent=11 // pred_region
        _
      $region36: #{encoder_forward.1} parent=11 // pred_fallthru
        _
      // Predicated region
      $region37: #{encoder_forward.1} parent=11 // pred_check
        %p356 = pneg %p192
      $region38: #{encoder_forward.1} parent=11 // pred_check_branch
        %358 = sbr.rel (%p356) target = $region40
      $region39: #{encoder_forward.1} parent=11 // pred_region
        _
      $region40: #{encoder_forward.1} parent=11 // pred_fallthru
        _
      // Predicated region
      $region41: #{encoder_forward.1} parent=11 // pred_check
        %p359 = pneg %p213
      $region42: #{encoder_forward.1} parent=11 // pred_check_branch
        %361 = sbr.rel (%p359) target = $region44
      $region43: #{encoder_forward.1} parent=11 // pred_region
        _
      $region44: #{encoder_forward.1} parent=11 // pred_fallthru
        _
      // Predicated region
      $region45: #{encoder_forward.1} parent=11 // pred_check
        %p362 = pneg %p234
      $region46: #{encoder_forward.1} parent=11 // pred_check_branch
        %364 = sbr.rel (%p362) target = $region48
      $region47: #{encoder_forward.1} parent=11 // pred_region
        _
      $region48: #{encoder_forward.1} parent=11 // pred_fallthru
        _
      // Predicated region
      $region49: #{encoder_forward.1} parent=11 // pred_check
        %p365 = pneg %p255
      $region50: #{encoder_forward.1} parent=11 // pred_check_branch
        %367 = sbr.rel (%p365) target = $region52
      $region51: #{encoder_forward.1} parent=11 // pred_region
        _
      $region52: #{encoder_forward.1} parent=11 // pred_fallthru
        _
      // Predicated region
      $region53: #{encoder_forward.1} parent=11 // pred_check
        %p368 = pneg %p276
      $region54: #{encoder_forward.1} parent=11 // pred_check_branch
        %370 = sbr.rel (%p368) target = $region56
      $region55: #{encoder_forward.1} parent=11 // pred_region
        _
      $region56: #{encoder_forward.1} parent=11 // pred_fallthru
        _
      // Predicated region
      $region57: #{encoder_forward.1} parent=11 // pred_check
        %p371 = pneg %p297
      $region58: #{encoder_forward.1} parent=11 // pred_check_branch
        %373 = sbr.rel (%p371) target = $region60
      $region59: #{encoder_forward.1} parent=11 // pred_region
        _
      $region60: #{encoder_forward.1} parent=11 // pred_fallthru
        _
    $region12: #{encoder_forward.1} parent=5 // pred_fallthru
      _
    %p374 = scmp.lt.s32.totalorder %s19, 2
    // Predicated region
    $region61: #{encoder_forward.1} parent=5 // pred_check
      %p375 = pneg %p374
    $region62: #{encoder_forward.1} parent=5 // pred_check_branch
      %377 = sbr.rel (%p375) target = $region64
    $region63: #{encoder_forward.1} parent=5 // pred_region
      // Predicated region
      $region65: #{encoder_forward.1} parent=63 // pred_check
        %p378 = pneg %p39
      $region66: #{encoder_forward.1} parent=63 // pred_check_branch
        %380 = sbr.rel (%p378) target = $region68
      $region67: #{encoder_forward.1} parent=63 // pred_region
        %p381 = scmp.lt.s32.totalorder %s19, 1
        %s382 = scalar_select %p381, %s19, 1
        %s383 = smul.addr %s382, 11
        %s384 = smul.addr %s383, 4
        %s385 = scalar_lea.vmem %s0, %s384
      $region68: #{encoder_forward.1} parent=63 // pred_fallthru
        _
    $region64: #{encoder_forward.1} parent=5 // pred_fallthru
      _
    %p386 = scmp.le.s32.totalorder 1, %s19
    %p387 = scmp.lt.s32.totalorder %s19, 3
    %p388 = pnand %p386, %p387
    %p389 = pneg %p388
    // Predicated region
    $region69: #{encoder_forward.1} parent=5 // pred_check
      _
    $region70: #{encoder_forward.1} parent=5 // pred_check_branch
      %391 = sbr.rel (%p388) target = $region72
    $region71: #{encoder_forward.1} parent=5 // pred_region
      %s392 = ssub.s32 %s19, 1
      %p393 = scmp.lt.s32.totalorder %s24, 1
      %s394 = scalar_select %p393, %s24, 1
      %s395 = smul.addr %s394, 11
      %s396 = smul.addr %s395, 4
      %s397 = scalar_lea.vmem %s0, %s396
      %p398 = pneg %p45
      %p399 = pneg %p42
      %p400 = pneg %p66
      %p401 = pneg %p63
      %p402 = pneg %p87
      %p403 = pneg %p84
      %p404 = pneg %p108
      %p405 = pneg %p105
      %p406 = pneg %p129
      %p407 = pneg %p126
      %p408 = pneg %p150
      %p409 = pneg %p147
      %p410 = pneg %p171
      %p411 = pneg %p168
      %p412 = pneg %p192
      %p413 = pneg %p189
      %p414 = pneg %p213
      %p415 = pneg %p210
      %p416 = pneg %p234
      %p417 = pneg %p231
      %p418 = pneg %p255
      %p419 = pneg %p252
      %p420 = pneg %p276
      %p421 = pneg %p273
      %p422 = pneg %p297
      %p423 = pneg %p294
      %p424 = pneg %p323
      %p425 = pneg %p320
      %p426 = scmp.lt.s32.totalorder %s24, 1
      %s427 = scalar_select %p426, %s24, 1
      %s428 = smul.addr %s427, 4
      %s429 = scalar_lea.vmem %s13, %s428
      %p430 = scmp.lt.s32.totalorder %s24, 1
      %s431 = scalar_select %p430, %s24, 1
      %s432 = smul.addr %s431, 11
      %s433 = smul.addr %s432, 4
      %s434 = scalar_lea.vmem %s0, %s433
      %p435 = scmp.lt.s32.totalorder %s24, 1
      %s436 = scalar_select %p435, %s24, 1
      %s437 = smul.addr %s436, 4
      %s438 = scalar_lea.vmem %s13, %s437
      %v440 = vld [vmem:[%s1] sm:$0xff]
      %v441 = vld [vmem:[%s1 + $0x8] sm:$0xff]
      %v442 = vld [vmem:[%s1 + $0x10] sm:$0xff]
      %v443 = vld [vmem:[%s1 + $0x18] sm:$0xff]
      %v444 = vld [vmem:[%s1 + $0x20] sm:$0xff]
      %v445 = vld [vmem:[%s1 + $0x28] sm:$0xff]
      %v446 = vld [vmem:[%s1 + $0x30] sm:$0xff]
      %v447 = vld [vmem:[%s1 + $0x38] sm:$0xff]
      %v448 = vld [vmem:[%s1 + $0x40] sm:$0xff]
      %v449 = vld [vmem:[%s434] sm:$0xf]
      %v450 = vld [vmem:[%s434 + $0x4] sm:$0xf]
      %v451 = vld [vmem:[%s434 + $0x8] sm:$0xf]
      %v452 = vld [vmem:[%s434 + $0xc] sm:$0xf]
      %v453 = vld [vmem:[%s434 + $0x10] sm:$0xf]
      %v454 = vld [vmem:[%s434 + $0x14] sm:$0xf]
      %v455 = vld [vmem:[%s434 + $0x18] sm:$0xf]
      %v456 = vld [vmem:[%s434 + $0x1c] sm:$0xf]
      %v457 = vld [vmem:[%s434 + $0x20] sm:$0xf]
      %v458 = vld [vmem:[%s2] sm:$0xf]
      %v459 = vld [vmem:[%s2 + $0x4] sm:$0x3]
      %v460 = vld [vmem:[%s434 + $0x24] sm:$0x1]
      %s461 = scalar_lea.vmem %s2, 8
      %v462 = vld [vmem:[%s461] sm:$0xf]
      %v463 = vld [vmem:[%s461 + $0x4] sm:$0x3]
      %v474 = vunpack.c.l.b16 %v449
      %v475 = vunpack.c.l.b16 %v450
      %v476 = vunpack.c.l.b16 %v451
      %v477 = vunpack.c.l.b16 %v452
      %v478 = vunpack.c.l.b16 %v453
      %v479 = vunpack.c.l.b16 %v454
      %v480 = vunpack.c.l.b16 %v455
      %v481 = vunpack.c.l.b16 %v456
      %v482 = vunpack.c.l.b16 %v457
      %v483 = vunpack.c.l.b16 %v460
      %v484 = vpack.c.b16 %v475, %v474
      %v485 = vpack.c.b16 %v477, %v476
      %v486 = vpack.c.b16 %v479, %v478
      %v487 = vpack.c.b16 %v481, %v480
      %v488 = vpack.c.b16 %v483, %v482
      %vm489 = vsmask.f32 7424
      %v491 = vshrl.u32 %v484, 16
      %v493 = vshll.u32 %v484, 16
      %v495 = vrot.slane %v493, 1
      %v496 = vor.u32 %v491, %v495
      %v498 = vshll.u32 %v485, 16
      %v500 = vrot.slane %v498, 1
      %v501 = vsel %vm489, %v496, %v500
      %v502 = vshrl.u32 %v485, 16
      %v504 = vor.u32 %v502, %v500
      %v506 = vshll.u32 %v486, 16
      %v508 = vrot.slane %v506, 1
      %v509 = vsel %vm489, %v504, %v508
      %v510 = vshrl.u32 %v486, 16
      %v512 = vor.u32 %v510, %v508
      %v514 = vshll.u32 %v487, 16
      %v516 = vrot.slane %v514, 1
      %v517 = vsel %vm489, %v512, %v516
      %v518 = vshrl.u32 %v487, 16
      %v520 = vor.u32 %v518, %v516
      %v522 = vshll.u32 %v488, 16
      %v524 = vrot.slane %v522, 1
      %v525 = vsel %vm489, %v520, %v524
      %v526 = vshrl.u32 %v488, 16
      %v528 = vor.u32 %v526, %v524
      %v531 = vunpack.c.l.b16 %v462
      %v532 = vunpack.c.l.b16 %v463
      %v533 = vpack.c.b16 %v532, %v531
      %vm534 = vcmask 97280
      %v536 = vsel %vm534, %v501, 0
      %v539 = vsel %vm534, %v509, 0
      %v542 = vsel %vm534, %v517, 0
      %v545 = vsel %vm534, %v525, 0
      %v548 = vsel %vm534, %v528, 0
      %vm550 = vcmask 1045504
      %v552 = vsel %vm550, %v533, 0
      %554 = vmatprep.subr.bf16.mxu0 0
      %555 = vmatpush1.bf16.msra.mxu0 0
      %556 = vmatprep.subr.bf16.mxu0 0
      %557 = vmatpush1.bf16.msra.mxu0 0
      %558 = vmatprep.subr.bf16.mxu0 0
      %559 = vmatpush1.bf16.msra.mxu0 0
      %560 = vmatprep.subr.bf16.mxu0 0
      %561 = vmatpush1.bf16.msra.mxu0 0
      %562 = vmatprep.subr.bf16.mxu0 0
      %563 = vmatpush1.bf16.msra.mxu0 0
      %564 = vmatprep.subr.bf16.mxu0 0
      %565 = vmatpush1.bf16.msra.mxu0 0
      %566 = vmatprep.subr.bf16.mxu0 0
      %567 = vmatpush1.bf16.msra.mxu0 0
      %568 = vmatprep.subr.bf16.mxu0 0
      %569 = vmatpush1.bf16.msra.mxu0 %v552
      %570 = vmatprep.subr.bf16.mxu0 0
      %571 = vmatpush2.bf16.msra.mxu0 0
      %572 = vmatprep.subr.bf16.mxu0 0
      %573 = vmatpush2.bf16.msra.mxu0 0
      %574 = vmatprep.subr.bf16.mxu0 0
      %575 = vmatpush2.bf16.msra.mxu0 0
      %576 = vmatprep.subr.bf16.mxu0 0
      %577 = vmatpush2.bf16.msra.mxu0 0
      %578 = vmatprep.subr.bf16.mxu0 0
      %579 = vmatpush2.bf16.msra.mxu0 0
      %580 = vmatprep.subr.bf16.mxu0 0
      %581 = vmatpush2.bf16.msra.mxu0 0
      %582 = vmatprep.subr.bf16.mxu0 0
      %583 = vmatpush2.bf16.msra.mxu0 0
      %584 = vmatprep.subr.bf16.mxu0 0
      %585 = vmatpush2.bf16.msra.mxu0 0
      %586 = vmatprep.mubr.bf16.mxu0 0
      %587 = vmatmul.mubr.bf16.gmra.mxu0 %v536
      %v588 = vpop.f32.mrf.mxu0
      %v589 = vadd.f32 0.0, %v588
      %v590 = vpop.f32.mrf.mxu0
      %v591 = vpop.f32.mrf.mxu0
      %v592 = vadd.f32 0.0, %v591
      %v593 = vpop.f32.mrf.mxu0
      %594 = vmatprep.mubr.bf16.mxu0 0
      %595 = vmatmul.mubr.bf16.gmra.mxu0 %v539
      %v596 = vpop.f32.mrf.mxu0
      %v597 = vadd.f32 0.0, %v596
      %v598 = vpop.f32.mrf.mxu0
      %v599 = vpop.f32.mrf.mxu0
      %v600 = vadd.f32 0.0, %v599
      %v601 = vpop.f32.mrf.mxu0
      %602 = vmatprep.mubr.bf16.mxu0 0
      %603 = vmatmul.mubr.bf16.gmra.mxu0 %v542
      %v604 = vpop.f32.mrf.mxu0
      %v605 = vadd.f32 0.0, %v604
      %v606 = vpop.f32.mrf.mxu0
      %v607 = vpop.f32.mrf.mxu0
      %v608 = vadd.f32 0.0, %v607
      %v609 = vpop.f32.mrf.mxu0
      %610 = vmatprep.mubr.bf16.mxu0 0
      %611 = vmatmul.mubr.bf16.gmra.mxu0 %v545
      %v612 = vpop.f32.mrf.mxu0
      %v613 = vadd.f32 0.0, %v612
      %v614 = vpop.f32.mrf.mxu0
      %v615 = vpop.f32.mrf.mxu0
      %v616 = vadd.f32 0.0, %v615
      %v617 = vpop.f32.mrf.mxu0
      %618 = vmatprep.mubr.bf16.mxu0 0
      %619 = vmatmul.mubr.bf16.gmra.mxu0 %v548
      %v620 = vpop.f32.mrf.mxu0
      %v621 = vadd.f32 0.0, %v620
      %v622 = vpop.f32.mrf.mxu0
      %v623 = vpop.f32.mrf.mxu0
      %v624 = vpop.f32.mrf.mxu0
      %625 = vdwg.mxu0
      %v626 = vpack.c.b16 %v482, %v482
      %v629 = vunpack.c.l.b16 %v458
      %v630 = vunpack.c.l.b16 %v459
      %v631 = vpack.c.b16 %v630, %v629
      %v632 = vsel %vm534, %v484, 0
      %v634 = vsel %vm534, %v485, 0
      %v636 = vsel %vm534, %v486, 0
      %v638 = vsel %vm534, %v487, 0
      %v641 = vsel %vm534, %v626, 0
      %v644 = vsel %vm550, %v631, 0
      %646 = vmatprep.subr.bf16.mxu0 0
      %647 = vmatpush1.bf16.msra.mxu0 0
      %648 = vmatprep.subr.bf16.mxu0 0
      %649 = vmatpush1.bf16.msra.mxu0 0
      %650 = vmatprep.subr.bf16.mxu0 0
      %651 = vmatpush1.bf16.msra.mxu0 0
      %652 = vmatprep.subr.bf16.mxu0 0
      %653 = vmatpush1.bf16.msra.mxu0 0
      %654 = vmatprep.subr.bf16.mxu0 0
      %655 = vmatpush1.bf16.msra.mxu0 0
      %656 = vmatprep.subr.bf16.mxu0 0
      %657 = vmatpush1.bf16.msra.mxu0 0
      %658 = vmatprep.subr.bf16.mxu0 0
      %659 = vmatpush1.bf16.msra.mxu0 0
      %660 = vmatprep.subr.bf16.mxu0 0
      %661 = vmatpush1.bf16.msra.mxu0 %v644
      %662 = vmatprep.subr.bf16.mxu0 0
      %663 = vmatpush2.bf16.msra.mxu0 0
      %664 = vmatprep.subr.bf16.mxu0 0
      %665 = vmatpush2.bf16.msra.mxu0 0
      %666 = vmatprep.subr.bf16.mxu0 0
      %667 = vmatpush2.bf16.msra.mxu0 0
      %668 = vmatprep.subr.bf16.mxu0 0
      %669 = vmatpush2.bf16.msra.mxu0 0
      %670 = vmatprep.subr.bf16.mxu0 0
      %671 = vmatpush2.bf16.msra.mxu0 0
      %672 = vmatprep.subr.bf16.mxu0 0
      %673 = vmatpush2.bf16.msra.mxu0 0
      %674 = vmatprep.subr.bf16.mxu0 0
      %675 = vmatpush2.bf16.msra.mxu0 0
      %676 = vmatprep.subr.bf16.mxu0 0
      %677 = vmatpush2.bf16.msra.mxu0 0
      %678 = vmatprep.mubr.bf16.mxu0 0
      %679 = vmatmul.mubr.bf16.gmra.mxu0 %v632
      %v680 = vpop.f32.mrf.mxu0
      %v681 = vadd.f32 %v589, %v680
      %v682 = vpop.f32.mrf.mxu0
      %v683 = vpop.f32.mrf.mxu0
      %v684 = vadd.f32 %v592, %v683
      %v685 = vpop.f32.mrf.mxu0
      %686 = vmatprep.mubr.bf16.mxu0 0
      %687 = vmatmul.mubr.bf16.gmra.mxu0 %v634
      %v688 = vpop.f32.mrf.mxu0
      %v689 = vadd.f32 %v597, %v688
      %v690 = vpop.f32.mrf.mxu0
      %v691 = vpop.f32.mrf.mxu0
      %v692 = vadd.f32 %v600, %v691
      %v693 = vpop.f32.mrf.mxu0
      %694 = vmatprep.mubr.bf16.mxu0 0
      %695 = vmatmul.mubr.bf16.gmra.mxu0 %v636
      %v696 = vpop.f32.mrf.mxu0
      %v697 = vadd.f32 %v605, %v696
      %v698 = vpop.f32.mrf.mxu0
      %v699 = vpop.f32.mrf.mxu0
      %v700 = vadd.f32 %v608, %v699
      %v701 = vpop.f32.mrf.mxu0
      %702 = vmatprep.mubr.bf16.mxu0 0
      %703 = vmatmul.mubr.bf16.gmra.mxu0 %v638
      %v704 = vpop.f32.mrf.mxu0
      %v705 = vadd.f32 %v613, %v704
      %v706 = vpop.f32.mrf.mxu0
      %v707 = vpop.f32.mrf.mxu0
      %v708 = vadd.f32 %v616, %v707
      %v709 = vpop.f32.mrf.mxu0
      %710 = vmatprep.mubr.bf16.mxu0 0
      %711 = vmatmul.mubr.bf16.gmra.mxu0 %v641
      %v712 = vpop.f32.mrf.mxu0
      %v713 = vadd.f32 %v621, %v712
      %v714 = vpop.f32.mrf.mxu0
      %v715 = vpop.f32.mrf.mxu0
      %v716 = vpop.f32.mrf.mxu0
      %717 = vdwg.mxu0
      %v718 = vld [vmem:[%s434 + $0x4] sm:$0xf]
      %v719 = vld [vmem:[%s434 + $0x8] sm:$0xf]
      %v720 = vld [vmem:[%s434 + $0xc] sm:$0xf]
      %v721 = vld [vmem:[%s434 + $0x10] sm:$0xf]
      %v722 = vld [vmem:[%s434 + $0x14] sm:$0xf]
      %v723 = vld [vmem:[%s434 + $0x18] sm:$0xf]
      %v724 = vld [vmem:[%s434 + $0x1c] sm:$0xf]
      %v725 = vld [vmem:[%s434 + $0x20] sm:$0xf]
      %v726 = vld [vmem:[%s434 + $0x24] sm:$0xf]
      %v727 = vld [vmem:[%s434 + $0x28] sm:$0x1]
      %s728 = scalar_lea.vmem %s2, 16
      %v729 = vld [vmem:[%s728] sm:$0xf]
      %v730 = vld [vmem:[%s728 + $0x4] sm:$0x3]
      %v741 = vunpack.c.l.b16 %v718
      %v742 = vunpack.c.l.b16 %v719
      %v743 = vunpack.c.l.b16 %v720
      %v744 = vunpack.c.l.b16 %v721
      %v745 = vunpack.c.l.b16 %v722
      %v746 = vunpack.c.l.b16 %v723
      %v747 = vunpack.c.l.b16 %v724
      %v748 = vunpack.c.l.b16 %v725
      %v749 = vunpack.c.l.b16 %v726
      %v750 = vunpack.c.l.b16 %v727
      %v751 = vpack.c.b16 %v742, %v741
      %v752 = vpack.c.b16 %v744, %v743
      %v753 = vpack.c.b16 %v746, %v745
      %v754 = vpack.c.b16 %v748, %v747
      %v755 = vpack.c.b16 %v750, %v749
      %v757 = vshrl.u32 %v751, 16
      %v759 = vshll.u32 %v751, 16
      %v761 = vrot.slane %v759, 1
      %v762 = vor.u32 %v757, %v761
      %v764 = vshll.u32 %v752, 16
      %v766 = vrot.slane %v764, 1
      %v767 = vsel %vm489, %v762, %v766
      %v768 = vshrl.u32 %v752, 16
      %v770 = vor.u32 %v768, %v766
      %v772 = vshll.u32 %v753, 16
      %v774 = vrot.slane %v772, 1
      %v775 = vsel %vm489, %v770, %v774
      %v776 = vshrl.u32 %v753, 16
      %v778 = vor.u32 %v776, %v774
      %v780 = vshll.u32 %v754, 16
      %v782 = vrot.slane %v780, 1
      %v783 = vsel %vm489, %v778, %v782
      %v784 = vshrl.u32 %v754, 16
      %v786 = vor.u32 %v784, %v782
      %v788 = vshll.u32 %v755, 16
      %v790 = vrot.slane %v788, 1
      %v791 = vsel %vm489, %v786, %v790
      %v792 = vshrl.u32 %v755, 16
      %v794 = vor.u32 %v792, %v790
      %v797 = vunpack.c.l.b16 %v729
      %v798 = vunpack.c.l.b16 %v730
      %v799 = vpack.c.b16 %v798, %v797
      %v801 = vsel %vm534, %v767, 0
      %v804 = vsel %vm534, %v775, 0
      %v807 = vsel %vm534, %v783, 0
      %v810 = vsel %vm534, %v791, 0
      %v813 = vsel %vm534, %v794, 0
      %v816 = vsel %vm550, %v799, 0
      %818 = vmatprep.subr.bf16.mxu0 0
      %819 = vmatpush1.bf16.msra.mxu0 0
      %820 = vmatprep.subr.bf16.mxu0 0
      %821 = vmatpush1.bf16.msra.mxu0 0
      %822 = vmatprep.subr.bf16.mxu0 0
      %823 = vmatpush1.bf16.msra.mxu0 0
      %824 = vmatprep.subr.bf16.mxu0 0
      %825 = vmatpush1.bf16.msra.mxu0 0
      %826 = vmatprep.subr.bf16.mxu0 0
      %827 = vmatpush1.bf16.msra.mxu0 0
      %828 = vmatprep.subr.bf16.mxu0 0
      %829 = vmatpush1.bf16.msra.mxu0 0
      %830 = vmatprep.subr.bf16.mxu0 0
      %831 = vmatpush1.bf16.msra.mxu0 0
      %832 = vmatprep.subr.bf16.mxu0 0
      %833 = vmatpush1.bf16.msra.mxu0 %v816
      %834 = vmatprep.subr.bf16.mxu0 0
      %835 = vmatpush2.bf16.msra.mxu0 0
      %836 = vmatprep.subr.bf16.mxu0 0
      %837 = vmatpush2.bf16.msra.mxu0 0
      %838 = vmatprep.subr.bf16.mxu0 0
      %839 = vmatpush2.bf16.msra.mxu0 0
      %840 = vmatprep.subr.bf16.mxu0 0
      %841 = vmatpush2.bf16.msra.mxu0 0
      %842 = vmatprep.subr.bf16.mxu0 0
      %843 = vmatpush2.bf16.msra.mxu0 0
      %844 = vmatprep.subr.bf16.mxu0 0
      %845 = vmatpush2.bf16.msra.mxu0 0
      %846 = vmatprep.subr.bf16.mxu0 0
      %847 = vmatpush2.bf16.msra.mxu0 0
      %848 = vmatprep.subr.bf16.mxu0 0
      %849 = vmatpush2.bf16.msra.mxu0 0
      %850 = vmatprep.mubr.bf16.mxu0 0
      %851 = vmatmul.mubr.bf16.gmra.mxu0 %v801
      %v852 = vpop.f32.mrf.mxu0
      %v853 = vadd.f32 0.0, %v852
      %v854 = vpop.f32.mrf.mxu0
      %v855 = vpop.f32.mrf.mxu0
      %v856 = vadd.f32 0.0, %v855
      %v857 = vpop.f32.mrf.mxu0
      %858 = vmatprep.mubr.bf16.mxu0 0
      %859 = vmatmul.mubr.bf16.gmra.mxu0 %v804
      %v860 = vpop.f32.mrf.mxu0
      %v861 = vadd.f32 0.0, %v860
      %v862 = vpop.f32.mrf.mxu0
      %v863 = vpop.f32.mrf.mxu0
      %v864 = vadd.f32 0.0, %v863
      %v865 = vpop.f32.mrf.mxu0
      %866 = vmatprep.mubr.bf16.mxu0 0
      %867 = vmatmul.mubr.bf16.gmra.mxu0 %v807
      %v868 = vpop.f32.mrf.mxu0
      %v869 = vadd.f32 0.0, %v868
      %v870 = vpop.f32.mrf.mxu0
      %v871 = vpop.f32.mrf.mxu0
      %v872 = vadd.f32 0.0, %v871
      %v873 = vpop.f32.mrf.mxu0
      %874 = vmatprep.mubr.bf16.mxu0 0
      %875 = vmatmul.mubr.bf16.gmra.mxu0 %v810
      %v876 = vpop.f32.mrf.mxu0
      %v877 = vadd.f32 0.0, %v876
      %v878 = vpop.f32.mrf.mxu0
      %v879 = vpop.f32.mrf.mxu0
      %v880 = vadd.f32 0.0, %v879
      %v881 = vpop.f32.mrf.mxu0
      %882 = vmatprep.mubr.bf16.mxu0 0
      %883 = vmatmul.mubr.bf16.gmra.mxu0 %v813
      %v884 = vpop.f32.mrf.mxu0
      %v885 = vadd.f32 0.0, %v884
      %v886 = vpop.f32.mrf.mxu0
      %v887 = vpop.f32.mrf.mxu0
      %v888 = vpop.f32.mrf.mxu0
      %889 = vdwg.mxu0
      %v890 = vadd.f32 %v681, %v853
      %v891 = vadd.f32 %v684, %v856
      %v892 = vadd.f32 %v689, %v861
      %v893 = vadd.f32 %v692, %v864
      %v894 = vadd.f32 %v697, %v869
      %v895 = vadd.f32 %v700, %v872
      %v896 = vadd.f32 %v705, %v877
      %v897 = vadd.f32 %v708, %v880
      %v898 = vadd.f32 %v713, %v885
      %v899 = vld [vmem:[%s434 + $0x4] sm:$0xe]
      %s900 = scalar_lea.vmem %s2, 24
      %v901 = vld [vmem:[%s900] sm:$0xf]
      %v902 = vld [vmem:[%s900 + $0x4] sm:$0x3]
      %v904 = vunpack.c.l.b16 %v899
      %v905 = vpack.c.b16 %v742, %v904
      %vm906 = vcmask 1046528
      %v907 = vrot.slane %v905, 1
      %v908 = vrot.slane %v752, 1
      %v909 = vsel %vm906, %v907, %v908
      %v910 = vrot.slane %v753, 1
      %v911 = vsel %vm906, %v908, %v910
      %v912 = vrot.slane %v754, 1
      %v913 = vsel %vm906, %v910, %v912
      %v914 = vrot.slane %v755, 1
      %v915 = vsel %vm906, %v912, %v914
      %v918 = vunpack.c.l.b16 %v901
      %v919 = vunpack.c.l.b16 %v902
      %v920 = vpack.c.b16 %v919, %v918
      %v922 = vsel %vm534, %v909, 0
      %v925 = vsel %vm534, %v911, 0
      %v928 = vsel %vm534, %v913, 0
      %v931 = vsel %vm534, %v915, 0
      %v934 = vsel %vm534, %v914, 0
      %v937 = vsel %vm550, %v920, 0
      %939 = vmatprep.subr.bf16.mxu0 0
      %940 = vmatpush1.bf16.msra.mxu0 0
      %941 = vmatprep.subr.bf16.mxu0 0
      %942 = vmatpush1.bf16.msra.mxu0 0
      %943 = vmatprep.subr.bf16.mxu0 0
      %944 = vmatpush1.bf16.msra.mxu0 0
      %945 = vmatprep.subr.bf16.mxu0 0
      %946 = vmatpush1.bf16.msra.mxu0 0
      %947 = vmatprep.subr.bf16.mxu0 0
      %948 = vmatpush1.bf16.msra.mxu0 0
      %949 = vmatprep.subr.bf16.mxu0 0
      %950 = vmatpush1.bf16.msra.mxu0 0
      %951 = vmatprep.subr.bf16.mxu0 0
      %952 = vmatpush1.bf16.msra.mxu0 0
      %953 = vmatprep.subr.bf16.mxu0 0
      %954 = vmatpush1.bf16.msra.mxu0 %v937
      %955 = vmatprep.subr.bf16.mxu0 0
      %956 = vmatpush2.bf16.msra.mxu0 0
      %957 = vmatprep.subr.bf16.mxu0 0
      %958 = vmatpush2.bf16.msra.mxu0 0
      %959 = vmatprep.subr.bf16.mxu0 0
      %960 = vmatpush2.bf16.msra.mxu0 0
      %961 = vmatprep.subr.bf16.mxu0 0
      %962 = vmatpush2.bf16.msra.mxu0 0
      %963 = vmatprep.subr.bf16.mxu0 0
      %964 = vmatpush2.bf16.msra.mxu0 0
      %965 = vmatprep.subr.bf16.mxu0 0
      %966 = vmatpush2.bf16.msra.mxu0 0
      %967 = vmatprep.subr.bf16.mxu0 0
      %968 = vmatpush2.bf16.msra.mxu0 0
      %969 = vmatprep.subr.bf16.mxu0 0
      %970 = vmatpush2.bf16.msra.mxu0 0
      %971 = vmatprep.mubr.bf16.mxu0 0
      %972 = vmatmul.mubr.bf16.gmra.mxu0 %v922
      %v973 = vpop.f32.mrf.mxu0
      %v974 = vadd.f32 0.0, %v973
      %v975 = vpop.f32.mrf.mxu0
      %v976 = vpop.f32.mrf.mxu0
      %v977 = vadd.f32 0.0, %v976
      %v978 = vpop.f32.mrf.mxu0
      %979 = vmatprep.mubr.bf16.mxu0 0
      %980 = vmatmul.mubr.bf16.gmra.mxu0 %v925
      %v981 = vpop.f32.mrf.mxu0
      %v982 = vadd.f32 0.0, %v981
      %v983 = vpop.f32.mrf.mxu0
      %v984 = vpop.f32.mrf.mxu0
      %v985 = vadd.f32 0.0, %v984
      %v986 = vpop.f32.mrf.mxu0
      %987 = vmatprep.mubr.bf16.mxu0 0
      %988 = vmatmul.mubr.bf16.gmra.mxu0 %v928
      %v989 = vpop.f32.mrf.mxu0
      %v990 = vadd.f32 0.0, %v989
      %v991 = vpop.f32.mrf.mxu0
      %v992 = vpop.f32.mrf.mxu0
      %v993 = vadd.f32 0.0, %v992
      %v994 = vpop.f32.mrf.mxu0
      %995 = vmatprep.mubr.bf16.mxu0 0
      %996 = vmatmul.mubr.bf16.gmra.mxu0 %v931
      %v997 = vpop.f32.mrf.mxu0
      %v998 = vadd.f32 0.0, %v997
      %v999 = vpop.f32.mrf.mxu0
      %v1000 = vpop.f32.mrf.mxu0
      %v1001 = vadd.f32 0.0, %v1000
      %v1002 = vpop.f32.mrf.mxu0
      %1003 = vmatprep.mubr.bf16.mxu0 0
      %1004 = vmatmul.mubr.bf16.gmra.mxu0 %v934
      %v1005 = vpop.f32.mrf.mxu0
      %v1006 = vadd.f32 0.0, %v1005
      %v1007 = vpop.f32.mrf.mxu0
      %v1008 = vpop.f32.mrf.mxu0
      %v1009 = vpop.f32.mrf.mxu0
      %1010 = vdwg.mxu0
      %v1011 = vadd.f32 %v890, %v974
      %v1012 = vadd.f32 %v891, %v977
      %v1013 = vadd.f32 %v892, %v982
      %v1014 = vadd.f32 %v893, %v985
      %v1015 = vadd.f32 %v894, %v990
      %v1016 = vadd.f32 %v895, %v993
      %v1017 = vadd.f32 %v896, %v998
      %v1018 = vadd.f32 %v897, %v1001
      %v1019 = vadd.f32 %v898, %v1006
      %v1020 = vld [vmem:[%s3] sm:$0x1]
      %v1022 = vlaneseq
      %v1023 = vshrl.u32 %v1022, 7
      %v1024 = vsub.s32 0, %v1023
      %v1025 = vrot.slane %v1020, %v1024
      %v1027 = vadd.f32 %v1011, %v1025
      %v1028 = vadd.f32 %v1012, %v1025
      %v1029 = vadd.f32 %v1013, %v1025
      %v1030 = vadd.f32 %v1014, %v1025
      %v1031 = vadd.f32 %v1015, %v1025
      %v1032 = vadd.f32 %v1016, %v1025
      %v1033 = vadd.f32 %v1017, %v1025
      %v1034 = vadd.f32 %v1018, %v1025
      %v1035 = vadd.f32 %v1019, %v1025
      %v1036 = vmax.f32 %v1027, 0.0
      %v1037 = vmax.f32 %v1028, 0.0
      %v1038 = vmax.f32 %v1029, 0.0
      %v1039 = vmax.f32 %v1030, 0.0
      %v1040 = vmax.f32 %v1031, 0.0
      %v1041 = vmax.f32 %v1032, 0.0
      %v1042 = vmax.f32 %v1033, 0.0
      %v1043 = vmax.f32 %v1034, 0.0
      %v1044 = vmax.f32 %v1035, 0.0
      %v1045 = vmul.f32 %v1036, %v440
      %v1046 = vmul.f32 %v1037, %v441
      %v1047 = vmul.f32 %v1038, %v442
      %v1048 = vmul.f32 %v1039, %v443
      %v1049 = vmul.f32 %v1040, %v444
      %v1050 = vmul.f32 %v1041, %v445
      %v1051 = vmul.f32 %v1042, %v446
      %v1052 = vmul.f32 %v1043, %v447
      %v1053 = vmul.f32 %v1044, %v448
      %v1054 = vpack.c.bf16 %v1046, %v1045
      %v1055 = vpack.c.bf16 %v1048, %v1047
      %v1056 = vpack.c.bf16 %v1050, %v1049
      %v1057 = vpack.c.bf16 %v1052, %v1051
      %v1058 = vpack.c.bf16 %v1053, %v1053
      %v1059 = vld [vmem:[%s4] sm:$0xf]
      %v1060 = vld [vmem:[%s4 + $0x4] sm:$0xf]
      %v1061 = vld [vmem:[%s5] sm:$0x1]
      %v1063 = vlaneseq
      %v1064 = vshrl.u32 %v1063, 7
      %v1065 = vsub.s32 0, %v1064
      %v1066 = vrot.slane %v1061, %v1065
      %v1070 = vunpack.c.l.b16 %v1059
      %v1071 = vunpack.c.l.b16 %v1060
      %v1072 = vpack.c.b16 %v1071, %v1070
      %vm1074 = vcmask 130048
      %v1076 = vsel %vm1074, %v1054, 0
      %v1079 = vsel %vm1074, %v1055, 0
      %v1082 = vsel %vm1074, %v1056, 0
      %v1085 = vsel %vm1074, %v1057, 0
      %v1088 = vsel %vm1074, %v1058, 0
      %1090 = vmatprep.subr.bf16.mxu0 0
      %1091 = vmatpush1.bf16.msra.mxu0 0
      %1092 = vmatprep.subr.bf16.mxu0 0
      %1093 = vmatpush1.bf16.msra.mxu0 0
      %1094 = vmatprep.subr.bf16.mxu0 0
      %1095 = vmatpush1.bf16.msra.mxu0 0
      %1096 = vmatprep.subr.bf16.mxu0 0
      %1097 = vmatpush1.bf16.msra.mxu0 0
      %1098 = vmatprep.subr.bf16.mxu0 0
      %1099 = vmatpush1.bf16.msra.mxu0 0
      %1100 = vmatprep.subr.bf16.mxu0 0
      %1101 = vmatpush1.bf16.msra.mxu0 0
      %1102 = vmatprep.subr.bf16.mxu0 0
      %1103 = vmatpush1.bf16.msra.mxu0 0
      %1104 = vmatprep.subr.bf16.mxu0 0
      %1105 = vmatpush1.bf16.msra.mxu0 %v1072
      %1106 = vmatprep.subr.bf16.mxu0 0
      %1107 = vmatpush2.bf16.msra.mxu0 0
      %1108 = vmatprep.subr.bf16.mxu0 0
      %1109 = vmatpush2.bf16.msra.mxu0 0
      %1110 = vmatprep.subr.bf16.mxu0 0
      %1111 = vmatpush2.bf16.msra.mxu0 0
      %1112 = vmatprep.subr.bf16.mxu0 0
      %1113 = vmatpush2.bf16.msra.mxu0 0
      %1114 = vmatprep.subr.bf16.mxu0 0
      %1115 = vmatpush2.bf16.msra.mxu0 0
      %1116 = vmatprep.subr.bf16.mxu0 0
      %1117 = vmatpush2.bf16.msra.mxu0 0
      %1118 = vmatprep.subr.bf16.mxu0 0
      %1119 = vmatpush2.bf16.msra.mxu0 0
      %1120 = vmatprep.subr.bf16.mxu0 0
      %1121 = vmatpush2.bf16.msra.mxu0 0
      %1122 = vmatprep.mubr.bf16.mxu0 0
      %1123 = vmatmul.mubr.bf16.gmra.mxu0 %v1076
      %v1124 = vpop.f32.mrf.mxu0
      %v1125 = vadd.f32 %v1066, %v1124
      %v1126 = vpop.f32.mrf.mxu0
      %v1127 = vpop.f32.mrf.mxu0
      %v1128 = vadd.f32 %v1066, %v1127
      %v1129 = vpop.f32.mrf.mxu0
      %1130 = vmatprep.mubr.bf16.mxu0 0
      %1131 = vmatmul.mubr.bf16.gmra.mxu0 %v1079
      %v1132 = vpop.f32.mrf.mxu0
      %v1133 = vadd.f32 %v1066, %v1132
      %v1134 = vpop.f32.mrf.mxu0
      %v1135 = vpop.f32.mrf.mxu0
      %v1136 = vadd.f32 %v1066, %v1135
      %v1137 = vpop.f32.mrf.mxu0
      %1138 = vmatprep.mubr.bf16.mxu0 0
      %1139 = vmatmul.mubr.bf16.gmra.mxu0 %v1082
      %v1140 = vpop.f32.mrf.mxu0
      %v1141 = vadd.f32 %v1066, %v1140
      %v1142 = vpop.f32.mrf.mxu0
      %v1143 = vpop.f32.mrf.mxu0
      %v1144 = vadd.f32 %v1066, %v1143
      %v1145 = vpop.f32.mrf.mxu0
      %1146 = vmatprep.mubr.bf16.mxu0 0
      %1147 = vmatmul.mubr.bf16.gmra.mxu0 %v1085
      %v1148 = vpop.f32.mrf.mxu0
      %v1149 = vadd.f32 %v1066, %v1148
      %v1150 = vpop.f32.mrf.mxu0
      %v1151 = vpop.f32.mrf.mxu0
      %v1152 = vadd.f32 %v1066, %v1151
      %v1153 = vpop.f32.mrf.mxu0
      %1154 = vmatprep.mubr.bf16.mxu0 0
      %1155 = vmatmul.mubr.bf16.gmra.mxu0 %v1088
      %v1156 = vpop.f32.mrf.mxu0
      %v1157 = vadd.f32 %v1066, %v1156
      %v1158 = vpop.f32.mrf.mxu0
      %v1159 = vpop.f32.mrf.mxu0
      %v1160 = vpop.f32.mrf.mxu0
      %1161 = vdwg.mxu0
      %v1162 = vmax.f32 %v1125, 0.0
      %v1163 = vmax.f32 %v1128, 0.0
      %v1164 = vmax.f32 %v1133, 0.0
      %v1165 = vmax.f32 %v1136, 0.0
      %v1166 = vmax.f32 %v1141, 0.0
      %v1167 = vmax.f32 %v1144, 0.0
      %v1168 = vmax.f32 %v1149, 0.0
      %v1169 = vmax.f32 %v1152, 0.0
      %v1170 = vmax.f32 %v1157, 0.0
      %v1171 = vmul.f32 %v1162, %v440
      %v1172 = vmul.f32 %v1163, %v441
      %v1173 = vmul.f32 %v1164, %v442
      %v1174 = vmul.f32 %v1165, %v443
      %v1175 = vmul.f32 %v1166, %v444
      %v1176 = vmul.f32 %v1167, %v445
      %v1177 = vmul.f32 %v1168, %v446
      %v1178 = vmul.f32 %v1169, %v447
      %v1179 = vmul.f32 %v1170, %v448
      %v1180 = vpack.c.bf16 %v1172, %v1171
      %v1181 = vpack.c.bf16 %v1174, %v1173
      %v1182 = vpack.c.bf16 %v1176, %v1175
      %v1183 = vpack.c.bf16 %v1178, %v1177
      %v1184 = vpack.c.bf16 %v1179, %v1179
      %vm1185 = vcmask 125952
      %1186 = vst.msk [vmem:[#allocation2] sm:$0xf] %vm1185, 0
      %1187 = vst.msk [vmem:[#allocation2 + $0x4] sm:$0xf] %vm1185, 0
      %1188 = vst.msk [vmem:[#allocation2 + $0x8] sm:$0xf] %vm1185, 0
      %1189 = vst.msk [vmem:[#allocation2 + $0xc] sm:$0xf] %vm1185, 0
      %1190 = vst.msk [vmem:[#allocation2 + $0x10] sm:$0xf] %vm1185, 0
      %1191 = vst.msk [vmem:[#allocation2 + $0x14] sm:$0xf] %vm1185, 0
      %1192 = vst.msk [vmem:[#allocation2 + $0x18] sm:$0xf] %vm1185, 0
      %1193 = vst.msk [vmem:[#allocation2 + $0x1c] sm:$0xf] %vm1185, 0
      %1194 = vst.msk [vmem:[#allocation2 + $0x20] sm:$0xf] %vm1185, 0
      %1195 = vst.msk [vmem:[#allocation2 + $0x24] sm:$0xf] %vm1185, 0
      %1196 = vst.msk [vmem:[#allocation2 + $0x28] sm:$0xf] %vm1185, 0
      %1197 = vst.msk [vmem:[#allocation2 + $0x2c] sm:$0xf] %vm1185, 0
      %1198 = vst.msk [vmem:[#allocation2 + $0x30] sm:$0xf] %vm1185, 0
      %v1204 = vunpack.c.l.b16 %v1180
      %v1205 = vunpack.c.h.b16 %v1180
      %v1206 = vunpack.c.l.b16 %v1181
      %v1207 = vunpack.c.h.b16 %v1181
      %v1208 = vunpack.c.l.b16 %v1182
      %v1209 = vunpack.c.h.b16 %v1182
      %v1210 = vunpack.c.l.b16 %v1183
      %v1211 = vunpack.c.h.b16 %v1183
      %v1212 = vunpack.c.l.b16 %v1184
      %v1213 = vpack.c.b16 %v1204, %v1204
      %v1214 = vpack.c.b16 %v1205, %v1205
      %v1215 = vpack.c.b16 %v1206, %v1206
      %v1216 = vpack.c.b16 %v1207, %v1207
      %v1217 = vpack.c.b16 %v1208, %v1208
      %v1218 = vpack.c.b16 %v1209, %v1209
      %v1219 = vpack.c.b16 %v1210, %v1210
      %v1220 = vpack.c.b16 %v1211, %v1211
      %v1221 = vpack.c.b16 %v1212, %v1212
      %1231 = vst.msk [vmem:[#allocation2 + $0x8] sm:$0xf] %vm1185, %v1213
      %1232 = vst.msk [vmem:[#allocation2 + $0xc] sm:$0xf] %vm1185, %v1214
      %1233 = vst.msk [vmem:[#allocation2 + $0x10] sm:$0xf] %vm1185, %v1215
      %1234 = vst.msk [vmem:[#allocation2 + $0x14] sm:$0xf] %vm1185, %v1216
      %1235 = vst.msk [vmem:[#allocation2 + $0x18] sm:$0xf] %vm1185, %v1217
      %1236 = vst.msk [vmem:[#allocation2 + $0x1c] sm:$0xf] %vm1185, %v1218
      %1237 = vst.msk [vmem:[#allocation2 + $0x20] sm:$0xf] %vm1185, %v1219
      %1238 = vst.msk [vmem:[#allocation2 + $0x24] sm:$0xf] %vm1185, %v1220
      %1239 = vst.msk [vmem:[#allocation2 + $0x28] sm:$0xf] %vm1185, %v1221
      %v1240 = vld [vmem:[#allocation2] sm:$0x8]
      %v1241 = vld [vmem:[#allocation2 + $0x4] sm:$0xf]
      %v1242 = vld [vmem:[#allocation2 + $0x8] sm:$0xf]
      %v1243 = vld [vmem:[#allocation2 + $0xc] sm:$0xf]
      %v1244 = vld [vmem:[#allocation2 + $0x10] sm:$0xf]
      %v1245 = vld [vmem:[#allocation2 + $0x14] sm:$0xf]
      %v1246 = vld [vmem:[#allocation2 + $0x18] sm:$0xf]
      %v1247 = vld [vmem:[#allocation2 + $0x1c] sm:$0xf]
      %v1248 = vld [vmem:[#allocation2 + $0x20] sm:$0xf]
      %v1249 = vld [vmem:[#allocation2 + $0x24] sm:$0x7]
      %v1250 = vld [vmem:[%s6] sm:$0xf]
      %v1251 = vld [vmem:[%s6 + $0x4] sm:$0xf]
      %v1252 = vld [vmem:[#allocation2 + $0x24] sm:$0xf]
      %s1253 = scalar_lea.vmem %s6, 8
      %v1254 = vld [vmem:[%s1253] sm:$0xf]
      %v1255 = vld [vmem:[%s1253 + $0x4] sm:$0xf]
      %v1266 = vunpack.c.l.b16 %v1240
      %v1267 = vunpack.c.l.b16 %v1241
      %v1268 = vunpack.c.l.b16 %v1242
      %v1269 = vunpack.c.l.b16 %v1243
      %v1270 = vunpack.c.l.b16 %v1244
      %v1271 = vunpack.c.l.b16 %v1245
      %v1272 = vunpack.c.l.b16 %v1246
      %v1273 = vunpack.c.l.b16 %v1247
      %v1274 = vunpack.c.l.b16 %v1248
      %v1275 = vunpack.c.l.b16 %v1252
      %v1276 = vpack.c.b16 %v1267, %v1266
      %v1277 = vpack.c.b16 %v1269, %v1268
      %v1278 = vpack.c.b16 %v1271, %v1270
      %v1279 = vpack.c.b16 %v1273, %v1272
      %v1280 = vpack.c.b16 %v1275, %v1274
      %vm1281 = vsmask.f32 4352
      %v1283 = vshrl.u32 %v1276, 16
      %v1285 = vrot.slane %v1283, 3
      %v1286 = vshll.u32 %v1276, 16
      %v1288 = vrot.slane %v1286, 4
      %v1289 = vor.u32 %v1285, %v1288
      %v1291 = vshrl.u32 %v1277, 16
      %v1293 = vrot.slane %v1291, 3
      %v1294 = vshll.u32 %v1277, 16
      %v1296 = vrot.slane %v1294, 4
      %v1297 = vor.u32 %v1293, %v1296
      %v1298 = vsel %vm1281, %v1289, %v1297
      %v1300 = vshrl.u32 %v1278, 16
      %v1302 = vrot.slane %v1300, 3
      %v1303 = vshll.u32 %v1278, 16
      %v1305 = vrot.slane %v1303, 4
      %v1306 = vor.u32 %v1302, %v1305
      %v1307 = vsel %vm1281, %v1297, %v1306
      %v1309 = vshrl.u32 %v1279, 16
      %v1311 = vrot.slane %v1309, 3
      %v1312 = vshll.u32 %v1279, 16
      %v1314 = vrot.slane %v1312, 4
      %v1315 = vor.u32 %v1311, %v1314
      %v1316 = vsel %vm1281, %v1306, %v1315
      %v1318 = vshrl.u32 %v1280, 16
      %v1320 = vrot.slane %v1318, 3
      %v1321 = vshll.u32 %v1280, 16
      %v1323 = vrot.slane %v1321, 4
      %v1324 = vor.u32 %v1320, %v1323
      %v1325 = vsel %vm1281, %v1315, %v1324
      %v1328 = vunpack.c.l.b16 %v1254
      %v1329 = vunpack.c.l.b16 %v1255
      %v1330 = vpack.c.b16 %v1329, %v1328
      %v1333 = vsel %vm1074, %v1298, 0
      %v1336 = vsel %vm1074, %v1307, 0
      %v1339 = vsel %vm1074, %v1316, 0
      %v1342 = vsel %vm1074, %v1325, 0
      %v1345 = vsel %vm1074, %v1324, 0
      %1347 = vmatprep.subr.bf16.mxu0 0
      %1348 = vmatpush1.bf16.msra.mxu0 0
      %1349 = vmatprep.subr.bf16.mxu0 0
      %1350 = vmatpush1.bf16.msra.mxu0 0
      %1351 = vmatprep.subr.bf16.mxu0 0
      %1352 = vmatpush1.bf16.msra.mxu0 0
      %1353 = vmatprep.subr.bf16.mxu0 0
      %1354 = vmatpush1.bf16.msra.mxu0 0
      %1355 = vmatprep.subr.bf16.mxu0 0
      %1356 = vmatpush1.bf16.msra.mxu0 0
      %1357 = vmatprep.subr.bf16.mxu0 0
      %1358 = vmatpush1.bf16.msra.mxu0 0
      %1359 = vmatprep.subr.bf16.mxu0 0
      %1360 = vmatpush1.bf16.msra.mxu0 0
      %1361 = vmatprep.subr.bf16.mxu0 0
      %1362 = vmatpush1.bf16.msra.mxu0 %v1330
      %1363 = vmatprep.subr.bf16.mxu0 0
      %1364 = vmatpush2.bf16.msra.mxu0 0
      %1365 = vmatprep.subr.bf16.mxu0 0
      %1366 = vmatpush2.bf16.msra.mxu0 0
      %1367 = vmatprep.subr.bf16.mxu0 0
      %1368 = vmatpush2.bf16.msra.mxu0 0
      %1369 = vmatprep.subr.bf16.mxu0 0
      %1370 = vmatpush2.bf16.msra.mxu0 0
      %1371 = vmatprep.subr.bf16.mxu0 0
      %1372 = vmatpush2.bf16.msra.mxu0 0
      %1373 = vmatprep.subr.bf16.mxu0 0
      %1374 = vmatpush2.bf16.msra.mxu0 0
      %1375 = vmatprep.subr.bf16.mxu0 0
      %1376 = vmatpush2.bf16.msra.mxu0 0
      %1377 = vmatprep.subr.bf16.mxu0 0
      %1378 = vmatpush2.bf16.msra.mxu0 0
      %1379 = vmatprep.mubr.bf16.mxu0 0
      %1380 = vmatmul.mubr.bf16.gmra.mxu0 %v1333
      %v1381 = vpop.f32.mrf.mxu0
      %v1382 = vadd.f32 0.0, %v1381
      %v1383 = vpop.f32.mrf.mxu0
      %v1384 = vpop.f32.mrf.mxu0
      %v1385 = vadd.f32 0.0, %v1384
      %v1386 = vpop.f32.mrf.mxu0
      %1387 = vmatprep.mubr.bf16.mxu0 0
      %1388 = vmatmul.mubr.bf16.gmra.mxu0 %v1336
      %v1389 = vpop.f32.mrf.mxu0
      %v1390 = vadd.f32 0.0, %v1389
      %v1391 = vpop.f32.mrf.mxu0
      %v1392 = vpop.f32.mrf.mxu0
      %v1393 = vadd.f32 0.0, %v1392
      %v1394 = vpop.f32.mrf.mxu0
      %1395 = vmatprep.mubr.bf16.mxu0 0
      %1396 = vmatmul.mubr.bf16.gmra.mxu0 %v1339
      %v1397 = vpop.f32.mrf.mxu0
      %v1398 = vadd.f32 0.0, %v1397
      %v1399 = vpop.f32.mrf.mxu0
      %v1400 = vpop.f32.mrf.mxu0
      %v1401 = vadd.f32 0.0, %v1400
      %v1402 = vpop.f32.mrf.mxu0
      %1403 = vmatprep.mubr.bf16.mxu0 0
      %1404 = vmatmul.mubr.bf16.gmra.mxu0 %v1342
      %v1405 = vpop.f32.mrf.mxu0
      %v1406 = vadd.f32 0.0, %v1405
      %v1407 = vpop.f32.mrf.mxu0
      %v1408 = vpop.f32.mrf.mxu0
      %v1409 = vadd.f32 0.0, %v1408
      %v1410 = vpop.f32.mrf.mxu0
      %1411 = vmatprep.mubr.bf16.mxu0 0
      %1412 = vmatmul.mubr.bf16.gmra.mxu0 %v1345
      %v1413 = vpop.f32.mrf.mxu0
      %v1414 = vadd.f32 0.0, %v1413
      %v1415 = vpop.f32.mrf.mxu0
      %v1416 = vpop.f32.mrf.mxu0
      %v1417 = vpop.f32.mrf.mxu0
      %1418 = vdwg.mxu0
      %v1420 = vunpack.c.l.b16 %v1249
      %v1421 = vpack.c.b16 %v1420, %v1274
      %vm1422 = vcmask 1044480
      %v1423 = vrot.slane %v1276, 3
      %v1424 = vrot.slane %v1277, 3
      %v1425 = vsel %vm1422, %v1423, %v1424
      %v1426 = vrot.slane %v1278, 3
      %v1427 = vsel %vm1422, %v1424, %v1426
      %v1428 = vrot.slane %v1279, 3
      %v1429 = vsel %vm1422, %v1426, %v1428
      %v1430 = vrot.slane %v1421, 3
      %v1431 = vsel %vm1422, %v1428, %v1430
      %v1434 = vunpack.c.l.b16 %v1250
      %v1435 = vunpack.c.l.b16 %v1251
      %v1436 = vpack.c.b16 %v1435, %v1434
      %v1439 = vsel %vm1074, %v1425, 0
      %v1442 = vsel %vm1074, %v1427, 0
      %v1445 = vsel %vm1074, %v1429, 0
      %v1448 = vsel %vm1074, %v1431, 0
      %v1451 = vsel %vm1074, %v1430, 0
      %1453 = vmatprep.subr.bf16.mxu0 0
      %1454 = vmatpush1.bf16.msra.mxu0 0
      %1455 = vmatprep.subr.bf16.mxu0 0
      %1456 = vmatpush1.bf16.msra.mxu0 0
      %1457 = vmatprep.subr.bf16.mxu0 0
      %1458 = vmatpush1.bf16.msra.mxu0 0
      %1459 = vmatprep.subr.bf16.mxu0 0
      %1460 = vmatpush1.bf16.msra.mxu0 0
      %1461 = vmatprep.subr.bf16.mxu0 0
      %1462 = vmatpush1.bf16.msra.mxu0 0
      %1463 = vmatprep.subr.bf16.mxu0 0
      %1464 = vmatpush1.bf16.msra.mxu0 0
      %1465 = vmatprep.subr.bf16.mxu0 0
      %1466 = vmatpush1.bf16.msra.mxu0 0
      %1467 = vmatprep.subr.bf16.mxu0 0
      %1468 = vmatpush1.bf16.msra.mxu0 %v1436
      %1469 = vmatprep.subr.bf16.mxu0 0
      %1470 = vmatpush2.bf16.msra.mxu0 0
      %1471 = vmatprep.subr.bf16.mxu0 0
      %1472 = vmatpush2.bf16.msra.mxu0 0
      %1473 = vmatprep.subr.bf16.mxu0 0
      %1474 = vmatpush2.bf16.msra.mxu0 0
      %1475 = vmatprep.subr.bf16.mxu0 0
      %1476 = vmatpush2.bf16.msra.mxu0 0
      %1477 = vmatprep.subr.bf16.mxu0 0
      %1478 = vmatpush2.bf16.msra.mxu0 0
      %1479 = vmatprep.subr.bf16.mxu0 0
      %1480 = vmatpush2.bf16.msra.mxu0 0
      %1481 = vmatprep.subr.bf16.mxu0 0
      %1482 = vmatpush2.bf16.msra.mxu0 0
      %1483 = vmatprep.subr.bf16.mxu0 0
      %1484 = vmatpush2.bf16.msra.mxu0 0
      %1485 = vmatprep.mubr.bf16.mxu0 0
      %1486 = vmatmul.mubr.bf16.gmra.mxu0 %v1439
      %v1487 = vpop.f32.mrf.mxu0
      %v1488 = vadd.f32 %v1382, %v1487
      %v1489 = vpop.f32.mrf.mxu0
      %v1490 = vpop.f32.mrf.mxu0
      %v1491 = vadd.f32 %v1385, %v1490
      %v1492 = vpop.f32.mrf.mxu0
      %1493 = vmatprep.mubr.bf16.mxu0 0
      %1494 = vmatmul.mubr.bf16.gmra.mxu0 %v1442
      %v1495 = vpop.f32.mrf.mxu0
      %v1496 = vadd.f32 %v1390, %v1495
      %v1497 = vpop.f32.mrf.mxu0
      %v1498 = vpop.f32.mrf.mxu0
      %v1499 = vadd.f32 %v1393, %v1498
      %v1500 = vpop.f32.mrf.mxu0
      %1501 = vmatprep.mubr.bf16.mxu0 0
      %1502 = vmatmul.mubr.bf16.gmra.mxu0 %v1445
      %v1503 = vpop.f32.mrf.mxu0
      %v1504 = vadd.f32 %v1398, %v1503
      %v1505 = vpop.f32.mrf.mxu0
      %v1506 = vpop.f32.mrf.mxu0
      %v1507 = vadd.f32 %v1401, %v1506
      %v1508 = vpop.f32.mrf.mxu0
      %1509 = vmatprep.mubr.bf16.mxu0 0
      %1510 = vmatmul.mubr.bf16.gmra.mxu0 %v1448
      %v1511 = vpop.f32.mrf.mxu0
      %v1512 = vadd.f32 %v1406, %v1511
      %v1513 = vpop.f32.mrf.mxu0
      %v1514 = vpop.f32.mrf.mxu0
      %v1515 = vadd.f32 %v1409, %v1514
      %v1516 = vpop.f32.mrf.mxu0
      %1517 = vmatprep.mubr.bf16.mxu0 0
      %1518 = vmatmul.mubr.bf16.gmra.mxu0 %v1451
      %v1519 = vpop.f32.mrf.mxu0
      %v1520 = vadd.f32 %v1414, %v1519
      %v1521 = vpop.f32.mrf.mxu0
      %v1522 = vpop.f32.mrf.mxu0
      %v1523 = vpop.f32.mrf.mxu0
      %1524 = vdwg.mxu0
      %s1525 = scalar_lea.vmem %s6, 16
      %v1526 = vld [vmem:[%s1525] sm:$0xf]
      %v1527 = vld [vmem:[%s1525 + $0x4] sm:$0xf]
      %v1528 = vpack.c.b16 %v1268, %v1267
      %v1529 = vpack.c.b16 %v1270, %v1269
      %v1530 = vpack.c.b16 %v1272, %v1271
      %v1531 = vpack.c.b16 %v1274, %v1273
      %v1532 = vpack.c.b16 %v1275, %v1275
      %v1535 = vunpack.c.l.b16 %v1526
      %v1536 = vunpack.c.l.b16 %v1527
      %v1537 = vpack.c.b16 %v1536, %v1535
      %v1540 = vsel %vm1074, %v1528, 0
      %v1543 = vsel %vm1074, %v1529, 0
      %v1546 = vsel %vm1074, %v1530, 0
      %v1549 = vsel %vm1074, %v1531, 0
      %v1552 = vsel %vm1074, %v1532, 0
      %1554 = vmatprep.subr.bf16.mxu0 0
      %1555 = vmatpush1.bf16.msra.mxu0 0
      %1556 = vmatprep.subr.bf16.mxu0 0
      %1557 = vmatpush1.bf16.msra.mxu0 0
      %1558 = vmatprep.subr.bf16.mxu0 0
      %1559 = vmatpush1.bf16.msra.mxu0 0
      %1560 = vmatprep.subr.bf16.mxu0 0
      %1561 = vmatpush1.bf16.msra.mxu0 0
      %1562 = vmatprep.subr.bf16.mxu0 0
      %1563 = vmatpush1.bf16.msra.mxu0 0
      %1564 = vmatprep.subr.bf16.mxu0 0
      %1565 = vmatpush1.bf16.msra.mxu0 0
      %1566 = vmatprep.subr.bf16.mxu0 0
      %1567 = vmatpush1.bf16.msra.mxu0 0
      %1568 = vmatprep.subr.bf16.mxu0 0
      %1569 = vmatpush1.bf16.msra.mxu0 %v1537
      %1570 = vmatprep.subr.bf16.mxu0 0
      %1571 = vmatpush2.bf16.msra.mxu0 0
      %1572 = vmatprep.subr.bf16.mxu0 0
      %1573 = vmatpush2.bf16.msra.mxu0 0
      %1574 = vmatprep.subr.bf16.mxu0 0
      %1575 = vmatpush2.bf16.msra.mxu0 0
      %1576 = vmatprep.subr.bf16.mxu0 0
      %1577 = vmatpush2.bf16.msra.mxu0 0
      %1578 = vmatprep.subr.bf16.mxu0 0
      %1579 = vmatpush2.bf16.msra.mxu0 0
      %1580 = vmatprep.subr.bf16.mxu0 0
      %1581 = vmatpush2.bf16.msra.mxu0 0
      %1582 = vmatprep.subr.bf16.mxu0 0
      %1583 = vmatpush2.bf16.msra.mxu0 0
      %1584 = vmatprep.subr.bf16.mxu0 0
      %1585 = vmatpush2.bf16.msra.mxu0 0
      %1586 = vmatprep.mubr.bf16.mxu0 0
      %1587 = vmatmul.mubr.bf16.gmra.mxu0 %v1540
      %v1588 = vpop.f32.mrf.mxu0
      %v1589 = vadd.f32 0.0, %v1588
      %v1590 = vpop.f32.mrf.mxu0
      %v1591 = vpop.f32.mrf.mxu0
      %v1592 = vadd.f32 0.0, %v1591
      %v1593 = vpop.f32.mrf.mxu0
      %1594 = vmatprep.mubr.bf16.mxu0 0
      %1595 = vmatmul.mubr.bf16.gmra.mxu0 %v1543
      %v1596 = vpop.f32.mrf.mxu0
      %v1597 = vadd.f32 0.0, %v1596
      %v1598 = vpop.f32.mrf.mxu0
      %v1599 = vpop.f32.mrf.mxu0
      %v1600 = vadd.f32 0.0, %v1599
      %v1601 = vpop.f32.mrf.mxu0
      %1602 = vmatprep.mubr.bf16.mxu0 0
      %1603 = vmatmul.mubr.bf16.gmra.mxu0 %v1546
      %v1604 = vpop.f32.mrf.mxu0
      %v1605 = vadd.f32 0.0, %v1604
      %v1606 = vpop.f32.mrf.mxu0
      %v1607 = vpop.f32.mrf.mxu0
      %v1608 = vadd.f32 0.0, %v1607
      %v1609 = vpop.f32.mrf.mxu0
      %1610 = vmatprep.mubr.bf16.mxu0 0
      %1611 = vmatmul.mubr.bf16.gmra.mxu0 %v1549
      %v1612 = vpop.f32.mrf.mxu0
      %v1613 = vadd.f32 0.0, %v1612
      %v1614 = vpop.f32.mrf.mxu0
      %v1615 = vpop.f32.mrf.mxu0
      %v1616 = vadd.f32 0.0, %v1615
      %v1617 = vpop.f32.mrf.mxu0
      %1618 = vmatprep.mubr.bf16.mxu0 0
      %1619 = vmatmul.mubr.bf16.gmra.mxu0 %v1552
      %v1620 = vpop.f32.mrf.mxu0
      %v1621 = vadd.f32 0.0, %v1620
      %v1622 = vpop.f32.mrf.mxu0
      %v1623 = vpop.f32.mrf.mxu0
      %v1624 = vpop.f32.mrf.mxu0
      %1625 = vdwg.mxu0
      %v1626 = vadd.f32 %v1488, %v1589
      %v1627 = vadd.f32 %v1491, %v1592
      %v1628 = vadd.f32 %v1496, %v1597
      %v1629 = vadd.f32 %v1499, %v1600
      %v1630 = vadd.f32 %v1504, %v1605
      %v1631 = vadd.f32 %v1507, %v1608
      %v1632 = vadd.f32 %v1512, %v1613
      %v1633 = vadd.f32 %v1515, %v1616
      %v1634 = vadd.f32 %v1520, %v1621
      %v1635 = vld [vmem:[#allocation2 + $0x4] sm:$0x8]
      %v1636 = vld [vmem:[#allocation2 + $0x8] sm:$0xf]
      %v1637 = vld [vmem:[#allocation2 + $0xc] sm:$0xf]
      %v1638 = vld [vmem:[#allocation2 + $0x10] sm:$0xf]
      %v1639 = vld [vmem:[#allocation2 + $0x14] sm:$0xf]
      %v1640 = vld [vmem:[#allocation2 + $0x18] sm:$0xf]
      %v1641 = vld [vmem:[#allocation2 + $0x1c] sm:$0xf]
      %v1642 = vld [vmem:[#allocation2 + $0x20] sm:$0xf]
      %v1643 = vld [vmem:[#allocation2 + $0x24] sm:$0xf]
      %v1644 = vld [vmem:[#allocation2 + $0x28] sm:$0xf]
      %s1645 = scalar_lea.vmem %s6, 24
      %v1646 = vld [vmem:[%s1645] sm:$0xf]
      %v1647 = vld [vmem:[%s1645 + $0x4] sm:$0xf]
      %v1658 = vunpack.c.l.b16 %v1635
      %v1659 = vunpack.c.l.b16 %v1636
      %v1660 = vunpack.c.l.b16 %v1637
      %v1661 = vunpack.c.l.b16 %v1638
      %v1662 = vunpack.c.l.b16 %v1639
      %v1663 = vunpack.c.l.b16 %v1640
      %v1664 = vunpack.c.l.b16 %v1641
      %v1665 = vunpack.c.l.b16 %v1642
      %v1666 = vunpack.c.l.b16 %v1643
      %v1667 = vunpack.c.l.b16 %v1644
      %v1668 = vpack.c.b16 %v1659, %v1658
      %v1669 = vpack.c.b16 %v1661, %v1660
      %v1670 = vpack.c.b16 %v1663, %v1662
      %v1671 = vpack.c.b16 %v1665, %v1664
      %v1672 = vpack.c.b16 %v1667, %v1666
      %v1674 = vshrl.u32 %v1668, 16
      %v1676 = vrot.slane %v1674, 3
      %v1677 = vshll.u32 %v1668, 16
      %v1679 = vrot.slane %v1677, 4
      %v1680 = vor.u32 %v1676, %v1679
      %v1682 = vshrl.u32 %v1669, 16
      %v1684 = vrot.slane %v1682, 3
      %v1685 = vshll.u32 %v1669, 16
      %v1687 = vrot.slane %v1685, 4
      %v1688 = vor.u32 %v1684, %v1687
      %v1689 = vsel %vm1281, %v1680, %v1688
      %v1691 = vshrl.u32 %v1670, 16
      %v1693 = vrot.slane %v1691, 3
      %v1694 = vshll.u32 %v1670, 16
      %v1696 = vrot.slane %v1694, 4
      %v1697 = vor.u32 %v1693, %v1696
      %v1698 = vsel %vm1281, %v1688, %v1697
      %v1700 = vshrl.u32 %v1671, 16
      %v1702 = vrot.slane %v1700, 3
      %v1703 = vshll.u32 %v1671, 16
      %v1705 = vrot.slane %v1703, 4
      %v1706 = vor.u32 %v1702, %v1705
      %v1707 = vsel %vm1281, %v1697, %v1706
      %v1709 = vshrl.u32 %v1672, 16
      %v1711 = vrot.slane %v1709, 3
      %v1712 = vshll.u32 %v1672, 16
      %v1714 = vrot.slane %v1712, 4
      %v1715 = vor.u32 %v1711, %v1714
      %v1716 = vsel %vm1281, %v1706, %v1715
      %v1719 = vunpack.c.l.b16 %v1646
      %v1720 = vunpack.c.l.b16 %v1647
      %v1721 = vpack.c.b16 %v1720, %v1719
      %v1724 = vsel %vm1074, %v1689, 0
      %v1727 = vsel %vm1074, %v1698, 0
      %v1730 = vsel %vm1074, %v1707, 0
      %v1733 = vsel %vm1074, %v1716, 0
      %v1736 = vsel %vm1074, %v1715, 0
      %1738 = vmatprep.subr.bf16.mxu0 0
      %1739 = vmatpush1.bf16.msra.mxu0 0
      %1740 = vmatprep.subr.bf16.mxu0 0
      %1741 = vmatpush1.bf16.msra.mxu0 0
      %1742 = vmatprep.subr.bf16.mxu0 0
      %1743 = vmatpush1.bf16.msra.mxu0 0
      %1744 = vmatprep.subr.bf16.mxu0 0
      %1745 = vmatpush1.bf16.msra.mxu0 0
      %1746 = vmatprep.subr.bf16.mxu0 0
      %1747 = vmatpush1.bf16.msra.mxu0 0
      %1748 = vmatprep.subr.bf16.mxu0 0
      %1749 = vmatpush1.bf16.msra.mxu0 0
      %1750 = vmatprep.subr.bf16.mxu0 0
      %1751 = vmatpush1.bf16.msra.mxu0 0
      %1752 = vmatprep.subr.bf16.mxu0 0
      %1753 = vmatpush1.bf16.msra.mxu0 %v1721
      %1754 = vmatprep.subr.bf16.mxu0 0
      %1755 = vmatpush2.bf16.msra.mxu0 0
      %1756 = vmatprep.subr.bf16.mxu0 0
      %1757 = vmatpush2.bf16.msra.mxu0 0
      %1758 = vmatprep.subr.bf16.mxu0 0
      %1759 = vmatpush2.bf16.msra.mxu0 0
      %1760 = vmatprep.subr.bf16.mxu0 0
      %1761 = vmatpush2.bf16.msra.mxu0 0
      %1762 = vmatprep.subr.bf16.mxu0 0
      %1763 = vmatpush2.bf16.msra.mxu0 0
      %1764 = vmatprep.subr.bf16.mxu0 0
      %1765 = vmatpush2.bf16.msra.mxu0 0
      %1766 = vmatprep.subr.bf16.mxu0 0
      %1767 = vmatpush2.bf16.msra.mxu0 0
      %1768 = vmatprep.subr.bf16.mxu0 0
      %1769 = vmatpush2.bf16.msra.mxu0 0
      %1770 = vmatprep.mubr.bf16.mxu0 0
      %1771 = vmatmul.mubr.bf16.gmra.mxu0 %v1724
      %v1772 = vpop.f32.mrf.mxu0
      %v1773 = vadd.f32 0.0, %v1772
      %v1774 = vpop.f32.mrf.mxu0
      %v1775 = vpop.f32.mrf.mxu0
      %v1776 = vadd.f32 0.0, %v1775
      %v1777 = vpop.f32.mrf.mxu0
      %1778 = vmatprep.mubr.bf16.mxu0 0
      %1779 = vmatmul.mubr.bf16.gmra.mxu0 %v1727
      %v1780 = vpop.f32.mrf.mxu0
      %v1781 = vadd.f32 0.0, %v1780
      %v1782 = vpop.f32.mrf.mxu0
      %v1783 = vpop.f32.mrf.mxu0
      %v1784 = vadd.f32 0.0, %v1783
      %v1785 = vpop.f32.mrf.mxu0
      %1786 = vmatprep.mubr.bf16.mxu0 0
      %1787 = vmatmul.mubr.bf16.gmra.mxu0 %v1730
      %v1788 = vpop.f32.mrf.mxu0
      %v1789 = vadd.f32 0.0, %v1788
      %v1790 = vpop.f32.mrf.mxu0
      %v1791 = vpop.f32.mrf.mxu0
      %v1792 = vadd.f32 0.0, %v1791
      %v1793 = vpop.f32.mrf.mxu0
      %1794 = vmatprep.mubr.bf16.mxu0 0
      %1795 = vmatmul.mubr.bf16.gmra.mxu0 %v1733
      %v1796 = vpop.f32.mrf.mxu0
      %v1797 = vadd.f32 0.0, %v1796
      %v1798 = vpop.f32.mrf.mxu0
      %v1799 = vpop.f32.mrf.mxu0
      %v1800 = vadd.f32 0.0, %v1799
      %v1801 = vpop.f32.mrf.mxu0
      %1802 = vmatprep.mubr.bf16.mxu0 0
      %1803 = vmatmul.mubr.bf16.gmra.mxu0 %v1736
      %v1804 = vpop.f32.mrf.mxu0
      %v1805 = vadd.f32 0.0, %v1804
      %v1806 = vpop.f32.mrf.mxu0
      %v1807 = vpop.f32.mrf.mxu0
      %v1808 = vpop.f32.mrf.mxu0
      %1809 = vdwg.mxu0
      %v1810 = vadd.f32 %v1626, %v1773
      %v1811 = vadd.f32 %v1627, %v1776
      %v1812 = vadd.f32 %v1628, %v1781
      %v1813 = vadd.f32 %v1629, %v1784
      %v1814 = vadd.f32 %v1630, %v1789
      %v1815 = vadd.f32 %v1631, %v1792
      %v1816 = vadd.f32 %v1632, %v1797
      %v1817 = vadd.f32 %v1633, %v1800
      %v1818 = vadd.f32 %v1634, %v1805
      %s1819 = scalar_lea.vmem %s6, 32
      %v1820 = vld [vmem:[%s1819] sm:$0xf]
      %v1821 = vld [vmem:[%s1819 + $0x4] sm:$0xf]
      %v1822 = vpack.c.b16 %v1660, %v1659
      %v1823 = vpack.c.b16 %v1662, %v1661
      %v1824 = vpack.c.b16 %v1664, %v1663
      %v1825 = vpack.c.b16 %v1666, %v1665
      %v1826 = vpack.c.b16 %v1667, %v1667
      %v1829 = vunpack.c.l.b16 %v1820
      %v1830 = vunpack.c.l.b16 %v1821
      %v1831 = vpack.c.b16 %v1830, %v1829
      %v1834 = vsel %vm1074, %v1822, 0
      %v1837 = vsel %vm1074, %v1823, 0
      %v1840 = vsel %vm1074, %v1824, 0
      %v1843 = vsel %vm1074, %v1825, 0
      %v1846 = vsel %vm1074, %v1826, 0
      %1848 = vmatprep.subr.bf16.mxu0 0
      %1849 = vmatpush1.bf16.msra.mxu0 0
      %1850 = vmatprep.subr.bf16.mxu0 0
      %1851 = vmatpush1.bf16.msra.mxu0 0
      %1852 = vmatprep.subr.bf16.mxu0 0
      %1853 = vmatpush1.bf16.msra.mxu0 0
      %1854 = vmatprep.subr.bf16.mxu0 0
      %1855 = vmatpush1.bf16.msra.mxu0 0
      %1856 = vmatprep.subr.bf16.mxu0 0
      %1857 = vmatpush1.bf16.msra.mxu0 0
      %1858 = vmatprep.subr.bf16.mxu0 0
      %1859 = vmatpush1.bf16.msra.mxu0 0
      %1860 = vmatprep.subr.bf16.mxu0 0
      %1861 = vmatpush1.bf16.msra.mxu0 0
      %1862 = vmatprep.subr.bf16.mxu0 0
      %1863 = vmatpush1.bf16.msra.mxu0 %v1831
      %1864 = vmatprep.subr.bf16.mxu0 0
      %1865 = vmatpush2.bf16.msra.mxu0 0
      %1866 = vmatprep.subr.bf16.mxu0 0
      %1867 = vmatpush2.bf16.msra.mxu0 0
      %1868 = vmatprep.subr.bf16.mxu0 0
      %1869 = vmatpush2.bf16.msra.mxu0 0
      %1870 = vmatprep.subr.bf16.mxu0 0
      %1871 = vmatpush2.bf16.msra.mxu0 0
      %1872 = vmatprep.subr.bf16.mxu0 0
      %1873 = vmatpush2.bf16.msra.mxu0 0
      %1874 = vmatprep.subr.bf16.mxu0 0
      %1875 = vmatpush2.bf16.msra.mxu0 0
      %1876 = vmatprep.subr.bf16.mxu0 0
      %1877 = vmatpush2.bf16.msra.mxu0 0
      %1878 = vmatprep.subr.bf16.mxu0 0
      %1879 = vmatpush2.bf16.msra.mxu0 0
      %1880 = vmatprep.mubr.bf16.mxu0 0
      %1881 = vmatmul.mubr.bf16.gmra.mxu0 %v1834
      %v1882 = vpop.f32.mrf.mxu0
      %v1883 = vadd.f32 0.0, %v1882
      %v1884 = vpop.f32.mrf.mxu0
      %v1885 = vpop.f32.mrf.mxu0
      %v1886 = vadd.f32 0.0, %v1885
      %v1887 = vpop.f32.mrf.mxu0
      %1888 = vmatprep.mubr.bf16.mxu0 0
      %1889 = vmatmul.mubr.bf16.gmra.mxu0 %v1837
      %v1890 = vpop.f32.mrf.mxu0
      %v1891 = vadd.f32 0.0, %v1890
      %v1892 = vpop.f32.mrf.mxu0
      %v1893 = vpop.f32.mrf.mxu0
      %v1894 = vadd.f32 0.0, %v1893
      %v1895 = vpop.f32.mrf.mxu0
      %1896 = vmatprep.mubr.bf16.mxu0 0
      %1897 = vmatmul.mubr.bf16.gmra.mxu0 %v1840
      %v1898 = vpop.f32.mrf.mxu0
      %v1899 = vadd.f32 0.0, %v1898
      %v1900 = vpop.f32.mrf.mxu0
      %v1901 = vpop.f32.mrf.mxu0
      %v1902 = vadd.f32 0.0, %v1901
      %v1903 = vpop.f32.mrf.mxu0
      %1904 = vmatprep.mubr.bf16.mxu0 0
      %1905 = vmatmul.mubr.bf16.gmra.mxu0 %v1843
      %v1906 = vpop.f32.mrf.mxu0
      %v1907 = vadd.f32 0.0, %v1906
      %v1908 = vpop.f32.mrf.mxu0
      %v1909 = vpop.f32.mrf.mxu0
      %v1910 = vadd.f32 0.0, %v1909
      %v1911 = vpop.f32.mrf.mxu0
      %1912 = vmatprep.mubr.bf16.mxu0 0
      %1913 = vmatmul.mubr.bf16.gmra.mxu0 %v1846
      %v1914 = vpop.f32.mrf.mxu0
      %v1915 = vadd.f32 0.0, %v1914
      %v1916 = vpop.f32.mrf.mxu0
      %v1917 = vpop.f32.mrf.mxu0
      %v1918 = vpop.f32.mrf.mxu0
      %1919 = vdwg.mxu0
      %v1920 = vadd.f32 %v1810, %v1883
      %v1921 = vadd.f32 %v1811, %v1886
      %v1922 = vadd.f32 %v1812, %v1891
      %v1923 = vadd.f32 %v1813, %v1894
      %v1924 = vadd.f32 %v1814, %v1899
      %v1925 = vadd.f32 %v1815, %v1902
      %v1926 = vadd.f32 %v1816, %v1907
      %v1927 = vadd.f32 %v1817, %v1910
      %v1928 = vadd.f32 %v1818, %v1915
      %v1929 = vld [vmem:[#allocation2 + $0x8] sm:$0xf]
      %v1930 = vld [vmem:[#allocation2 + $0xc] sm:$0xf]
      %v1931 = vld [vmem:[#allocation2 + $0x10] sm:$0xf]
      %v1932 = vld [vmem:[#allocation2 + $0x14] sm:$0xf]
      %v1933 = vld [vmem:[#allocation2 + $0x18] sm:$0xf]
      %v1934 = vld [vmem:[#allocation2 + $0x1c] sm:$0xf]
      %v1935 = vld [vmem:[#allocation2 + $0x20] sm:$0xf]
      %v1936 = vld [vmem:[#allocation2 + $0x24] sm:$0xf]
      %v1937 = vld [vmem:[#allocation2 + $0x28] sm:$0xf]
      %v1938 = vld [vmem:[#allocation2 + $0x2c] sm:$0x1]
      %s1939 = scalar_lea.vmem %s6, 40
      %v1940 = vld [vmem:[%s1939] sm:$0xf]
      %v1941 = vld [vmem:[%s1939 + $0x4] sm:$0xf]
      %v1952 = vunpack.c.l.b16 %v1929
      %v1953 = vunpack.c.l.b16 %v1930
      %v1954 = vunpack.c.l.b16 %v1931
      %v1955 = vunpack.c.l.b16 %v1932
      %v1956 = vunpack.c.l.b16 %v1933
      %v1957 = vunpack.c.l.b16 %v1934
      %v1958 = vunpack.c.l.b16 %v1935
      %v1959 = vunpack.c.l.b16 %v1936
      %v1960 = vunpack.c.l.b16 %v1937
      %v1961 = vunpack.c.l.b16 %v1938
      %v1962 = vpack.c.b16 %v1953, %v1952
      %v1963 = vpack.c.b16 %v1955, %v1954
      %v1964 = vpack.c.b16 %v1957, %v1956
      %v1965 = vpack.c.b16 %v1959, %v1958
      %v1966 = vpack.c.b16 %v1961, %v1960
      %v1968 = vshrl.u32 %v1962, 16
      %v1970 = vshll.u32 %v1962, 16
      %v1972 = vrot.slane %v1970, 1
      %v1973 = vor.u32 %v1968, %v1972
      %v1975 = vshll.u32 %v1963, 16
      %v1977 = vrot.slane %v1975, 1
      %v1978 = vsel %vm489, %v1973, %v1977
      %v1979 = vshrl.u32 %v1963, 16
      %v1981 = vor.u32 %v1979, %v1977
      %v1983 = vshll.u32 %v1964, 16
      %v1985 = vrot.slane %v1983, 1
      %v1986 = vsel %vm489, %v1981, %v1985
      %v1987 = vshrl.u32 %v1964, 16
      %v1989 = vor.u32 %v1987, %v1985
      %v1991 = vshll.u32 %v1965, 16
      %v1993 = vrot.slane %v1991, 1
      %v1994 = vsel %vm489, %v1989, %v1993
      %v1995 = vshrl.u32 %v1965, 16
      %v1997 = vor.u32 %v1995, %v1993
      %v1999 = vshll.u32 %v1966, 16
      %v2001 = vrot.slane %v1999, 1
      %v2002 = vsel %vm489, %v1997, %v2001
      %v2003 = vshrl.u32 %v1966, 16
      %v2005 = vor.u32 %v2003, %v2001
      %v2008 = vunpack.c.l.b16 %v1940
      %v2009 = vunpack.c.l.b16 %v1941
      %v2010 = vpack.c.b16 %v2009, %v2008
      %v2013 = vsel %vm1074, %v1978, 0
      %v2016 = vsel %vm1074, %v1986, 0
      %v2019 = vsel %vm1074, %v1994, 0
      %v2022 = vsel %vm1074, %v2002, 0
      %v2025 = vsel %vm1074, %v2005, 0
      %2027 = vmatprep.subr.bf16.mxu0 0
      %2028 = vmatpush1.bf16.msra.mxu0 0
      %2029 = vmatprep.subr.bf16.mxu0 0
      %2030 = vmatpush1.bf16.msra.mxu0 0
      %2031 = vmatprep.subr.bf16.mxu0 0
      %2032 = vmatpush1.bf16.msra.mxu0 0
      %2033 = vmatprep.subr.bf16.mxu0 0
      %2034 = vmatpush1.bf16.msra.mxu0 0
      %2035 = vmatprep.subr.bf16.mxu0 0
      %2036 = vmatpush1.bf16.msra.mxu0 0
      %2037 = vmatprep.subr.bf16.mxu0 0
      %2038 = vmatpush1.bf16.msra.mxu0 0
      %2039 = vmatprep.subr.bf16.mxu0 0
      %2040 = vmatpush1.bf16.msra.mxu0 0
      %2041 = vmatprep.subr.bf16.mxu0 0
      %2042 = vmatpush1.bf16.msra.mxu0 %v2010
      %2043 = vmatprep.subr.bf16.mxu0 0
      %2044 = vmatpush2.bf16.msra.mxu0 0
      %2045 = vmatprep.subr.bf16.mxu0 0
      %2046 = vmatpush2.bf16.msra.mxu0 0
      %2047 = vmatprep.subr.bf16.mxu0 0
      %2048 = vmatpush2.bf16.msra.mxu0 0
      %2049 = vmatprep.subr.bf16.mxu0 0
      %2050 = vmatpush2.bf16.msra.mxu0 0
      %2051 = vmatprep.subr.bf16.mxu0 0
      %2052 = vmatpush2.bf16.msra.mxu0 0
      %2053 = vmatprep.subr.bf16.mxu0 0
      %2054 = vmatpush2.bf16.msra.mxu0 0
      %2055 = vmatprep.subr.bf16.mxu0 0
      %2056 = vmatpush2.bf16.msra.mxu0 0
      %2057 = vmatprep.subr.bf16.mxu0 0
      %2058 = vmatpush2.bf16.msra.mxu0 0
      %2059 = vmatprep.mubr.bf16.mxu0 0
      %2060 = vmatmul.mubr.bf16.gmra.mxu0 %v2013
      %v2061 = vpop.f32.mrf.mxu0
      %v2062 = vadd.f32 0.0, %v2061
      %v2063 = vpop.f32.mrf.mxu0
      %v2064 = vpop.f32.mrf.mxu0
      %v2065 = vadd.f32 0.0, %v2064
      %v2066 = vpop.f32.mrf.mxu0
      %2067 = vmatprep.mubr.bf16.mxu0 0
      %2068 = vmatmul.mubr.bf16.gmra.mxu0 %v2016
      %v2069 = vpop.f32.mrf.mxu0
      %v2070 = vadd.f32 0.0, %v2069
      %v2071 = vpop.f32.mrf.mxu0
      %v2072 = vpop.f32.mrf.mxu0
      %v2073 = vadd.f32 0.0, %v2072
      %v2074 = vpop.f32.mrf.mxu0
      %2075 = vmatprep.mubr.bf16.mxu0 0
      %2076 = vmatmul.mubr.bf16.gmra.mxu0 %v2019
      %v2077 = vpop.f32.mrf.mxu0
      %v2078 = vadd.f32 0.0, %v2077
      %v2079 = vpop.f32.mrf.mxu0
      %v2080 = vpop.f32.mrf.mxu0
      %v2081 = vadd.f32 0.0, %v2080
      %v2082 = vpop.f32.mrf.mxu0
      %2083 = vmatprep.mubr.bf16.mxu0 0
      %2084 = vmatmul.mubr.bf16.gmra.mxu0 %v2022
      %v2085 = vpop.f32.mrf.mxu0
      %v2086 = vadd.f32 0.0, %v2085
      %v2087 = vpop.f32.mrf.mxu0
      %v2088 = vpop.f32.mrf.mxu0
      %v2089 = vadd.f32 0.0, %v2088
      %v2090 = vpop.f32.mrf.mxu0
      %2091 = vmatprep.mubr.bf16.mxu0 0
      %2092 = vmatmul.mubr.bf16.gmra.mxu0 %v2025
      %v2093 = vpop.f32.mrf.mxu0
      %v2094 = vadd.f32 0.0, %v2093
      %v2095 = vpop.f32.mrf.mxu0
      %v2096 = vpop.f32.mrf.mxu0
      %v2097 = vpop.f32.mrf.mxu0
      %2098 = vdwg.mxu0
      %v2099 = vadd.f32 %v1920, %v2062
      %v2100 = vadd.f32 %v1921, %v2065
      %v2101 = vadd.f32 %v1922, %v2070
      %v2102 = vadd.f32 %v1923, %v2073
      %v2103 = vadd.f32 %v1924, %v2078
      %v2104 = vadd.f32 %v1925, %v2081
      %v2105 = vadd.f32 %v1926, %v2086
      %v2106 = vadd.f32 %v1927, %v2089
      %v2107 = vadd.f32 %v1928, %v2094
      %v2108 = vld [vmem:[#allocation2 + $0x2c] sm:$0xf]
      %s2109 = scalar_lea.vmem %s6, 48
      %v2110 = vld [vmem:[%s2109] sm:$0xf]
      %v2111 = vld [vmem:[%s2109 + $0x4] sm:$0xf]
      %v2113 = vunpack.c.l.b16 %v2108
      %v2114 = vpack.c.b16 %v1954, %v1953
      %v2115 = vpack.c.b16 %v1956, %v1955
      %v2116 = vpack.c.b16 %v1958, %v1957
      %v2117 = vpack.c.b16 %v1960, %v1959
      %v2118 = vpack.c.b16 %v2113, %v2113
      %v2121 = vunpack.c.l.b16 %v2110
      %v2122 = vunpack.c.l.b16 %v2111
      %v2123 = vpack.c.b16 %v2122, %v2121
      %v2126 = vsel %vm1074, %v2114, 0
      %v2129 = vsel %vm1074, %v2115, 0
      %v2132 = vsel %vm1074, %v2116, 0
      %v2135 = vsel %vm1074, %v2117, 0
      %v2138 = vsel %vm1074, %v2118, 0
      %2140 = vmatprep.subr.bf16.mxu0 0
      %2141 = vmatpush1.bf16.msra.mxu0 0
      %2142 = vmatprep.subr.bf16.mxu0 0
      %2143 = vmatpush1.bf16.msra.mxu0 0
      %2144 = vmatprep.subr.bf16.mxu0 0
      %2145 = vmatpush1.bf16.msra.mxu0 0
      %2146 = vmatprep.subr.bf16.mxu0 0
      %2147 = vmatpush1.bf16.msra.mxu0 0
      %2148 = vmatprep.subr.bf16.mxu0 0
      %2149 = vmatpush1.bf16.msra.mxu0 0
      %2150 = vmatprep.subr.bf16.mxu0 0
      %2151 = vmatpush1.bf16.msra.mxu0 0
      %2152 = vmatprep.subr.bf16.mxu0 0
      %2153 = vmatpush1.bf16.msra.mxu0 0
      %2154 = vmatprep.subr.bf16.mxu0 0
      %2155 = vmatpush1.bf16.msra.mxu0 %v2123
      %2156 = vmatprep.subr.bf16.mxu0 0
      %2157 = vmatpush2.bf16.msra.mxu0 0
      %2158 = vmatprep.subr.bf16.mxu0 0
      %2159 = vmatpush2.bf16.msra.mxu0 0
      %2160 = vmatprep.subr.bf16.mxu0 0
      %2161 = vmatpush2.bf16.msra.mxu0 0
      %2162 = vmatprep.subr.bf16.mxu0 0
      %2163 = vmatpush2.bf16.msra.mxu0 0
      %2164 = vmatprep.subr.bf16.mxu0 0
      %2165 = vmatpush2.bf16.msra.mxu0 0
      %2166 = vmatprep.subr.bf16.mxu0 0
      %2167 = vmatpush2.bf16.msra.mxu0 0
      %2168 = vmatprep.subr.bf16.mxu0 0
      %2169 = vmatpush2.bf16.msra.mxu0 0
      %2170 = vmatprep.subr.bf16.mxu0 0
      %2171 = vmatpush2.bf16.msra.mxu0 0
      %2172 = vmatprep.mubr.bf16.mxu0 0
      %2173 = vmatmul.mubr.bf16.gmra.mxu0 %v2126
      %v2174 = vpop.f32.mrf.mxu0
      %v2175 = vadd.f32 0.0, %v2174
      %v2176 = vpop.f32.mrf.mxu0
      %v2177 = vpop.f32.mrf.mxu0
      %v2178 = vadd.f32 0.0, %v2177
      %v2179 = vpop.f32.mrf.mxu0
      %2180 = vmatprep.mubr.bf16.mxu0 0
      %2181 = vmatmul.mubr.bf16.gmra.mxu0 %v2129
      %v2182 = vpop.f32.mrf.mxu0
      %v2183 = vadd.f32 0.0, %v2182
      %v2184 = vpop.f32.mrf.mxu0
      %v2185 = vpop.f32.mrf.mxu0
      %v2186 = vadd.f32 0.0, %v2185
      %v2187 = vpop.f32.mrf.mxu0
      %2188 = vmatprep.mubr.bf16.mxu0 0
      %2189 = vmatmul.mubr.bf16.gmra.mxu0 %v2132
      %v2190 = vpop.f32.mrf.mxu0
      %v2191 = vadd.f32 0.0, %v2190
      %v2192 = vpop.f32.mrf.mxu0
      %v2193 = vpop.f32.mrf.mxu0
      %v2194 = vadd.f32 0.0, %v2193
      %v2195 = vpop.f32.mrf.mxu0
      %2196 = vmatprep.mubr.bf16.mxu0 0
      %2197 = vmatmul.mubr.bf16.gmra.mxu0 %v2135
      %v2198 = vpop.f32.mrf.mxu0
      %v2199 = vadd.f32 0.0, %v2198
      %v2200 = vpop.f32.mrf.mxu0
      %v2201 = vpop.f32.mrf.mxu0
      %v2202 = vadd.f32 0.0, %v2201
      %v2203 = vpop.f32.mrf.mxu0
      %2204 = vmatprep.mubr.bf16.mxu0 0
      %2205 = vmatmul.mubr.bf16.gmra.mxu0 %v2138
      %v2206 = vpop.f32.mrf.mxu0
      %v2207 = vadd.f32 0.0, %v2206
      %v2208 = vpop.f32.mrf.mxu0
      %v2209 = vpop.f32.mrf.mxu0
      %v2210 = vpop.f32.mrf.mxu0
      %2211 = vdwg.mxu0
      %v2212 = vadd.f32 %v2099, %v2175
      %v2213 = vadd.f32 %v2100, %v2178
      %v2214 = vadd.f32 %v2101, %v2183
      %v2215 = vadd.f32 %v2102, %v2186
      %v2216 = vadd.f32 %v2103, %v2191
      %v2217 = vadd.f32 %v2104, %v2194
      %v2218 = vadd.f32 %v2105, %v2199
      %v2219 = vadd.f32 %v2106, %v2202
      %v2220 = vadd.f32 %v2107, %v2207
      %v2221 = vld [vmem:[#allocation2 + $0xc] sm:$0xf]
      %v2222 = vld [vmem:[#allocation2 + $0x10] sm:$0xf]
      %v2223 = vld [vmem:[#allocation2 + $0x14] sm:$0xf]
      %v2224 = vld [vmem:[#allocation2 + $0x18] sm:$0xf]
      %v2225 = vld [vmem:[#allocation2 + $0x1c] sm:$0xf]
      %v2226 = vld [vmem:[#allocation2 + $0x20] sm:$0xf]
      %v2227 = vld [vmem:[#allocation2 + $0x24] sm:$0xf]
      %v2228 = vld [vmem:[#allocation2 + $0x28] sm:$0xf]
      %v2229 = vld [vmem:[#allocation2 + $0x2c] sm:$0xf]
      %v2230 = vld [vmem:[#allocation2 + $0x30] sm:$0x1]
      %s2231 = scalar_lea.vmem %s6, 56
      %v2232 = vld [vmem:[%s2231] sm:$0xf]
      %v2233 = vld [vmem:[%s2231 + $0x4] sm:$0xf]
      %v2244 = vunpack.c.l.b16 %v2221
      %v2245 = vunpack.c.l.b16 %v2222
      %v2246 = vunpack.c.l.b16 %v2223
      %v2247 = vunpack.c.l.b16 %v2224
      %v2248 = vunpack.c.l.b16 %v2225
      %v2249 = vunpack.c.l.b16 %v2226
      %v2250 = vunpack.c.l.b16 %v2227
      %v2251 = vunpack.c.l.b16 %v2228
      %v2252 = vunpack.c.l.b16 %v2229
      %v2253 = vunpack.c.l.b16 %v2230
      %v2254 = vpack.c.b16 %v2245, %v2244
      %v2255 = vpack.c.b16 %v2247, %v2246
      %v2256 = vpack.c.b16 %v2249, %v2248
      %v2257 = vpack.c.b16 %v2251, %v2250
      %v2258 = vpack.c.b16 %v2253, %v2252
      %v2260 = vshrl.u32 %v2254, 16
      %v2262 = vshll.u32 %v2254, 16
      %v2264 = vrot.slane %v2262, 1
      %v2265 = vor.u32 %v2260, %v2264
      %v2267 = vshll.u32 %v2255, 16
      %v2269 = vrot.slane %v2267, 1
      %v2270 = vsel %vm489, %v2265, %v2269
      %v2271 = vshrl.u32 %v2255, 16
      %v2273 = vor.u32 %v2271, %v2269
      %v2275 = vshll.u32 %v2256, 16
      %v2277 = vrot.slane %v2275, 1
      %v2278 = vsel %vm489, %v2273, %v2277
      %v2279 = vshrl.u32 %v2256, 16
      %v2281 = vor.u32 %v2279, %v2277
      %v2283 = vshll.u32 %v2257, 16
      %v2285 = vrot.slane %v2283, 1
      %v2286 = vsel %vm489, %v2281, %v2285
      %v2287 = vshrl.u32 %v2257, 16
      %v2289 = vor.u32 %v2287, %v2285
      %v2291 = vshll.u32 %v2258, 16
      %v2293 = vrot.slane %v2291, 1
      %v2294 = vsel %vm489, %v2289, %v2293
      %v2295 = vshrl.u32 %v2258, 16
      %v2297 = vor.u32 %v2295, %v2293
      %v2300 = vunpack.c.l.b16 %v2232
      %v2301 = vunpack.c.l.b16 %v2233
      %v2302 = vpack.c.b16 %v2301, %v2300
      %v2305 = vsel %vm1074, %v2270, 0
      %v2308 = vsel %vm1074, %v2278, 0
      %v2311 = vsel %vm1074, %v2286, 0
      %v2314 = vsel %vm1074, %v2294, 0
      %v2317 = vsel %vm1074, %v2297, 0
      %2319 = vmatprep.subr.bf16.mxu0 0
      %2320 = vmatpush1.bf16.msra.mxu0 0
      %2321 = vmatprep.subr.bf16.mxu0 0
      %2322 = vmatpush1.bf16.msra.mxu0 0
      %2323 = vmatprep.subr.bf16.mxu0 0
      %2324 = vmatpush1.bf16.msra.mxu0 0
      %2325 = vmatprep.subr.bf16.mxu0 0
      %2326 = vmatpush1.bf16.msra.mxu0 0
      %2327 = vmatprep.subr.bf16.mxu0 0
      %2328 = vmatpush1.bf16.msra.mxu0 0
      %2329 = vmatprep.subr.bf16.mxu0 0
      %2330 = vmatpush1.bf16.msra.mxu0 0
      %2331 = vmatprep.subr.bf16.mxu0 0
      %2332 = vmatpush1.bf16.msra.mxu0 0
      %2333 = vmatprep.subr.bf16.mxu0 0
      %2334 = vmatpush1.bf16.msra.mxu0 %v2302
      %2335 = vmatprep.subr.bf16.mxu0 0
      %2336 = vmatpush2.bf16.msra.mxu0 0
      %2337 = vmatprep.subr.bf16.mxu0 0
      %2338 = vmatpush2.bf16.msra.mxu0 0
      %2339 = vmatprep.subr.bf16.mxu0 0
      %2340 = vmatpush2.bf16.msra.mxu0 0
      %2341 = vmatprep.subr.bf16.mxu0 0
      %2342 = vmatpush2.bf16.msra.mxu0 0
      %2343 = vmatprep.subr.bf16.mxu0 0
      %2344 = vmatpush2.bf16.msra.mxu0 0
      %2345 = vmatprep.subr.bf16.mxu0 0
      %2346 = vmatpush2.bf16.msra.mxu0 0
      %2347 = vmatprep.subr.bf16.mxu0 0
      %2348 = vmatpush2.bf16.msra.mxu0 0
      %2349 = vmatprep.subr.bf16.mxu0 0
      %2350 = vmatpush2.bf16.msra.mxu0 0
      %2351 = vmatprep.mubr.bf16.mxu0 0
      %2352 = vmatmul.mubr.bf16.gmra.mxu0 %v2305
      %v2353 = vpop.f32.mrf.mxu0
      %v2354 = vadd.f32 0.0, %v2353
      %v2355 = vpop.f32.mrf.mxu0
      %v2356 = vpop.f32.mrf.mxu0
      %v2357 = vadd.f32 0.0, %v2356
      %v2358 = vpop.f32.mrf.mxu0
      %2359 = vmatprep.mubr.bf16.mxu0 0
      %2360 = vmatmul.mubr.bf16.gmra.mxu0 %v2308
      %v2361 = vpop.f32.mrf.mxu0
      %v2362 = vadd.f32 0.0, %v2361
      %v2363 = vpop.f32.mrf.mxu0
      %v2364 = vpop.f32.mrf.mxu0
      %v2365 = vadd.f32 0.0, %v2364
      %v2366 = vpop.f32.mrf.mxu0
      %2367 = vmatprep.mubr.bf16.mxu0 0
      %2368 = vmatmul.mubr.bf16.gmra.mxu0 %v2311
      %v2369 = vpop.f32.mrf.mxu0
      %v2370 = vadd.f32 0.0, %v2369
      %v2371 = vpop.f32.mrf.mxu0
      %v2372 = vpop.f32.mrf.mxu0
      %v2373 = vadd.f32 0.0, %v2372
      %v2374 = vpop.f32.mrf.mxu0
      %2375 = vmatprep.mubr.bf16.mxu0 0
      %2376 = vmatmul.mubr.bf16.gmra.mxu0 %v2314
      %v2377 = vpop.f32.mrf.mxu0
      %v2378 = vadd.f32 0.0, %v2377
      %v2379 = vpop.f32.mrf.mxu0
      %v2380 = vpop.f32.mrf.mxu0
      %v2381 = vadd.f32 0.0, %v2380
      %v2382 = vpop.f32.mrf.mxu0
      %2383 = vmatprep.mubr.bf16.mxu0 0
      %2384 = vmatmul.mubr.bf16.gmra.mxu0 %v2317
      %v2385 = vpop.f32.mrf.mxu0
      %v2386 = vadd.f32 0.0, %v2385
      %v2387 = vpop.f32.mrf.mxu0
      %v2388 = vpop.f32.mrf.mxu0
      %v2389 = vpop.f32.mrf.mxu0
      %2390 = vdwg.mxu0
      %v2391 = vadd.f32 %v2212, %v2354
      %v2392 = vadd.f32 %v2213, %v2357
      %v2393 = vadd.f32 %v2214, %v2362
      %v2394 = vadd.f32 %v2215, %v2365
      %v2395 = vadd.f32 %v2216, %v2370
      %v2396 = vadd.f32 %v2217, %v2373
      %v2397 = vadd.f32 %v2218, %v2378
      %v2398 = vadd.f32 %v2219, %v2381
      %v2399 = vadd.f32 %v2220, %v2386
      %v2400 = vld [vmem:[#allocation2 + $0xc] sm:$0xe]
      %s2401 = scalar_lea.vmem %s6, 64
      %v2402 = vld [vmem:[%s2401] sm:$0xf]
      %v2403 = vld [vmem:[%s2401 + $0x4] sm:$0xf]
      %v2405 = vunpack.c.l.b16 %v2400
      %v2406 = vpack.c.b16 %v2245, %v2405
      %v2407 = vrot.slane %v2406, 1
      %v2408 = vrot.slane %v2255, 1
      %v2409 = vsel %vm906, %v2407, %v2408
      %v2410 = vrot.slane %v2256, 1
      %v2411 = vsel %vm906, %v2408, %v2410
      %v2412 = vrot.slane %v2257, 1
      %v2413 = vsel %vm906, %v2410, %v2412
      %v2414 = vrot.slane %v2258, 1
      %v2415 = vsel %vm906, %v2412, %v2414
      %v2418 = vunpack.c.l.b16 %v2402
      %v2419 = vunpack.c.l.b16 %v2403
      %v2420 = vpack.c.b16 %v2419, %v2418
      %v2423 = vsel %vm1074, %v2409, 0
      %v2426 = vsel %vm1074, %v2411, 0
      %v2429 = vsel %vm1074, %v2413, 0
      %v2432 = vsel %vm1074, %v2415, 0
      %v2435 = vsel %vm1074, %v2414, 0
      %2437 = vmatprep.subr.bf16.mxu0 0
      %2438 = vmatpush1.bf16.msra.mxu0 0
      %2439 = vmatprep.subr.bf16.mxu0 0
      %2440 = vmatpush1.bf16.msra.mxu0 0
      %2441 = vmatprep.subr.bf16.mxu0 0
      %2442 = vmatpush1.bf16.msra.mxu0 0
      %2443 = vmatprep.subr.bf16.mxu0 0
      %2444 = vmatpush1.bf16.msra.mxu0 0
      %2445 = vmatprep.subr.bf16.mxu0 0
      %2446 = vmatpush1.bf16.msra.mxu0 0
      %2447 = vmatprep.subr.bf16.mxu0 0
      %2448 = vmatpush1.bf16.msra.mxu0 0
      %2449 = vmatprep.subr.bf16.mxu0 0
      %2450 = vmatpush1.bf16.msra.mxu0 0
      %2451 = vmatprep.subr.bf16.mxu0 0
      %2452 = vmatpush1.bf16.msra.mxu0 %v2420
      %2453 = vmatprep.subr.bf16.mxu0 0
      %2454 = vmatpush2.bf16.msra.mxu0 0
      %2455 = vmatprep.subr.bf16.mxu0 0
      %2456 = vmatpush2.bf16.msra.mxu0 0
      %2457 = vmatprep.subr.bf16.mxu0 0
      %2458 = vmatpush2.bf16.msra.mxu0 0
      %2459 = vmatprep.subr.bf16.mxu0 0
      %2460 = vmatpush2.bf16.msra.mxu0 0
      %2461 = vmatprep.subr.bf16.mxu0 0
      %2462 = vmatpush2.bf16.msra.mxu0 0
      %2463 = vmatprep.subr.bf16.mxu0 0
      %2464 = vmatpush2.bf16.msra.mxu0 0
      %2465 = vmatprep.subr.bf16.mxu0 0
      %2466 = vmatpush2.bf16.msra.mxu0 0
      %2467 = vmatprep.subr.bf16.mxu0 0
      %2468 = vmatpush2.bf16.msra.mxu0 0
      %2469 = vmatprep.mubr.bf16.mxu0 0
      %2470 = vmatmul.mubr.bf16.gmra.mxu0 %v2423
      %v2471 = vpop.f32.mrf.mxu0
      %v2472 = vadd.f32 0.0, %v2471
      %v2473 = vpop.f32.mrf.mxu0
      %v2474 = vpop.f32.mrf.mxu0
      %v2475 = vadd.f32 0.0, %v2474
      %v2476 = vpop.f32.mrf.mxu0
      %2477 = vmatprep.mubr.bf16.mxu0 0
      %2478 = vmatmul.mubr.bf16.gmra.mxu0 %v2426
      %v2479 = vpop.f32.mrf.mxu0
      %v2480 = vadd.f32 0.0, %v2479
      %v2481 = vpop.f32.mrf.mxu0
      %v2482 = vpop.f32.mrf.mxu0
      %v2483 = vadd.f32 0.0, %v2482
      %v2484 = vpop.f32.mrf.mxu0
      %2485 = vmatprep.mubr.bf16.mxu0 0
      %2486 = vmatmul.mubr.bf16.gmra.mxu0 %v2429
      %v2487 = vpop.f32.mrf.mxu0
      %v2488 = vadd.f32 0.0, %v2487
      %v2489 = vpop.f32.mrf.mxu0
      %v2490 = vpop.f32.mrf.mxu0
      %v2491 = vadd.f32 0.0, %v2490
      %v2492 = vpop.f32.mrf.mxu0
      %2493 = vmatprep.mubr.bf16.mxu0 0
      %2494 = vmatmul.mubr.bf16.gmra.mxu0 %v2432
      %v2495 = vpop.f32.mrf.mxu0
      %v2496 = vadd.f32 0.0, %v2495
      %v2497 = vpop.f32.mrf.mxu0
      %v2498 = vpop.f32.mrf.mxu0
      %v2499 = vadd.f32 0.0, %v2498
      %v2500 = vpop.f32.mrf.mxu0
      %2501 = vmatprep.mubr.bf16.mxu0 0
      %2502 = vmatmul.mubr.bf16.gmra.mxu0 %v2435
      %v2503 = vpop.f32.mrf.mxu0
      %v2504 = vadd.f32 0.0, %v2503
      %v2505 = vpop.f32.mrf.mxu0
      %v2506 = vpop.f32.mrf.mxu0
      %v2507 = vpop.f32.mrf.mxu0
      %2508 = vdwg.mxu0
      %v2509 = vadd.f32 %v2391, %v2472
      %v2510 = vadd.f32 %v2392, %v2475
      %v2511 = vadd.f32 %v2393, %v2480
      %v2512 = vadd.f32 %v2394, %v2483
      %v2513 = vadd.f32 %v2395, %v2488
      %v2514 = vadd.f32 %v2396, %v2491
      %v2515 = vadd.f32 %v2397, %v2496
      %v2516 = vadd.f32 %v2398, %v2499
      %v2517 = vadd.f32 %v2399, %v2504
      %v2518 = vld [vmem:[%s7] sm:$0x1]
      %v2520 = vlaneseq
      %v2521 = vshrl.u32 %v2520, 7
      %v2522 = vsub.s32 0, %v2521
      %v2523 = vrot.slane %v2518, %v2522
      %v2525 = vadd.f32 %v2509, %v2523
      %v2526 = vadd.f32 %v2510, %v2523
      %v2527 = vadd.f32 %v2511, %v2523
      %v2528 = vadd.f32 %v2512, %v2523
      %v2529 = vadd.f32 %v2513, %v2523
      %v2530 = vadd.f32 %v2514, %v2523
      %v2531 = vadd.f32 %v2515, %v2523
      %v2532 = vadd.f32 %v2516, %v2523
      %v2533 = vadd.f32 %v2517, %v2523
      %v2534 = vmax.f32 %v2525, 0.0
      %v2535 = vmax.f32 %v2526, 0.0
      %v2536 = vmax.f32 %v2527, 0.0
      %v2537 = vmax.f32 %v2528, 0.0
      %v2538 = vmax.f32 %v2529, 0.0
      %v2539 = vmax.f32 %v2530, 0.0
      %v2540 = vmax.f32 %v2531, 0.0
      %v2541 = vmax.f32 %v2532, 0.0
      %v2542 = vmax.f32 %v2533, 0.0
      %v2543 = vld [vmem:[%s8] sm:$0xf]
      %v2544 = vld [vmem:[%s8 + $0x4] sm:$0xf]
      %v2545 = vpack.c.bf16 %v2535, %v2534
      %v2546 = vpack.c.bf16 %v2537, %v2536
      %v2547 = vpack.c.bf16 %v2539, %v2538
      %v2548 = vpack.c.bf16 %v2541, %v2540
      %v2549 = vpack.c.bf16 %v2542, %v2542
      %v2550 = vld [vmem:[%s9] sm:$0xf]
      %vm2551 = vcmask 64512
      %v2553 = vsel %vm2551, %v2545, 0
      %v2556 = vsel %vm2551, %v2546, 0
      %v2559 = vsel %vm2551, %v2547, 0
      %v2562 = vsel %vm2551, %v2548, 0
      %v2565 = vsel %vm2551, %v2549, 0
      %vm2567 = vcmask 1043456
      %v2569 = vsel %vm2567, %v2550, 0
      %2571 = vmatprep.subr.bf16.mxu0 0
      %2572 = vmatpush1.bf16.msra.mxu0 0
      %2573 = vmatprep.subr.bf16.mxu0 0
      %2574 = vmatpush1.bf16.msra.mxu0 0
      %2575 = vmatprep.subr.bf16.mxu0 0
      %2576 = vmatpush1.bf16.msra.mxu0 0
      %2577 = vmatprep.subr.bf16.mxu0 0
      %2578 = vmatpush1.bf16.msra.mxu0 0
      %2579 = vmatprep.subr.bf16.mxu0 0
      %2580 = vmatpush1.bf16.msra.mxu0 0
      %2581 = vmatprep.subr.bf16.mxu0 0
      %2582 = vmatpush1.bf16.msra.mxu0 0
      %2583 = vmatprep.subr.bf16.mxu0 0
      %2584 = vmatpush1.bf16.msra.mxu0 0
      %2585 = vmatprep.subr.bf16.mxu0 0
      %2586 = vmatpush1.bf16.msra.mxu0 %v2569
      %2587 = vmatprep.subr.bf16.mxu0 0
      %2588 = vmatpush2.bf16.msra.mxu0 0
      %2589 = vmatprep.subr.bf16.mxu0 0
      %2590 = vmatpush2.bf16.msra.mxu0 0
      %2591 = vmatprep.subr.bf16.mxu0 0
      %2592 = vmatpush2.bf16.msra.mxu0 0
      %2593 = vmatprep.subr.bf16.mxu0 0
      %2594 = vmatpush2.bf16.msra.mxu0 0
      %2595 = vmatprep.subr.bf16.mxu0 0
      %2596 = vmatpush2.bf16.msra.mxu0 0
      %2597 = vmatprep.subr.bf16.mxu0 0
      %2598 = vmatpush2.bf16.msra.mxu0 0
      %2599 = vmatprep.subr.bf16.mxu0 0
      %2600 = vmatpush2.bf16.msra.mxu0 0
      %2601 = vmatprep.subr.bf16.mxu0 0
      %2602 = vmatpush2.bf16.msra.mxu0 0
      %2603 = vmatprep.mubr.bf16.mxu0 0
      %2604 = vmatmul.mubr.bf16.gmra.mxu0 %v2553
      %v2605 = vpop.f32.mrf.mxu0
      %v2606 = vadd.f32 0.0, %v2605
      %v2607 = vpop.f32.mrf.mxu0
      %v2608 = vpop.f32.mrf.mxu0
      %v2609 = vadd.f32 0.0, %v2608
      %v2610 = vpop.f32.mrf.mxu0
      %2611 = vmatprep.mubr.bf16.mxu0 0
      %2612 = vmatmul.mubr.bf16.gmra.mxu0 %v2556
      %v2613 = vpop.f32.mrf.mxu0
      %v2614 = vadd.f32 0.0, %v2613
      %v2615 = vpop.f32.mrf.mxu0
      %v2616 = vpop.f32.mrf.mxu0
      %v2617 = vadd.f32 0.0, %v2616
      %v2618 = vpop.f32.mrf.mxu0
      %2619 = vmatprep.mubr.bf16.mxu0 0
      %2620 = vmatmul.mubr.bf16.gmra.mxu0 %v2559
      %v2621 = vpop.f32.mrf.mxu0
      %v2622 = vadd.f32 0.0, %v2621
      %v2623 = vpop.f32.mrf.mxu0
      %v2624 = vpop.f32.mrf.mxu0
      %v2625 = vadd.f32 0.0, %v2624
      %v2626 = vpop.f32.mrf.mxu0
      %2627 = vmatprep.mubr.bf16.mxu0 0
      %2628 = vmatmul.mubr.bf16.gmra.mxu0 %v2562
      %v2629 = vpop.f32.mrf.mxu0
      %v2630 = vadd.f32 0.0, %v2629
      %v2631 = vpop.f32.mrf.mxu0
      %v2632 = vpop.f32.mrf.mxu0
      %v2633 = vadd.f32 0.0, %v2632
      %v2634 = vpop.f32.mrf.mxu0
      %2635 = vmatprep.mubr.bf16.mxu0 0
      %2636 = vmatmul.mubr.bf16.gmra.mxu0 %v2565
      %v2637 = vpop.f32.mrf.mxu0
      %v2638 = vadd.f32 0.0, %v2637
      %v2639 = vpop.f32.mrf.mxu0
      %v2640 = vpop.f32.mrf.mxu0
      %v2641 = vpop.f32.mrf.mxu0
      %2642 = vdwg.mxu0
      %v2645 = vunpack.c.l.b16 %v2543
      %v2646 = vunpack.c.l.b16 %v2544
      %v2647 = vpack.c.b16 %v2646, %v2645
      %v2650 = vsel %vm1074, %v1180, 0
      %v2653 = vsel %vm1074, %v1181, 0
      %v2656 = vsel %vm1074, %v1182, 0
      %v2659 = vsel %vm1074, %v1183, 0
      %v2662 = vsel %vm1074, %v1184, 0
      %2664 = vmatprep.subr.bf16.mxu0 0
      %2665 = vmatpush1.bf16.msra.mxu0 0
      %2666 = vmatprep.subr.bf16.mxu0 0
      %2667 = vmatpush1.bf16.msra.mxu0 0
      %2668 = vmatprep.subr.bf16.mxu0 0
      %2669 = vmatpush1.bf16.msra.mxu0 0
      %2670 = vmatprep.subr.bf16.mxu0 0
      %2671 = vmatpush1.bf16.msra.mxu0 0
      %2672 = vmatprep.subr.bf16.mxu0 0
      %2673 = vmatpush1.bf16.msra.mxu0 0
      %2674 = vmatprep.subr.bf16.mxu0 0
      %2675 = vmatpush1.bf16.msra.mxu0 0
      %2676 = vmatprep.subr.bf16.mxu0 0
      %2677 = vmatpush1.bf16.msra.mxu0 0
      %2678 = vmatprep.subr.bf16.mxu0 0
      %2679 = vmatpush1.bf16.msra.mxu0 %v2647
      %2680 = vmatprep.subr.bf16.mxu0 0
      %2681 = vmatpush2.bf16.msra.mxu0 0
      %2682 = vmatprep.subr.bf16.mxu0 0
      %2683 = vmatpush2.bf16.msra.mxu0 0
      %2684 = vmatprep.subr.bf16.mxu0 0
      %2685 = vmatpush2.bf16.msra.mxu0 0
      %2686 = vmatprep.subr.bf16.mxu0 0
      %2687 = vmatpush2.bf16.msra.mxu0 0
      %2688 = vmatprep.subr.bf16.mxu0 0
      %2689 = vmatpush2.bf16.msra.mxu0 0
      %2690 = vmatprep.subr.bf16.mxu0 0
      %2691 = vmatpush2.bf16.msra.mxu0 0
      %2692 = vmatprep.subr.bf16.mxu0 0
      %2693 = vmatpush2.bf16.msra.mxu0 0
      %2694 = vmatprep.subr.bf16.mxu0 0
      %2695 = vmatpush2.bf16.msra.mxu0 0
      %2696 = vmatprep.mubr.bf16.mxu0 0
      %2697 = vmatmul.mubr.bf16.gmra.mxu0 %v2650
      %v2698 = vpop.f32.mrf.mxu0
      %v2699 = vadd.f32 %v2606, %v2698
      %v2700 = vpop.f32.mrf.mxu0
      %v2701 = vpop.f32.mrf.mxu0
      %v2702 = vadd.f32 %v2609, %v2701
      %v2703 = vpop.f32.mrf.mxu0
      %2704 = vmatprep.mubr.bf16.mxu0 0
      %2705 = vmatmul.mubr.bf16.gmra.mxu0 %v2653
      %v2706 = vpop.f32.mrf.mxu0
      %v2707 = vadd.f32 %v2614, %v2706
      %v2708 = vpop.f32.mrf.mxu0
      %v2709 = vpop.f32.mrf.mxu0
      %v2710 = vadd.f32 %v2617, %v2709
      %v2711 = vpop.f32.mrf.mxu0
      %2712 = vmatprep.mubr.bf16.mxu0 0
      %2713 = vmatmul.mubr.bf16.gmra.mxu0 %v2656
      %v2714 = vpop.f32.mrf.mxu0
      %v2715 = vadd.f32 %v2622, %v2714
      %v2716 = vpop.f32.mrf.mxu0
      %v2717 = vpop.f32.mrf.mxu0
      %v2718 = vadd.f32 %v2625, %v2717
      %v2719 = vpop.f32.mrf.mxu0
      %2720 = vmatprep.mubr.bf16.mxu0 0
      %2721 = vmatmul.mubr.bf16.gmra.mxu0 %v2659
      %v2722 = vpop.f32.mrf.mxu0
      %v2723 = vadd.f32 %v2630, %v2722
      %v2724 = vpop.f32.mrf.mxu0
      %v2725 = vpop.f32.mrf.mxu0
      %v2726 = vadd.f32 %v2633, %v2725
      %v2727 = vpop.f32.mrf.mxu0
      %2728 = vmatprep.mubr.bf16.mxu0 0
      %2729 = vmatmul.mubr.bf16.gmra.mxu0 %v2662
      %v2730 = vpop.f32.mrf.mxu0
      %v2731 = vadd.f32 %v2638, %v2730
      %v2732 = vpop.f32.mrf.mxu0
      %v2733 = vpop.f32.mrf.mxu0
      %v2734 = vpop.f32.mrf.mxu0
      %2735 = vdwg.mxu0
      %v2736 = vld [vmem:[%s10] sm:$0x1]
      %v2738 = vlaneseq
      %v2739 = vshrl.u32 %v2738, 7
      %v2740 = vsub.s32 0, %v2739
      %v2741 = vrot.slane %v2736, %v2740
      %v2743 = vadd.f32 %v2699, %v2741
      %v2744 = vadd.f32 %v2702, %v2741
      %v2745 = vadd.f32 %v2707, %v2741
      %v2746 = vadd.f32 %v2710, %v2741
      %v2747 = vadd.f32 %v2715, %v2741
      %v2748 = vadd.f32 %v2718, %v2741
      %v2749 = vadd.f32 %v2723, %v2741
      %v2750 = vadd.f32 %v2726, %v2741
      %v2751 = vadd.f32 %v2731, %v2741
      %v2752 = vadd.f32 %v1045, %v2743
      %v2753 = vadd.f32 %v1046, %v2744
      %v2754 = vadd.f32 %v1047, %v2745
      %v2755 = vadd.f32 %v1048, %v2746
      %v2756 = vadd.f32 %v1049, %v2747
      %v2757 = vadd.f32 %v1050, %v2748
      %v2758 = vadd.f32 %v1051, %v2749
      %v2759 = vadd.f32 %v1052, %v2750
      %v2760 = vadd.f32 %v1053, %v2751
      %v2761 = vmax.f32 %v2752, 0.0
      %v2762 = vmax.f32 %v2753, 0.0
      %v2763 = vmax.f32 %v2754, 0.0
      %v2764 = vmax.f32 %v2755, 0.0
      %v2765 = vmax.f32 %v2756, 0.0
      %v2766 = vmax.f32 %v2757, 0.0
      %v2767 = vmax.f32 %v2758, 0.0
      %v2768 = vmax.f32 %v2759, 0.0
      %v2769 = vmax.f32 %v2760, 0.0
      %v2770 = vmul.f32 %v2761, %v440
      %v2771 = vmul.f32 %v2762, %v441
      %v2772 = vmul.f32 %v2763, %v442
      %v2773 = vmul.f32 %v2764, %v443
      %v2774 = vmul.f32 %v2765, %v444
      %v2775 = vmul.f32 %v2766, %v445
      %v2776 = vmul.f32 %v2767, %v446
      %v2777 = vmul.f32 %v2768, %v447
      %v2778 = vmul.f32 %v2769, %v448
      %v2779 = vsel %vm1074, %v2770, 0.0
      %v2780 = vsel %vm1074, %v2771, 0.0
      %v2781 = vadd.f32 %v2779, %v2780
      %v2782 = vsel %vm1074, %v2772, 0.0
      %v2783 = vadd.f32 %v2781, %v2782
      %v2784 = vsel %vm1074, %v2773, 0.0
      %v2785 = vadd.f32 %v2783, %v2784
      %v2786 = vsel %vm1074, %v2774, 0.0
      %v2787 = vadd.f32 %v2785, %v2786
      %v2788 = vsel %vm1074, %v2775, 0.0
      %v2789 = vadd.f32 %v2787, %v2788
      %v2790 = vsel %vm1074, %v2776, 0.0
      %v2791 = vadd.f32 %v2789, %v2790
      %v2792 = vsel %vm1074, %v2777, 0.0
      %v2793 = vadd.f32 %v2791, %v2792
      %v2794 = vsel %vm1074, %v2778, 0.0
      %v2795 = vadd.f32 %v2793, %v2794
      %v2796 = vrot.slane %v2795, 4
      %v2797 = vadd.f32 %v2795, %v2796
      %v2798 = vrot.slane %v2797, 2
      %v2799 = vadd.f32 %v2797, %v2798
      %v2800 = vrot.slane %v2799, 1
      %v2801 = vadd.f32 %v2799, %v2800
      %v2802 = vmul.f32 %v2801, 0.015625
      %v2803 = vpack.c.bf16 %v2802, %v2802
      %v2804 = vld [vmem:[%s11] sm:$0xff]
      %v2805 = vld [vmem:[%s11 + $0x8] sm:$0xff]
      %v2806 = vld [vmem:[%s11 + $0x10] sm:$0xff]
      %v2807 = vld [vmem:[%s11 + $0x18] sm:$0xff]
      %v2808 = vld [vmem:[%s12] sm:$0xf]
      %v2813 = vunpack.c.l.b16 %v2804
      %v2814 = vunpack.c.h.b16 %v2804
      %v2815 = vunpack.c.l.b16 %v2805
      %v2816 = vunpack.c.h.b16 %v2805
      %v2817 = vunpack.c.l.b16 %v2806
      %v2818 = vunpack.c.h.b16 %v2806
      %v2819 = vunpack.c.l.b16 %v2807
      %v2820 = vunpack.c.h.b16 %v2807
      %v2821 = vpack.c.b16 %v2817, %v2813
      %v2822 = vpack.c.b16 %v2818, %v2814
      %v2823 = vpack.c.b16 %v2819, %v2815
      %v2824 = vpack.c.b16 %v2820, %v2816
      %v2830 = vlaneseq
      %v2831 = vshrl.u32 %v2830, 7
      %v2832 = vsub.s32 0, %v2831
      %v2833 = vrot.slane %v2808, %v2832
      %v2834 = vlaneseq
      %v2835 = vshrl.u32 %v2834, 7
      %v2836 = vsub.s32 1, %v2835
      %v2837 = vrot.slane %v2808, %v2836
      %v2838 = vlaneseq
      %v2839 = vshrl.u32 %v2838, 7
      %v2840 = vsub.s32 2, %v2839
      %v2841 = vrot.slane %v2808, %v2840
      %v2842 = vlaneseq
      %v2843 = vshrl.u32 %v2842, 7
      %v2844 = vsub.s32 3, %v2843
      %v2845 = vrot.slane %v2808, %v2844
      %v2851 = vsel %vm1074, %v2803, 0
      %2853 = vmatprep.subr.bf16.mxu0 0
      %2854 = vmatpush1.bf16.msra.mxu0 0
      %2855 = vmatprep.subr.bf16.mxu0 0
      %2856 = vmatpush1.bf16.msra.mxu0 0
      %2857 = vmatprep.subr.bf16.mxu0 0
      %2858 = vmatpush1.bf16.msra.mxu0 0
      %2859 = vmatprep.subr.bf16.mxu0 0
      %2860 = vmatpush1.bf16.msra.mxu0 0
      %2861 = vmatprep.subr.bf16.mxu0 0
      %2862 = vmatpush1.bf16.msra.mxu0 0
      %2863 = vmatprep.subr.bf16.mxu0 0
      %2864 = vmatpush1.bf16.msra.mxu0 0
      %2865 = vmatprep.subr.bf16.mxu0 0
      %2866 = vmatpush1.bf16.msra.mxu0 0
      %2867 = vmatprep.subr.bf16.mxu0 %v2822
      %2868 = vmatpush1.bf16.msra.mxu0 %v2821
      %2869 = vmatprep.subr.bf16.mxu0 0
      %2870 = vmatpush2.bf16.msra.mxu0 0
      %2871 = vmatprep.subr.bf16.mxu0 0
      %2872 = vmatpush2.bf16.msra.mxu0 0
      %2873 = vmatprep.subr.bf16.mxu0 0
      %2874 = vmatpush2.bf16.msra.mxu0 0
      %2875 = vmatprep.subr.bf16.mxu0 0
      %2876 = vmatpush2.bf16.msra.mxu0 0
      %2877 = vmatprep.subr.bf16.mxu0 0
      %2878 = vmatpush2.bf16.msra.mxu0 0
      %2879 = vmatprep.subr.bf16.mxu0 0
      %2880 = vmatpush2.bf16.msra.mxu0 0
      %2881 = vmatprep.subr.bf16.mxu0 0
      %2882 = vmatpush2.bf16.msra.mxu0 0
      %2883 = vmatprep.subr.bf16.mxu0 0
      %2884 = vmatpush2.bf16.msra.mxu0 0
      %2885 = vmatprep.mubr.bf16.mxu0 0
      %2886 = vmatmul.mubr.bf16.gmra.mxu0 %v2851
      %v2887 = vpop.f32.mrf.mxu0
      %v2888 = vadd.f32 %v2833, %v2887
      %v2889 = vpop.f32.mrf.mxu0
      %v2890 = vadd.f32 %v2837, %v2889
      %v2891 = vpop.f32.mrf.mxu0
      %v2892 = vpop.f32.mrf.mxu0
      %2893 = vdwg.mxu0
      %2894 = vmatprep.subr.bf16.mxu0 0
      %2895 = vmatpush1.bf16.msra.mxu0 0
      %2896 = vmatprep.subr.bf16.mxu0 0
      %2897 = vmatpush1.bf16.msra.mxu0 0
      %2898 = vmatprep.subr.bf16.mxu0 0
      %2899 = vmatpush1.bf16.msra.mxu0 0
      %2900 = vmatprep.subr.bf16.mxu0 0
      %2901 = vmatpush1.bf16.msra.mxu0 0
      %2902 = vmatprep.subr.bf16.mxu0 0
      %2903 = vmatpush1.bf16.msra.mxu0 0
      %2904 = vmatprep.subr.bf16.mxu0 0
      %2905 = vmatpush1.bf16.msra.mxu0 0
      %2906 = vmatprep.subr.bf16.mxu0 0
      %2907 = vmatpush1.bf16.msra.mxu0 0
      %2908 = vmatprep.subr.bf16.mxu0 %v2824
      %2909 = vmatpush1.bf16.msra.mxu0 %v2823
      %2910 = vmatprep.subr.bf16.mxu0 0
      %2911 = vmatpush2.bf16.msra.mxu0 0
      %2912 = vmatprep.subr.bf16.mxu0 0
      %2913 = vmatpush2.bf16.msra.mxu0 0
      %2914 = vmatprep.subr.bf16.mxu0 0
      %2915 = vmatpush2.bf16.msra.mxu0 0
      %2916 = vmatprep.subr.bf16.mxu0 0
      %2917 = vmatpush2.bf16.msra.mxu0 0
      %2918 = vmatprep.subr.bf16.mxu0 0
      %2919 = vmatpush2.bf16.msra.mxu0 0
      %2920 = vmatprep.subr.bf16.mxu0 0
      %2921 = vmatpush2.bf16.msra.mxu0 0
      %2922 = vmatprep.subr.bf16.mxu0 0
      %2923 = vmatpush2.bf16.msra.mxu0 0
      %2924 = vmatprep.subr.bf16.mxu0 0
      %2925 = vmatpush2.bf16.msra.mxu0 0
      %2926 = vmatprep.mubr.bf16.mxu0 0
      %2927 = vmatmul.mubr.bf16.gmra.mxu0 %v2851
      %v2928 = vpop.f32.mrf.mxu0
      %v2929 = vadd.f32 %v2841, %v2928
      %v2930 = vpop.f32.mrf.mxu0
      %v2931 = vadd.f32 %v2845, %v2930
      %v2932 = vpop.f32.mrf.mxu0
      %v2933 = vpop.f32.mrf.mxu0
      %2934 = vdwg.mxu0
      %v2935 = vmul.f32 %v2888, %v2888
      %v2936 = vmul.f32 %v2890, %v2890
      %v2937 = vmul.f32 %v2929, %v2929
      %v2938 = vmul.f32 %v2931, %v2931
      %vm2939 = vcmask 1040384
      %v2940 = vsel %vm2939, %v2935, 0.0
      %v2941 = vsel %vm2939, %v2936, 0.0
      %v2942 = vadd.f32 %v2940, %v2941
      %v2943 = vsel %vm2939, %v2937, 0.0
      %v2944 = vadd.f32 %v2942, %v2943
      %v2945 = vsel %vm2939, %v2938, 0.0
      %v2946 = vadd.f32 %v2944, %v2945
      %2947 = vadd.xlane.f32.xlu0 %v2946
      %v2948 = vpop.xlane.xlu0 %2947
      %v2949 = vmax.f32 %v2948, 1e-24
      %v2950 = vrsqrt.pop %v2949
      %v2951 = vmul.f32 %v2888, %v2950
      %v2952 = vmul.f32 %v2890, %v2950
      %v2953 = vmul.f32 %v2929, %v2950
      %v2954 = vmul.f32 %v2931, %v2950
      %v2959 = vcombine.low %v2951, %v2952
      %v2960 = vcombine.low %v2953, %v2954
      %v2962 = vunpack.c.l.s4 1966171168
      %v2963 = vunpack.c.0.s8 %v2962
      %v2964 = vlaneseq
      %v2965 = vshrl.u32 %v2964, 7
      %v2966 = vsub.s32 %v2963, %v2965
      %v2967 = vrot.slane %v2959, %v2966
      %v2969 = vunpack.c.l.s4 1966171168
      %v2970 = vunpack.c.0.s8 %v2969
      %v2971 = vlaneseq
      %v2972 = vshrl.u32 %v2971, 7
      %v2973 = vsub.s32 %v2970, %v2972
      %v2974 = vrot.slane %v2960, %v2973
      %v2975 = vcombine.low %v2967, %v2974
      %v2977 = vunpack.c.l.s4 1966171168
      %v2978 = vunpack.c.0.s8 %v2977
      %v2979 = vlaneseq
      %v2980 = vshrl.u32 %v2979, 7
      %v2981 = vsub.s32 %v2978, %v2980
      %v2982 = vrot.slane %v2975, %v2981
      %v2984 = vlaneseq
      %vm2985 = vcmp.ge.s32.totalorder %v2984, 0
      %vm2986 = vcmp.lt.s32.totalorder %v2984, 512
      %vm2987 = vmand %vm2985, %vm2986
      %2988 = vst.msk [vmem:[%s438] sm:$0xf] %vm2987, %v2982
      %p2989 = scmp.lt.s32.totalorder %s24, 1
      %s2990 = scalar_select %p2989, %s24, 1
      %s2991 = smul.addr %s2990, 4
      %s2992 = scalar_lea.vmem %s13, %s2991
      // Predicated region
      $region73: #{encoder_forward.1} parent=71 // pred_check
        %p2993 = pneg %p320
      $region74: #{encoder_forward.1} parent=71 // pred_check_branch
        %2995 = sbr.rel (%p2993) target = $region76
      $region75: #{encoder_forward.1} parent=71 // pred_region
        _
      $region76: #{encoder_forward.1} parent=71 // pred_fallthru
        _
    $region72: #{encoder_forward.1} parent=5 // pred_fallthru
      _
    %p2996 = scmp.le.s32.totalorder 2, %s19
    // Predicated region
    $region77: #{encoder_forward.1} parent=5 // pred_check
      %p2997 = pneg %p2996
    $region78: #{encoder_forward.1} parent=5 // pred_check_branch
      %2999 = sbr.rel (%p2997) target = $region80
    $region79: #{encoder_forward.1} parent=5 // pred_region
      %s3000 = ssub.s32 %s19, 2
      // Predicated region
      $region81: #{encoder_forward.1} parent=79 // pred_check
        %p3001 = pneg %p326
      $region82: #{encoder_forward.1} parent=79 // pred_check_branch
        %3003 = sbr.rel (%p3001) target = $region84
      $region83: #{encoder_forward.1} parent=79 // pred_region
        %p3004 = scmp.lt.s32.totalorder %s25, 1
        %s3005 = scalar_select %p3004, %s25, 1
        %s3006 = smul.addr %s3005, 4
        %s3007 = scalar_lea.vmem %s13, %s3006
      $region84: #{encoder_forward.1} parent=79 // pred_fallthru
        _
    $region80: #{encoder_forward.1} parent=5 // pred_fallthru
      _
  $region6: #{encoder_forward.1} parent=0 // loop_footer
    %s23 = sadd.s32 1, %s19
  $region7: #{encoder_forward.1} parent=0 // loop_footer_branch
    %18 = sbr.rel target = $region3
  $region8: #{encoder_forward.1} parent=0 // loop_exit
    _

</llo_original>
